<compile_context>
chip_gen: v6e
topology: v6e:2x2x1
jax: 0.10.0
libtpu: 0.0.40
codegen_flags: <defaults>
</compile_context>

<pallas_src>
import numpy as np
import jax
import jax.numpy as jnp
from jax.experimental import pallas as pl
from jax.experimental.pallas import tpu as pltpu


# ---------------------------------------------------------------------------
# Fused kernel
# ---------------------------------------------------------------------------
def timesnet_fused_kernel(x_ref, p_ref, g_ref, wc_ref, bc_ref, wd_ref, bd_ref,
                          o_ref):
    """Whole forward pass for one block of batch elements.

    x_ref : (bblk*(L+2), C) f32   zero-padded, channel-last, row-flattened input
    p_ref : (bblk*(L+2), m) f32   constant shift matrix: re-pads & re-zeroes the
                                  per-example edge rows of a layer output
    g_ref : (L*bblk, m)     f32   constant gather matrix: picks activation rows
                                  in (l-major, batch-minor) order for the dense
    wc_ref: (4*3, C, C)     bf16  conv weights, index = layer*3 + tap
    bc_ref: (4, 1, C)       f32   conv biases
    wd_ref: (L, C, O)       bf16  dense weights, wd[l, c, o] == W_pt[c*L + l, o]
    bd_ref: (1, O)          f32   dense bias
    o_ref : (bblk, O)       f32
    """
    nrows, C = x_ref.shape
    m = p_ref.shape[1]                    # nrows - 2 conv-output rows
    L = wd_ref.shape[0]
    Lp = L + 2
    bblk = nrows // Lp
    n_layers = wc_ref.shape[0] // 3
    out_dim = o_ref.shape[1]

    x = x_ref[...]                        # (nrows, C) f32, padded activations
    y = None

    # ---- conv stack: each tap is a single (m, C) @ (C, C) bf16 MXU matmul
    # over the whole batch block; bias + ReLU in f32. ----
    for i in range(n_layers):
        acc = jnp.zeros((m, C), jnp.float32)
        for k in range(3):                # 3 taps, statically unrolled
            lhs = x[k:k + m, :].astype(jnp.bfloat16)
            acc = acc + jnp.dot(lhs, wc_ref[3 * i + k],
                                preferred_element_type=jnp.float32)
        y = jnp.maximum(acc + bc_ref[i], 0.0)          # (m, C) f32
        if i < n_layers - 1:
            # Re-pad for the next layer: P has a single 1.0 per activation row
            # and all-zero rows at the per-example padding rows, so junk rows
            # (computed across example boundaries) are zeroed and the (L+2)
            # padded structure is restored without any unaligned stores.
            x = jnp.dot(p_ref[...], y, preferred_element_type=jnp.float32)

    # ---- dense head (flatten folded into wd's (L, C, O) layout).
    # G gathers the activation rows as (l-major, batch-minor), so the rows for
    # sequence position l are a contiguous (bblk, C) slab. ----
    yg = jnp.dot(g_ref[...], y, preferred_element_type=jnp.float32)  # (L*bblk, C)
    out = jnp.zeros((bblk, out_dim), jnp.float32)
    for l in range(L):
        rows = yg[l * bblk:(l + 1) * bblk, :].astype(jnp.bfloat16)   # (bblk, C)
        out = out + jnp.dot(rows, wd_ref[l],
                            preferred_element_type=jnp.float32)
    o_ref[...] = out + bd_ref[...]


# ---------------------------------------------------------------------------
# Wrapper
# ---------------------------------------------------------------------------
def timesnet_forward(x_bcl, params):
    """x_bcl: (B, input_features, L) -- PyTorch NCW input."""
    wc, bc, wd, bd = params["wc"], params["bc"], params["wd"], params["bd"]
    B, cin, L = x_bcl.shape
    C = wc.shape[-1]                      # hidden width (64)
    out_dim = wd.shape[-1]
    Lp = L + 2

    # Channel-last, zero-pad channels to C (layer-0 weights are zero-padded to
    # match) and the length by 1 on each side, then flatten (B, Lp) into rows
    # so the whole batch block feeds the matmul M dimension.
    x = jnp.transpose(x_bcl, (0, 2, 1))                   # (B, L, cin)
    x = jnp.pad(x, ((0, 0), (1, 1), (0, C - cin)))        # (B, Lp, C)
    x_flat = x.reshape(B * Lp, C).astype(jnp.float32)

    bblk = 8 if B % 8 == 0 else B          # batch elements per grid step
    nblocks = B // bblk
    nrows = bblk * Lp
    m = nrows - 2

    # Constant shift / gather matrices (built at trace time).
    j = np.arange(m)
    is_act = ((j + 1) % Lp >= 1) & ((j + 1) % Lp <= L)    # activation rows of y
    p_mat = np.zeros((nrows, m), np.float32)
    p_mat[np.arange(1, nrows - 1), j] = is_act.astype(np.float32)
    g_mat = np.zeros((L * bblk, m), np.float32)
    for b in range(bblk):
        for l in range(L):
            g_mat[l * bblk + b, b * Lp + l] = 1.0

    return pl.pallas_call(
        timesnet_fused_kernel,
        out_shape=jax.ShapeDtypeStruct((B, out_dim), jnp.float32),
        grid=(nblocks,),
        in_specs=[
            pl.BlockSpec((nrows, C), lambda g: (g, 0)),
            pl.BlockSpec((nrows, m), lambda g: (0, 0)),
            pl.BlockSpec((L * bblk, m), lambda g: (0, 0)),
            pl.BlockSpec(wc.shape, lambda g: (0, 0, 0)),
            pl.BlockSpec(bc.shape, lambda g: (0, 0, 0)),
            pl.BlockSpec(wd.shape, lambda g: (0, 0, 0)),
            pl.BlockSpec(bd.shape, lambda g: (0, 0)),
        ],
        out_specs=pl.BlockSpec((bblk, out_dim), lambda g: (g, 0)),
        compiler_params=pltpu.CompilerParams(
            dimension_semantics=("parallel",)),
    )(x_flat, p_mat, g_mat, wc, bc, wd, bd)


# ---------------------------------------------------------------------------
# Deterministic parameter init (shapes from the PyTorch __init__)
# ---------------------------------------------------------------------------
def init_params(key, input_features, seq_len, output_length,
                num_layers=4, hidden=64):
    keys = jax.random.split(key, 2 * num_layers + 2)
    wcs, bcs = [], []
    for i in range(num_layers):
        cin = input_features if i == 0 else hidden
        bound = 1.0 / (cin * 3) ** 0.5
        # Tap-major (3, cin, hidden): a storage permutation of PyTorch's
        # (hidden, cin, 3) for the same synthetic parameters.  Layer-0 input
        # channels are zero-padded so every layer shares one weight shape.
        w = jax.random.uniform(keys[2 * i], (3, cin, hidden), jnp.float32,
                               -bound, bound)
        w = jnp.pad(w, ((0, 0), (0, hidden - cin), (0, 0)))
        b = jax.random.uniform(keys[2 * i + 1], (1, hidden), jnp.float32,
                               -bound, bound)
        wcs.append(w)
        bcs.append(b)
    fan_in = hidden * seq_len
    bound = 1.0 / fan_in ** 0.5
    # Dense weight stored as (L, hidden, O) with wd[l, c, o] == W_pt[c*L+l, o]:
    # the channel-major Flatten permutation is folded into the static layout,
    # removing any runtime transpose before the dense layer.
    wd = jax.random.uniform(keys[-2], (seq_len, hidden, output_length),
                            jnp.float32, -bound, bound)
    bd = jax.random.uniform(keys[-1], (1, output_length), jnp.float32,
                            -bound, bound)
    return {
        "wc": jnp.concatenate(wcs, axis=0).astype(jnp.bfloat16),  # (4*3, C, C)
        "bc": jnp.stack(bcs).astype(jnp.float32),                 # (4, 1, C)
        "wd": wd.astype(jnp.bfloat16),                            # (L, C, O)
        "bd": bd,                                                 # (1, O)
    }


# ---------------------------------------------------------------------------
# Pure-JAX (non-Pallas) reference with the same bf16-operand / f32-accumulate
# precision, used as an in-script correctness check.
# ---------------------------------------------------------------------------
def reference_forward(x_bcl, params):
    wc, bc, wd, bd = params["wc"], params["bc"], params["wd"], params["bd"]
    B, cin, L = x_bcl.shape
    C = wc.shape[-1]
    n_layers = wc.shape[0] // 3
    h = jnp.transpose(x_bcl, (0, 2, 1))                   # (B, L, cin)
    h = jnp.pad(h, ((0, 0), (0, 0), (0, C - cin)))        # (B, L, C)
    for i in range(n_layers):
        hp = jnp.pad(h, ((0, 0), (1, 1), (0, 0)))         # (B, L+2, C)
        acc = jnp.zeros((B, L, C), jnp.float32)
        for k in range(3):
            acc = acc + jnp.einsum(
                "blc,cd->bld", hp[:, k:k + L, :].astype(jnp.bfloat16),
                wc[3 * i + k], preferred_element_type=jnp.float32)
        h = jnp.maximum(acc + bc[i], 0.0)
    flat = h.reshape(B, L * C).astype(jnp.bfloat16)       # (l, c) row-major
    return jnp.dot(flat, wd.reshape(L * C, -1),
                   preferred_element_type=jnp.float32) + bd


if __name__ == "__main__":
    B, input_features, seq_len, output_length = 2, 4, 16, 8
    key = jax.random.PRNGKey(0)
    key, kx = jax.random.split(key)
    x = jax.random.normal(kx, (B, input_features, seq_len), jnp.float32)
    params = init_params(key, input_features, seq_len, output_length)

    out = jax.block_until_ready(jax.jit(timesnet_forward)(x, params))
    assert out.shape == (B, output_length), out.shape
    assert bool(jnp.all(jnp.isfinite(out)))

    ref = jax.block_until_ready(jax.jit(reference_forward)(x, params))
    assert bool(jnp.allclose(out, ref, rtol=1e-2, atol=1e-2)), (
        float(jnp.max(jnp.abs(out - ref))))
    print("KERNEL_OK")
</pallas_src>

<mosaic_0001>
module attributes {stable_mosaic.version = 11 : i64} {
  func.func @timesnet_fused_kernel(%arg0: i32, %arg1: memref<36x64xf32, #tpu.memory_space<vmem>>, %arg2: memref<36x34xf32, #tpu.memory_space<vmem>>, %arg3: memref<32x34xf32, #tpu.memory_space<vmem>>, %arg4: memref<12x64x64xbf16, #tpu.memory_space<vmem>>, %arg5: memref<4x1x64xf32, #tpu.memory_space<vmem>>, %arg6: memref<16x64x8xbf16, #tpu.memory_space<vmem>>, %arg7: memref<1x8xf32, #tpu.memory_space<vmem>>, %arg8: memref<2x8xf32, #tpu.memory_space<vmem>>) attributes {dimension_semantics = [#tpu.dimension_semantics<parallel>], iteration_bounds = array<i64: 1>, scalar_prefetch = 0 : i64, scratch_operands = 0 : i64, tpu.core_type = #tpu.core_type<tc>, window_params = [{transform_indices = @transform_0, window_bounds = array<i64: 36, 64>}, {pipeline_mode = #tpu.pipeline_mode<synchronous>, transform_indices = @transform_1, window_bounds = array<i64: 36, 34>}, {pipeline_mode = #tpu.pipeline_mode<synchronous>, transform_indices = @transform_2, window_bounds = array<i64: 32, 34>}, {pipeline_mode = #tpu.pipeline_mode<synchronous>, transform_indices = @transform_3, window_bounds = array<i64: 12, 64, 64>}, {pipeline_mode = #tpu.pipeline_mode<synchronous>, transform_indices = @transform_4, window_bounds = array<i64: 4, 1, 64>}, {pipeline_mode = #tpu.pipeline_mode<synchronous>, transform_indices = @transform_5, window_bounds = array<i64: 16, 64, 8>}, {pipeline_mode = #tpu.pipeline_mode<synchronous>, transform_indices = @transform_6, window_bounds = array<i64: 1, 8>}, {transform_indices = @transform_7, window_bounds = array<i64: 2, 8>}]} {
    %c0 = arith.constant 0 : index
    %c0_0 = arith.constant 0 : index
    %0 = vector.load %arg1[%c0, %c0_0] : memref<36x64xf32, #tpu.memory_space<vmem>>, vector<36x64xf32>
    %cst = arith.constant 0.000000e+00 : f32
    %1 = vector.broadcast %cst : f32 to vector<34x64xf32>
    %2 = vector.extract_strided_slice %0 {offsets = [0, 0], sizes = [34, 64], strides = [1, 1]} : vector<36x64xf32> to vector<34x64xf32>
    %3 = arith.truncf %2 : vector<34x64xf32> to vector<34x64xbf16>
    %c0_1 = arith.constant 0 : index
    %c0_2 = arith.constant 0 : index
    %c0_3 = arith.constant 0 : index
    %4 = vector.load %arg4[%c0_1, %c0_2, %c0_3] : memref<12x64x64xbf16, #tpu.memory_space<vmem>>, vector<1x64x64xbf16>
    %5 = vector.shape_cast %4 : vector<1x64x64xbf16> to vector<64x64xbf16>
    %cst_4 = arith.constant dense<0.000000e+00> : vector<34x64xf32>
    %6 = tpu.matmul %3, %5, %cst_4 {dimension_numbers = #tpu.dot_dimension_numbers<[1], [0], [0], [1], [0, 0, 1, 1], [], []>} : vector<34x64xbf16>, vector<64x64xbf16>, vector<34x64xf32> -> vector<34x64xf32>
    %7 = arith.addf %1, %6 : vector<34x64xf32>
    %8 = vector.extract_strided_slice %0 {offsets = [1, 0], sizes = [34, 64], strides = [1, 1]} : vector<36x64xf32> to vector<34x64xf32>
    %9 = arith.truncf %8 : vector<34x64xf32> to vector<34x64xbf16>
    %c1 = arith.constant 1 : index
    %c0_5 = arith.constant 0 : index
    %c0_6 = arith.constant 0 : index
    %10 = vector.load %arg4[%c1, %c0_5, %c0_6] : memref<12x64x64xbf16, #tpu.memory_space<vmem>>, vector<1x64x64xbf16>
    %11 = vector.shape_cast %10 : vector<1x64x64xbf16> to vector<64x64xbf16>
    %cst_7 = arith.constant dense<0.000000e+00> : vector<34x64xf32>
    %12 = tpu.matmul %9, %11, %cst_7 {dimension_numbers = #tpu.dot_dimension_numbers<[1], [0], [0], [1], [0, 0, 1, 1], [], []>} : vector<34x64xbf16>, vector<64x64xbf16>, vector<34x64xf32> -> vector<34x64xf32>
    %13 = arith.addf %7, %12 : vector<34x64xf32>
    %14 = vector.extract_strided_slice %0 {offsets = [2, 0], sizes = [34, 64], strides = [1, 1]} : vector<36x64xf32> to vector<34x64xf32>
    %15 = arith.truncf %14 : vector<34x64xf32> to vector<34x64xbf16>
    %c2 = arith.constant 2 : index
    %c0_8 = arith.constant 0 : index
    %c0_9 = arith.constant 0 : index
    %16 = vector.load %arg4[%c2, %c0_8, %c0_9] : memref<12x64x64xbf16, #tpu.memory_space<vmem>>, vector<1x64x64xbf16>
    %17 = vector.shape_cast %16 : vector<1x64x64xbf16> to vector<64x64xbf16>
    %cst_10 = arith.constant dense<0.000000e+00> : vector<34x64xf32>
    %18 = tpu.matmul %15, %17, %cst_10 {dimension_numbers = #tpu.dot_dimension_numbers<[1], [0], [0], [1], [0, 0, 1, 1], [], []>} : vector<34x64xbf16>, vector<64x64xbf16>, vector<34x64xf32> -> vector<34x64xf32>
    %19 = arith.addf %13, %18 : vector<34x64xf32>
    %c0_11 = arith.constant 0 : index
    %c0_12 = arith.constant 0 : index
    %c0_13 = arith.constant 0 : index
    %20 = vector.load %arg5[%c0_11, %c0_12, %c0_13] : memref<4x1x64xf32, #tpu.memory_space<vmem>>, vector<1x1x64xf32>
    %21 = vector.shape_cast %20 : vector<1x1x64xf32> to vector<1x64xf32>
    %22 = vector.broadcast %21 : vector<1x64xf32> to vector<34x64xf32>
    %23 = arith.addf %19, %22 : vector<34x64xf32>
    %cst_14 = arith.constant 0.000000e+00 : f32
    %24 = vector.broadcast %cst_14 : f32 to vector<34x64xf32>
    %25 = arith.maximumf %23, %24 : vector<34x64xf32>
    %c0_15 = arith.constant 0 : index
    %c0_16 = arith.constant 0 : index
    %26 = vector.load %arg2[%c0_15, %c0_16] : memref<36x34xf32, #tpu.memory_space<vmem>>, vector<36x34xf32>
    %cst_17 = arith.constant dense<0.000000e+00> : vector<36x64xf32>
    %27 = tpu.matmul %26, %25, %cst_17 {dimension_numbers = #tpu.dot_dimension_numbers<[1], [0], [0], [1], [0, 0, 1, 1], [], []>} : vector<36x34xf32>, vector<34x64xf32>, vector<36x64xf32> -> vector<36x64xf32>
    %cst_18 = arith.constant 0.000000e+00 : f32
    %28 = vector.broadcast %cst_18 : f32 to vector<34x64xf32>
    %29 = vector.extract_strided_slice %27 {offsets = [0, 0], sizes = [34, 64], strides = [1, 1]} : vector<36x64xf32> to vector<34x64xf32>
    %30 = arith.truncf %29 : vector<34x64xf32> to vector<34x64xbf16>
    %c3 = arith.constant 3 : index
    %c0_19 = arith.constant 0 : index
    %c0_20 = arith.constant 0 : index
    %31 = vector.load %arg4[%c3, %c0_19, %c0_20] : memref<12x64x64xbf16, #tpu.memory_space<vmem>>, vector<1x64x64xbf16>
    %32 = vector.shape_cast %31 : vector<1x64x64xbf16> to vector<64x64xbf16>
    %cst_21 = arith.constant dense<0.000000e+00> : vector<34x64xf32>
    %33 = tpu.matmul %30, %32, %cst_21 {dimension_numbers = #tpu.dot_dimension_numbers<[1], [0], [0], [1], [0, 0, 1, 1], [], []>} : vector<34x64xbf16>, vector<64x64xbf16>, vector<34x64xf32> -> vector<34x64xf32>
    %34 = arith.addf %28, %33 : vector<34x64xf32>
    %35 = vector.extract_strided_slice %27 {offsets = [1, 0], sizes = [34, 64], strides = [1, 1]} : vector<36x64xf32> to vector<34x64xf32>
    %36 = arith.truncf %35 : vector<34x64xf32> to vector<34x64xbf16>
    %c4 = arith.constant 4 : index
    %c0_22 = arith.constant 0 : index
    %c0_23 = arith.constant 0 : index
    %37 = vector.load %arg4[%c4, %c0_22, %c0_23] : memref<12x64x64xbf16, #tpu.memory_space<vmem>>, vector<1x64x64xbf16>
    %38 = vector.shape_cast %37 : vector<1x64x64xbf16> to vector<64x64xbf16>
    %cst_24 = arith.constant dense<0.000000e+00> : vector<34x64xf32>
    %39 = tpu.matmul %36, %38, %cst_24 {dimension_numbers = #tpu.dot_dimension_numbers<[1], [0], [0], [1], [0, 0, 1, 1], [], []>} : vector<34x64xbf16>, vector<64x64xbf16>, vector<34x64xf32> -> vector<34x64xf32>
    %40 = arith.addf %34, %39 : vector<34x64xf32>
    %41 = vector.extract_strided_slice %27 {offsets = [2, 0], sizes = [34, 64], strides = [1, 1]} : vector<36x64xf32> to vector<34x64xf32>
    %42 = arith.truncf %41 : vector<34x64xf32> to vector<34x64xbf16>
    %c5 = arith.constant 5 : index
    %c0_25 = arith.constant 0 : index
    %c0_26 = arith.constant 0 : index
    %43 = vector.load %arg4[%c5, %c0_25, %c0_26] : memref<12x64x64xbf16, #tpu.memory_space<vmem>>, vector<1x64x64xbf16>
    %44 = vector.shape_cast %43 : vector<1x64x64xbf16> to vector<64x64xbf16>
    %cst_27 = arith.constant dense<0.000000e+00> : vector<34x64xf32>
    %45 = tpu.matmul %42, %44, %cst_27 {dimension_numbers = #tpu.dot_dimension_numbers<[1], [0], [0], [1], [0, 0, 1, 1], [], []>} : vector<34x64xbf16>, vector<64x64xbf16>, vector<34x64xf32> -> vector<34x64xf32>
    %46 = arith.addf %40, %45 : vector<34x64xf32>
    %c1_28 = arith.constant 1 : index
    %c0_29 = arith.constant 0 : index
    %c0_30 = arith.constant 0 : index
    %47 = vector.load %arg5[%c1_28, %c0_29, %c0_30] : memref<4x1x64xf32, #tpu.memory_space<vmem>>, vector<1x1x64xf32>
    %48 = vector.shape_cast %47 : vector<1x1x64xf32> to vector<1x64xf32>
    %49 = vector.broadcast %48 : vector<1x64xf32> to vector<34x64xf32>
    %50 = arith.addf %46, %49 : vector<34x64xf32>
    %cst_31 = arith.constant 0.000000e+00 : f32
    %51 = vector.broadcast %cst_31 : f32 to vector<34x64xf32>
    %52 = arith.maximumf %50, %51 : vector<34x64xf32>
    %c0_32 = arith.constant 0 : index
    %c0_33 = arith.constant 0 : index
    %53 = vector.load %arg2[%c0_32, %c0_33] : memref<36x34xf32, #tpu.memory_space<vmem>>, vector<36x34xf32>
    %cst_34 = arith.constant dense<0.000000e+00> : vector<36x64xf32>
    %54 = tpu.matmul %53, %52, %cst_34 {dimension_numbers = #tpu.dot_dimension_numbers<[1], [0], [0], [1], [0, 0, 1, 1], [], []>} : vector<36x34xf32>, vector<34x64xf32>, vector<36x64xf32> -> vector<36x64xf32>
    %cst_35 = arith.constant 0.000000e+00 : f32
    %55 = vector.broadcast %cst_35 : f32 to vector<34x64xf32>
    %56 = vector.extract_strided_slice %54 {offsets = [0, 0], sizes = [34, 64], strides = [1, 1]} : vector<36x64xf32> to vector<34x64xf32>
    %57 = arith.truncf %56 : vector<34x64xf32> to vector<34x64xbf16>
    %c6 = arith.constant 6 : index
    %c0_36 = arith.constant 0 : index
    %c0_37 = arith.constant 0 : index
    %58 = vector.load %arg4[%c6, %c0_36, %c0_37] : memref<12x64x64xbf16, #tpu.memory_space<vmem>>, vector<1x64x64xbf16>
    %59 = vector.shape_cast %58 : vector<1x64x64xbf16> to vector<64x64xbf16>
    %cst_38 = arith.constant dense<0.000000e+00> : vector<34x64xf32>
    %60 = tpu.matmul %57, %59, %cst_38 {dimension_numbers = #tpu.dot_dimension_numbers<[1], [0], [0], [1], [0, 0, 1, 1], [], []>} : vector<34x64xbf16>, vector<64x64xbf16>, vector<34x64xf32> -> vector<34x64xf32>
    %61 = arith.addf %55, %60 : vector<34x64xf32>
    %62 = vector.extract_strided_slice %54 {offsets = [1, 0], sizes = [34, 64], strides = [1, 1]} : vector<36x64xf32> to vector<34x64xf32>
    %63 = arith.truncf %62 : vector<34x64xf32> to vector<34x64xbf16>
    %c7 = arith.constant 7 : index
    %c0_39 = arith.constant 0 : index
    %c0_40 = arith.constant 0 : index
    %64 = vector.load %arg4[%c7, %c0_39, %c0_40] : memref<12x64x64xbf16, #tpu.memory_space<vmem>>, vector<1x64x64xbf16>
    %65 = vector.shape_cast %64 : vector<1x64x64xbf16> to vector<64x64xbf16>
    %cst_41 = arith.constant dense<0.000000e+00> : vector<34x64xf32>
    %66 = tpu.matmul %63, %65, %cst_41 {dimension_numbers = #tpu.dot_dimension_numbers<[1], [0], [0], [1], [0, 0, 1, 1], [], []>} : vector<34x64xbf16>, vector<64x64xbf16>, vector<34x64xf32> -> vector<34x64xf32>
    %67 = arith.addf %61, %66 : vector<34x64xf32>
    %68 = vector.extract_strided_slice %54 {offsets = [2, 0], sizes = [34, 64], strides = [1, 1]} : vector<36x64xf32> to vector<34x64xf32>
    %69 = arith.truncf %68 : vector<34x64xf32> to vector<34x64xbf16>
    %c8 = arith.constant 8 : index
    %c0_42 = arith.constant 0 : index
    %c0_43 = arith.constant 0 : index
    %70 = vector.load %arg4[%c8, %c0_42, %c0_43] : memref<12x64x64xbf16, #tpu.memory_space<vmem>>, vector<1x64x64xbf16>
    %71 = vector.shape_cast %70 : vector<1x64x64xbf16> to vector<64x64xbf16>
    %cst_44 = arith.constant dense<0.000000e+00> : vector<34x64xf32>
    %72 = tpu.matmul %69, %71, %cst_44 {dimension_numbers = #tpu.dot_dimension_numbers<[1], [0], [0], [1], [0, 0, 1, 1], [], []>} : vector<34x64xbf16>, vector<64x64xbf16>, vector<34x64xf32> -> vector<34x64xf32>
    %73 = arith.addf %67, %72 : vector<34x64xf32>
    %c2_45 = arith.constant 2 : index
    %c0_46 = arith.constant 0 : index
    %c0_47 = arith.constant 0 : index
    %74 = vector.load %arg5[%c2_45, %c0_46, %c0_47] : memref<4x1x64xf32, #tpu.memory_space<vmem>>, vector<1x1x64xf32>
    %75 = vector.shape_cast %74 : vector<1x1x64xf32> to vector<1x64xf32>
    %76 = vector.broadcast %75 : vector<1x64xf32> to vector<34x64xf32>
    %77 = arith.addf %73, %76 : vector<34x64xf32>
    %cst_48 = arith.constant 0.000000e+00 : f32
    %78 = vector.broadcast %cst_48 : f32 to vector<34x64xf32>
    %79 = arith.maximumf %77, %78 : vector<34x64xf32>
    %c0_49 = arith.constant 0 : index
    %c0_50 = arith.constant 0 : index
    %80 = vector.load %arg2[%c0_49, %c0_50] : memref<36x34xf32, #tpu.memory_space<vmem>>, vector<36x34xf32>
    %cst_51 = arith.constant dense<0.000000e+00> : vector<36x64xf32>
    %81 = tpu.matmul %80, %79, %cst_51 {dimension_numbers = #tpu.dot_dimension_numbers<[1], [0], [0], [1], [0, 0, 1, 1], [], []>} : vector<36x34xf32>, vector<34x64xf32>, vector<36x64xf32> -> vector<36x64xf32>
    %cst_52 = arith.constant 0.000000e+00 : f32
    %82 = vector.broadcast %cst_52 : f32 to vector<34x64xf32>
    %83 = vector.extract_strided_slice %81 {offsets = [0, 0], sizes = [34, 64], strides = [1, 1]} : vector<36x64xf32> to vector<34x64xf32>
    %84 = arith.truncf %83 : vector<34x64xf32> to vector<34x64xbf16>
    %c9 = arith.constant 9 : index
    %c0_53 = arith.constant 0 : index
    %c0_54 = arith.constant 0 : index
    %85 = vector.load %arg4[%c9, %c0_53, %c0_54] : memref<12x64x64xbf16, #tpu.memory_space<vmem>>, vector<1x64x64xbf16>
    %86 = vector.shape_cast %85 : vector<1x64x64xbf16> to vector<64x64xbf16>
    %cst_55 = arith.constant dense<0.000000e+00> : vector<34x64xf32>
    %87 = tpu.matmul %84, %86, %cst_55 {dimension_numbers = #tpu.dot_dimension_numbers<[1], [0], [0], [1], [0, 0, 1, 1], [], []>} : vector<34x64xbf16>, vector<64x64xbf16>, vector<34x64xf32> -> vector<34x64xf32>
    %88 = arith.addf %82, %87 : vector<34x64xf32>
    %89 = vector.extract_strided_slice %81 {offsets = [1, 0], sizes = [34, 64], strides = [1, 1]} : vector<36x64xf32> to vector<34x64xf32>
    %90 = arith.truncf %89 : vector<34x64xf32> to vector<34x64xbf16>
    %c10 = arith.constant 10 : index
    %c0_56 = arith.constant 0 : index
    %c0_57 = arith.constant 0 : index
    %91 = vector.load %arg4[%c10, %c0_56, %c0_57] : memref<12x64x64xbf16, #tpu.memory_space<vmem>>, vector<1x64x64xbf16>
    %92 = vector.shape_cast %91 : vector<1x64x64xbf16> to vector<64x64xbf16>
    %cst_58 = arith.constant dense<0.000000e+00> : vector<34x64xf32>
    %93 = tpu.matmul %90, %92, %cst_58 {dimension_numbers = #tpu.dot_dimension_numbers<[1], [0], [0], [1], [0, 0, 1, 1], [], []>} : vector<34x64xbf16>, vector<64x64xbf16>, vector<34x64xf32> -> vector<34x64xf32>
    %94 = arith.addf %88, %93 : vector<34x64xf32>
    %95 = vector.extract_strided_slice %81 {offsets = [2, 0], sizes = [34, 64], strides = [1, 1]} : vector<36x64xf32> to vector<34x64xf32>
    %96 = arith.truncf %95 : vector<34x64xf32> to vector<34x64xbf16>
    %c11 = arith.constant 11 : index
    %c0_59 = arith.constant 0 : index
    %c0_60 = arith.constant 0 : index
    %97 = vector.load %arg4[%c11, %c0_59, %c0_60] : memref<12x64x64xbf16, #tpu.memory_space<vmem>>, vector<1x64x64xbf16>
    %98 = vector.shape_cast %97 : vector<1x64x64xbf16> to vector<64x64xbf16>
    %cst_61 = arith.constant dense<0.000000e+00> : vector<34x64xf32>
    %99 = tpu.matmul %96, %98, %cst_61 {dimension_numbers = #tpu.dot_dimension_numbers<[1], [0], [0], [1], [0, 0, 1, 1], [], []>} : vector<34x64xbf16>, vector<64x64xbf16>, vector<34x64xf32> -> vector<34x64xf32>
    %100 = arith.addf %94, %99 : vector<34x64xf32>
    %c3_62 = arith.constant 3 : index
    %c0_63 = arith.constant 0 : index
    %c0_64 = arith.constant 0 : index
    %101 = vector.load %arg5[%c3_62, %c0_63, %c0_64] : memref<4x1x64xf32, #tpu.memory_space<vmem>>, vector<1x1x64xf32>
    %102 = vector.shape_cast %101 : vector<1x1x64xf32> to vector<1x64xf32>
    %103 = vector.broadcast %102 : vector<1x64xf32> to vector<34x64xf32>
    %104 = arith.addf %100, %103 : vector<34x64xf32>
    %cst_65 = arith.constant 0.000000e+00 : f32
    %105 = vector.broadcast %cst_65 : f32 to vector<34x64xf32>
    %106 = arith.maximumf %104, %105 : vector<34x64xf32>
    %c0_66 = arith.constant 0 : index
    %c0_67 = arith.constant 0 : index
    %107 = vector.load %arg3[%c0_66, %c0_67] : memref<32x34xf32, #tpu.memory_space<vmem>>, vector<32x34xf32>
    %cst_68 = arith.constant dense<0.000000e+00> : vector<32x64xf32>
    %108 = tpu.matmul %107, %106, %cst_68 {dimension_numbers = #tpu.dot_dimension_numbers<[1], [0], [0], [1], [0, 0, 1, 1], [], []>} : vector<32x34xf32>, vector<34x64xf32>, vector<32x64xf32> -> vector<32x64xf32>
    %cst_69 = arith.constant 0.000000e+00 : f32
    %109 = vector.broadcast %cst_69 : f32 to vector<2x8xf32>
    %110 = vector.extract_strided_slice %108 {offsets = [0, 0], sizes = [2, 64], strides = [1, 1]} : vector<32x64xf32> to vector<2x64xf32>
    %111 = arith.truncf %110 : vector<2x64xf32> to vector<2x64xbf16>
    %c0_70 = arith.constant 0 : index
    %c0_71 = arith.constant 0 : index
    %c0_72 = arith.constant 0 : index
    %112 = vector.load %arg6[%c0_70, %c0_71, %c0_72] : memref<16x64x8xbf16, #tpu.memory_space<vmem>>, vector<1x64x8xbf16>
    %113 = vector.shape_cast %112 : vector<1x64x8xbf16> to vector<64x8xbf16>
    %cst_73 = arith.constant dense<0.000000e+00> : vector<2x8xf32>
    %114 = tpu.matmul %111, %113, %cst_73 {dimension_numbers = #tpu.dot_dimension_numbers<[1], [0], [0], [1], [0, 0, 1, 1], [], []>} : vector<2x64xbf16>, vector<64x8xbf16>, vector<2x8xf32> -> vector<2x8xf32>
    %115 = arith.addf %109, %114 : vector<2x8xf32>
    %116 = vector.extract_strided_slice %108 {offsets = [2, 0], sizes = [2, 64], strides = [1, 1]} : vector<32x64xf32> to vector<2x64xf32>
    %117 = arith.truncf %116 : vector<2x64xf32> to vector<2x64xbf16>
    %c1_74 = arith.constant 1 : index
    %c0_75 = arith.constant 0 : index
    %c0_76 = arith.constant 0 : index
    %118 = vector.load %arg6[%c1_74, %c0_75, %c0_76] : memref<16x64x8xbf16, #tpu.memory_space<vmem>>, vector<1x64x8xbf16>
    %119 = vector.shape_cast %118 : vector<1x64x8xbf16> to vector<64x8xbf16>
    %cst_77 = arith.constant dense<0.000000e+00> : vector<2x8xf32>
    %120 = tpu.matmul %117, %119, %cst_77 {dimension_numbers = #tpu.dot_dimension_numbers<[1], [0], [0], [1], [0, 0, 1, 1], [], []>} : vector<2x64xbf16>, vector<64x8xbf16>, vector<2x8xf32> -> vector<2x8xf32>
    %121 = arith.addf %115, %120 : vector<2x8xf32>
    %122 = vector.extract_strided_slice %108 {offsets = [4, 0], sizes = [2, 64], strides = [1, 1]} : vector<32x64xf32> to vector<2x64xf32>
    %123 = arith.truncf %122 : vector<2x64xf32> to vector<2x64xbf16>
    %c2_78 = arith.constant 2 : index
    %c0_79 = arith.constant 0 : index
    %c0_80 = arith.constant 0 : index
    %124 = vector.load %arg6[%c2_78, %c0_79, %c0_80] : memref<16x64x8xbf16, #tpu.memory_space<vmem>>, vector<1x64x8xbf16>
    %125 = vector.shape_cast %124 : vector<1x64x8xbf16> to vector<64x8xbf16>
    %cst_81 = arith.constant dense<0.000000e+00> : vector<2x8xf32>
    %126 = tpu.matmul %123, %125, %cst_81 {dimension_numbers = #tpu.dot_dimension_numbers<[1], [0], [0], [1], [0, 0, 1, 1], [], []>} : vector<2x64xbf16>, vector<64x8xbf16>, vector<2x8xf32> -> vector<2x8xf32>
    %127 = arith.addf %121, %126 : vector<2x8xf32>
    %128 = vector.extract_strided_slice %108 {offsets = [6, 0], sizes = [2, 64], strides = [1, 1]} : vector<32x64xf32> to vector<2x64xf32>
    %129 = arith.truncf %128 : vector<2x64xf32> to vector<2x64xbf16>
    %c3_82 = arith.constant 3 : index
    %c0_83 = arith.constant 0 : index
    %c0_84 = arith.constant 0 : index
    %130 = vector.load %arg6[%c3_82, %c0_83, %c0_84] : memref<16x64x8xbf16, #tpu.memory_space<vmem>>, vector<1x64x8xbf16>
    %131 = vector.shape_cast %130 : vector<1x64x8xbf16> to vector<64x8xbf16>
    %cst_85 = arith.constant dense<0.000000e+00> : vector<2x8xf32>
    %132 = tpu.matmul %129, %131, %cst_85 {dimension_numbers = #tpu.dot_dimension_numbers<[1], [0], [0], [1], [0, 0, 1, 1], [], []>} : vector<2x64xbf16>, vector<64x8xbf16>, vector<2x8xf32> -> vector<2x8xf32>
    %133 = arith.addf %127, %132 : vector<2x8xf32>
    %134 = vector.extract_strided_slice %108 {offsets = [8, 0], sizes = [2, 64], strides = [1, 1]} : vector<32x64xf32> to vector<2x64xf32>
    %135 = arith.truncf %134 : vector<2x64xf32> to vector<2x64xbf16>
    %c4_86 = arith.constant 4 : index
    %c0_87 = arith.constant 0 : index
    %c0_88 = arith.constant 0 : index
    %136 = vector.load %arg6[%c4_86, %c0_87, %c0_88] : memref<16x64x8xbf16, #tpu.memory_space<vmem>>, vector<1x64x8xbf16>
    %137 = vector.shape_cast %136 : vector<1x64x8xbf16> to vector<64x8xbf16>
    %cst_89 = arith.constant dense<0.000000e+00> : vector<2x8xf32>
    %138 = tpu.matmul %135, %137, %cst_89 {dimension_numbers = #tpu.dot_dimension_numbers<[1], [0], [0], [1], [0, 0, 1, 1], [], []>} : vector<2x64xbf16>, vector<64x8xbf16>, vector<2x8xf32> -> vector<2x8xf32>
    %139 = arith.addf %133, %138 : vector<2x8xf32>
    %140 = vector.extract_strided_slice %108 {offsets = [10, 0], sizes = [2, 64], strides = [1, 1]} : vector<32x64xf32> to vector<2x64xf32>
    %141 = arith.truncf %140 : vector<2x64xf32> to vector<2x64xbf16>
    %c5_90 = arith.constant 5 : index
    %c0_91 = arith.constant 0 : index
    %c0_92 = arith.constant 0 : index
    %142 = vector.load %arg6[%c5_90, %c0_91, %c0_92] : memref<16x64x8xbf16, #tpu.memory_space<vmem>>, vector<1x64x8xbf16>
    %143 = vector.shape_cast %142 : vector<1x64x8xbf16> to vector<64x8xbf16>
    %cst_93 = arith.constant dense<0.000000e+00> : vector<2x8xf32>
    %144 = tpu.matmul %141, %143, %cst_93 {dimension_numbers = #tpu.dot_dimension_numbers<[1], [0], [0], [1], [0, 0, 1, 1], [], []>} : vector<2x64xbf16>, vector<64x8xbf16>, vector<2x8xf32> -> vector<2x8xf32>
    %145 = arith.addf %139, %144 : vector<2x8xf32>
    %146 = vector.extract_strided_slice %108 {offsets = [12, 0], sizes = [2, 64], strides = [1, 1]} : vector<32x64xf32> to vector<2x64xf32>
    %147 = arith.truncf %146 : vector<2x64xf32> to vector<2x64xbf16>
    %c6_94 = arith.constant 6 : index
    %c0_95 = arith.constant 0 : index
    %c0_96 = arith.constant 0 : index
    %148 = vector.load %arg6[%c6_94, %c0_95, %c0_96] : memref<16x64x8xbf16, #tpu.memory_space<vmem>>, vector<1x64x8xbf16>
    %149 = vector.shape_cast %148 : vector<1x64x8xbf16> to vector<64x8xbf16>
    %cst_97 = arith.constant dense<0.000000e+00> : vector<2x8xf32>
    %150 = tpu.matmul %147, %149, %cst_97 {dimension_numbers = #tpu.dot_dimension_numbers<[1], [0], [0], [1], [0, 0, 1, 1], [], []>} : vector<2x64xbf16>, vector<64x8xbf16>, vector<2x8xf32> -> vector<2x8xf32>
    %151 = arith.addf %145, %150 : vector<2x8xf32>
    %152 = vector.extract_strided_slice %108 {offsets = [14, 0], sizes = [2, 64], strides = [1, 1]} : vector<32x64xf32> to vector<2x64xf32>
    %153 = arith.truncf %152 : vector<2x64xf32> to vector<2x64xbf16>
    %c7_98 = arith.constant 7 : index
    %c0_99 = arith.constant 0 : index
    %c0_100 = arith.constant 0 : index
    %154 = vector.load %arg6[%c7_98, %c0_99, %c0_100] : memref<16x64x8xbf16, #tpu.memory_space<vmem>>, vector<1x64x8xbf16>
    %155 = vector.shape_cast %154 : vector<1x64x8xbf16> to vector<64x8xbf16>
    %cst_101 = arith.constant dense<0.000000e+00> : vector<2x8xf32>
    %156 = tpu.matmul %153, %155, %cst_101 {dimension_numbers = #tpu.dot_dimension_numbers<[1], [0], [0], [1], [0, 0, 1, 1], [], []>} : vector<2x64xbf16>, vector<64x8xbf16>, vector<2x8xf32> -> vector<2x8xf32>
    %157 = arith.addf %151, %156 : vector<2x8xf32>
    %158 = vector.extract_strided_slice %108 {offsets = [16, 0], sizes = [2, 64], strides = [1, 1]} : vector<32x64xf32> to vector<2x64xf32>
    %159 = arith.truncf %158 : vector<2x64xf32> to vector<2x64xbf16>
    %c8_102 = arith.constant 8 : index
    %c0_103 = arith.constant 0 : index
    %c0_104 = arith.constant 0 : index
    %160 = vector.load %arg6[%c8_102, %c0_103, %c0_104] : memref<16x64x8xbf16, #tpu.memory_space<vmem>>, vector<1x64x8xbf16>
    %161 = vector.shape_cast %160 : vector<1x64x8xbf16> to vector<64x8xbf16>
    %cst_105 = arith.constant dense<0.000000e+00> : vector<2x8xf32>
    %162 = tpu.matmul %159, %161, %cst_105 {dimension_numbers = #tpu.dot_dimension_numbers<[1], [0], [0], [1], [0, 0, 1, 1], [], []>} : vector<2x64xbf16>, vector<64x8xbf16>, vector<2x8xf32> -> vector<2x8xf32>
    %163 = arith.addf %157, %162 : vector<2x8xf32>
    %164 = vector.extract_strided_slice %108 {offsets = [18, 0], sizes = [2, 64], strides = [1, 1]} : vector<32x64xf32> to vector<2x64xf32>
    %165 = arith.truncf %164 : vector<2x64xf32> to vector<2x64xbf16>
    %c9_106 = arith.constant 9 : index
    %c0_107 = arith.constant 0 : index
    %c0_108 = arith.constant 0 : index
    %166 = vector.load %arg6[%c9_106, %c0_107, %c0_108] : memref<16x64x8xbf16, #tpu.memory_space<vmem>>, vector<1x64x8xbf16>
    %167 = vector.shape_cast %166 : vector<1x64x8xbf16> to vector<64x8xbf16>
    %cst_109 = arith.constant dense<0.000000e+00> : vector<2x8xf32>
    %168 = tpu.matmul %165, %167, %cst_109 {dimension_numbers = #tpu.dot_dimension_numbers<[1], [0], [0], [1], [0, 0, 1, 1], [], []>} : vector<2x64xbf16>, vector<64x8xbf16>, vector<2x8xf32> -> vector<2x8xf32>
    %169 = arith.addf %163, %168 : vector<2x8xf32>
    %170 = vector.extract_strided_slice %108 {offsets = [20, 0], sizes = [2, 64], strides = [1, 1]} : vector<32x64xf32> to vector<2x64xf32>
    %171 = arith.truncf %170 : vector<2x64xf32> to vector<2x64xbf16>
    %c10_110 = arith.constant 10 : index
    %c0_111 = arith.constant 0 : index
    %c0_112 = arith.constant 0 : index
    %172 = vector.load %arg6[%c10_110, %c0_111, %c0_112] : memref<16x64x8xbf16, #tpu.memory_space<vmem>>, vector<1x64x8xbf16>
    %173 = vector.shape_cast %172 : vector<1x64x8xbf16> to vector<64x8xbf16>
    %cst_113 = arith.constant dense<0.000000e+00> : vector<2x8xf32>
    %174 = tpu.matmul %171, %173, %cst_113 {dimension_numbers = #tpu.dot_dimension_numbers<[1], [0], [0], [1], [0, 0, 1, 1], [], []>} : vector<2x64xbf16>, vector<64x8xbf16>, vector<2x8xf32> -> vector<2x8xf32>
    %175 = arith.addf %169, %174 : vector<2x8xf32>
    %176 = vector.extract_strided_slice %108 {offsets = [22, 0], sizes = [2, 64], strides = [1, 1]} : vector<32x64xf32> to vector<2x64xf32>
    %177 = arith.truncf %176 : vector<2x64xf32> to vector<2x64xbf16>
    %c11_114 = arith.constant 11 : index
    %c0_115 = arith.constant 0 : index
    %c0_116 = arith.constant 0 : index
    %178 = vector.load %arg6[%c11_114, %c0_115, %c0_116] : memref<16x64x8xbf16, #tpu.memory_space<vmem>>, vector<1x64x8xbf16>
    %179 = vector.shape_cast %178 : vector<1x64x8xbf16> to vector<64x8xbf16>
    %cst_117 = arith.constant dense<0.000000e+00> : vector<2x8xf32>
    %180 = tpu.matmul %177, %179, %cst_117 {dimension_numbers = #tpu.dot_dimension_numbers<[1], [0], [0], [1], [0, 0, 1, 1], [], []>} : vector<2x64xbf16>, vector<64x8xbf16>, vector<2x8xf32> -> vector<2x8xf32>
    %181 = arith.addf %175, %180 : vector<2x8xf32>
    %182 = vector.extract_strided_slice %108 {offsets = [24, 0], sizes = [2, 64], strides = [1, 1]} : vector<32x64xf32> to vector<2x64xf32>
    %183 = arith.truncf %182 : vector<2x64xf32> to vector<2x64xbf16>
    %c12 = arith.constant 12 : index
    %c0_118 = arith.constant 0 : index
    %c0_119 = arith.constant 0 : index
    %184 = vector.load %arg6[%c12, %c0_118, %c0_119] : memref<16x64x8xbf16, #tpu.memory_space<vmem>>, vector<1x64x8xbf16>
    %185 = vector.shape_cast %184 : vector<1x64x8xbf16> to vector<64x8xbf16>
    %cst_120 = arith.constant dense<0.000000e+00> : vector<2x8xf32>
    %186 = tpu.matmul %183, %185, %cst_120 {dimension_numbers = #tpu.dot_dimension_numbers<[1], [0], [0], [1], [0, 0, 1, 1], [], []>} : vector<2x64xbf16>, vector<64x8xbf16>, vector<2x8xf32> -> vector<2x8xf32>
    %187 = arith.addf %181, %186 : vector<2x8xf32>
    %188 = vector.extract_strided_slice %108 {offsets = [26, 0], sizes = [2, 64], strides = [1, 1]} : vector<32x64xf32> to vector<2x64xf32>
    %189 = arith.truncf %188 : vector<2x64xf32> to vector<2x64xbf16>
    %c13 = arith.constant 13 : index
    %c0_121 = arith.constant 0 : index
    %c0_122 = arith.constant 0 : index
    %190 = vector.load %arg6[%c13, %c0_121, %c0_122] : memref<16x64x8xbf16, #tpu.memory_space<vmem>>, vector<1x64x8xbf16>
    %191 = vector.shape_cast %190 : vector<1x64x8xbf16> to vector<64x8xbf16>
    %cst_123 = arith.constant dense<0.000000e+00> : vector<2x8xf32>
    %192 = tpu.matmul %189, %191, %cst_123 {dimension_numbers = #tpu.dot_dimension_numbers<[1], [0], [0], [1], [0, 0, 1, 1], [], []>} : vector<2x64xbf16>, vector<64x8xbf16>, vector<2x8xf32> -> vector<2x8xf32>
    %193 = arith.addf %187, %192 : vector<2x8xf32>
    %194 = vector.extract_strided_slice %108 {offsets = [28, 0], sizes = [2, 64], strides = [1, 1]} : vector<32x64xf32> to vector<2x64xf32>
    %195 = arith.truncf %194 : vector<2x64xf32> to vector<2x64xbf16>
    %c14 = arith.constant 14 : index
    %c0_124 = arith.constant 0 : index
    %c0_125 = arith.constant 0 : index
    %196 = vector.load %arg6[%c14, %c0_124, %c0_125] : memref<16x64x8xbf16, #tpu.memory_space<vmem>>, vector<1x64x8xbf16>
    %197 = vector.shape_cast %196 : vector<1x64x8xbf16> to vector<64x8xbf16>
    %cst_126 = arith.constant dense<0.000000e+00> : vector<2x8xf32>
    %198 = tpu.matmul %195, %197, %cst_126 {dimension_numbers = #tpu.dot_dimension_numbers<[1], [0], [0], [1], [0, 0, 1, 1], [], []>} : vector<2x64xbf16>, vector<64x8xbf16>, vector<2x8xf32> -> vector<2x8xf32>
    %199 = arith.addf %193, %198 : vector<2x8xf32>
    %200 = vector.extract_strided_slice %108 {offsets = [30, 0], sizes = [2, 64], strides = [1, 1]} : vector<32x64xf32> to vector<2x64xf32>
    %201 = arith.truncf %200 : vector<2x64xf32> to vector<2x64xbf16>
    %c15 = arith.constant 15 : index
    %c0_127 = arith.constant 0 : index
    %c0_128 = arith.constant 0 : index
    %202 = vector.load %arg6[%c15, %c0_127, %c0_128] : memref<16x64x8xbf16, #tpu.memory_space<vmem>>, vector<1x64x8xbf16>
    %203 = vector.shape_cast %202 : vector<1x64x8xbf16> to vector<64x8xbf16>
    %cst_129 = arith.constant dense<0.000000e+00> : vector<2x8xf32>
    %204 = tpu.matmul %201, %203, %cst_129 {dimension_numbers = #tpu.dot_dimension_numbers<[1], [0], [0], [1], [0, 0, 1, 1], [], []>} : vector<2x64xbf16>, vector<64x8xbf16>, vector<2x8xf32> -> vector<2x8xf32>
    %205 = arith.addf %199, %204 : vector<2x8xf32>
    %c0_130 = arith.constant 0 : index
    %c0_131 = arith.constant 0 : index
    %206 = vector.load %arg7[%c0_130, %c0_131] : memref<1x8xf32, #tpu.memory_space<vmem>>, vector<1x8xf32>
    %207 = vector.broadcast %206 : vector<1x8xf32> to vector<2x8xf32>
    %208 = arith.addf %205, %207 : vector<2x8xf32>
    %c0_132 = arith.constant 0 : index
    %c0_133 = arith.constant 0 : index
    %209 = vector.load %arg8[%c0_132, %c0_133] : memref<2x8xf32, #tpu.memory_space<vmem>>, vector<2x8xf32>
    tpu.vector_store %arg8[%c0_132, %c0_133], %208 {strides = array<i32>} : memref<2x8xf32, #tpu.memory_space<vmem>>, vector<2x8xf32>,
    return
  }
  func.func @transform_0(%arg0: i32) -> (i32, i32) {
    %c0_i32 = arith.constant 0 : i32
    %c0_i32_0 = arith.constant 0 : i32
    return %arg0, %c0_i32 : i32, i32
  }
  func.func @transform_1(%arg0: i32) -> (i32, i32) {
    %c0_i32 = arith.constant 0 : i32
    %c0_i32_0 = arith.constant 0 : i32
    %c0_i32_1 = arith.constant 0 : i32
    return %c0_i32, %c0_i32_0 : i32, i32
  }
  func.func @transform_2(%arg0: i32) -> (i32, i32) {
    %c0_i32 = arith.constant 0 : i32
    %c0_i32_0 = arith.constant 0 : i32
    %c0_i32_1 = arith.constant 0 : i32
    return %c0_i32, %c0_i32_0 : i32, i32
  }
  func.func @transform_3(%arg0: i32) -> (i32, i32, i32) {
    %c0_i32 = arith.constant 0 : i32
    %c0_i32_0 = arith.constant 0 : i32
    %c0_i32_1 = arith.constant 0 : i32
    %c0_i32_2 = arith.constant 0 : i32
    return %c0_i32, %c0_i32_0, %c0_i32_1 : i32, i32, i32
  }
  func.func @transform_4(%arg0: i32) -> (i32, i32, i32) {
    %c0_i32 = arith.constant 0 : i32
    %c0_i32_0 = arith.constant 0 : i32
    %c0_i32_1 = arith.constant 0 : i32
    %c0_i32_2 = arith.constant 0 : i32
    return %c0_i32, %c0_i32_0, %c0_i32_1 : i32, i32, i32
  }
  func.func @transform_5(%arg0: i32) -> (i32, i32, i32) {
    %c0_i32 = arith.constant 0 : i32
    %c0_i32_0 = arith.constant 0 : i32
    %c0_i32_1 = arith.constant 0 : i32
    %c0_i32_2 = arith.constant 0 : i32
    return %c0_i32, %c0_i32_0, %c0_i32_1 : i32, i32, i32
  }
  func.func @transform_6(%arg0: i32) -> (i32, i32) {
    %c0_i32 = arith.constant 0 : i32
    %c0_i32_0 = arith.constant 0 : i32
    %c0_i32_1 = arith.constant 0 : i32
    return %c0_i32, %c0_i32_0 : i32, i32
  }
  func.func @transform_7(%arg0: i32) -> (i32, i32) {
    %c0_i32 = arith.constant 0 : i32
    %c0_i32_0 = arith.constant 0 : i32
    return %arg0, %c0_i32 : i32, i32
  }
}

</mosaic_0001>

<llo_original>
// kernel: timesnet_forward.1
$region0: #{timesnet_forward.1}
  #allocation0 [shape = 'u32[]', space=smem, size = 0x4, offset = 0x4, fixed_abs, tag = 'smem constant byte address 0x4 - core index']
  #allocation1 [shape = 'u32[144,128]{1,0:T(1,128)}', space=vmem, size = 0x12000, scoped, tag = 'internal scratch']
  %s0 = inlined_call_operand.vmem [shape: f32[36,64], index: 0, kind: input, shape index: {}]
  %s1 = inlined_call_operand.vmem [shape: f32[36,34], index: 1, kind: input, shape index: {}]
  %s2 = inlined_call_operand.vmem [shape: f32[32,34], index: 2, kind: input, shape index: {}]
  %s3 = inlined_call_operand.vmem [shape: bf16[12,64,64], index: 3, kind: input, shape index: {}]
  %s4 = inlined_call_operand.vmem [shape: f32[4,1,64], index: 4, kind: input, shape index: {}]
  %s5 = inlined_call_operand.vmem [shape: bf16[16,64,8], index: 5, kind: input, shape index: {}]
  %s6 = inlined_call_operand.vmem [shape: f32[1,8], index: 6, kind: input, shape index: {}]
  %s7 = inlined_call_operand.hbm [shape: f32[2,8], index: 7, kind: output, shape index: {}]
  %s8 = sld [smem:[#allocation0]]
  $region38: #{timesnet_forward.1} parent=0
    _
  %s10 = ssub.s32 1, %s8
  %s11 = scalar_select 0, %s10, %s8
  $region1: #{timesnet_forward.1} parent=0
    #allocation2 [shape = 'u8[1024]{0}', space=vmem, size = 0x400, scoped, tag = 'output window, operand 0, single buffered']
    #allocation3 [shape = 's32[1]{0}', space=sflag, size = 0x4, scoped, tag = 'scoped memory for timesnet_forward.1']
    %12 = vsyncpa [#allocation3], 0
    // Predicated region
    $region2: #{timesnet_forward.1} parent=1 // pred_check
      _
    $region3: #{timesnet_forward.1} parent=1 // pred_check_branch
      %14 = sbr.rel (0) target = $region5
    $region4: #{timesnet_forward.1} parent=1 // pred_region
      _
    $region5: #{timesnet_forward.1} parent=1 // pred_fallthru
      _
    // Predicated region
    $region6: #{timesnet_forward.1} parent=1 // pred_check
      _
    $region7: #{timesnet_forward.1} parent=1 // pred_check_branch
      %16 = sbr.rel (0) target = $region9
    $region8: #{timesnet_forward.1} parent=1 // pred_region
      _
    $region9: #{timesnet_forward.1} parent=1 // pred_fallthru
      _
    // Predicated region
    $region10: #{timesnet_forward.1} parent=1 // pred_check
      _
    $region11: #{timesnet_forward.1} parent=1 // pred_check_branch
      %18 = sbr.rel (0) target = $region13
    $region12: #{timesnet_forward.1} parent=1 // pred_region
      _
    $region13: #{timesnet_forward.1} parent=1 // pred_fallthru
      _
    // Predicated region
    $region14: #{timesnet_forward.1} parent=1 // pred_check
      _
    $region15: #{timesnet_forward.1} parent=1 // pred_check_branch
      %20 = sbr.rel (0) target = $region17
    $region16: #{timesnet_forward.1} parent=1 // pred_region
      _
    $region17: #{timesnet_forward.1} parent=1 // pred_fallthru
      _
    // Predicated region
    $region18: #{timesnet_forward.1} parent=1 // pred_check
      _
    $region19: #{timesnet_forward.1} parent=1 // pred_check_branch
      %22 = sbr.rel (0) target = $region21
    $region20: #{timesnet_forward.1} parent=1 // pred_region
      _
    $region21: #{timesnet_forward.1} parent=1 // pred_fallthru
      _
    // Predicated region
    $region22: #{timesnet_forward.1} parent=1 // pred_check
      _
    $region23: #{timesnet_forward.1} parent=1 // pred_check_branch
      %24 = sbr.rel (0) target = $region25
    $region24: #{timesnet_forward.1} parent=1 // pred_region
      _
    $region25: #{timesnet_forward.1} parent=1 // pred_fallthru
      _
    // Predicated region
    $region26: #{timesnet_forward.1} parent=1 // pred_check
      _
    $region27: #{timesnet_forward.1} parent=1 // pred_check_branch
      %26 = sbr.rel (0) target = $region29
    $region28: #{timesnet_forward.1} parent=1 // pred_region
      _
    $region29: #{timesnet_forward.1} parent=1 // pred_fallthru
      _
    %v28 = vld [vmem:[%s0] sm:$0xff]
    %v29 = vld [vmem:[%s0 + $0x8] sm:$0xff]
    %v30 = vld [vmem:[%s0 + $0x10] sm:$0xff]
    %v31 = vld [vmem:[%s0 + $0x18] sm:$0xff]
    %v32 = vld [vmem:[%s0 + $0x20] sm:$0xf]
    %v33 = vpack.c.bf16 %v29, %v28
    %v34 = vpack.c.bf16 %v31, %v30
    %v35 = vpack.c.bf16 %v32, %v32
    %v36 = vld [vmem:[%s3] sm:$0xf]
    %v37 = vld [vmem:[%s3 + $0x4] sm:$0xf]
    %v38 = vld [vmem:[%s3 + $0x8] sm:$0xf]
    %v39 = vld [vmem:[%s3 + $0xc] sm:$0xf]
    %v40 = vld [vmem:[%s3 + $0x10] sm:$0xf]
    %v41 = vld [vmem:[%s3 + $0x14] sm:$0xf]
    %v42 = vld [vmem:[%s3 + $0x18] sm:$0xf]
    %v43 = vld [vmem:[%s3 + $0x1c] sm:$0xf]
    %s44 = scalar_lea.vmem %s3, 32
    %v45 = vld [vmem:[%s44] sm:$0xf]
    %v46 = vld [vmem:[%s44 + $0x4] sm:$0xf]
    %v47 = vld [vmem:[%s44 + $0x8] sm:$0xf]
    %v48 = vld [vmem:[%s44 + $0xc] sm:$0xf]
    %v49 = vld [vmem:[%s44 + $0x10] sm:$0xf]
    %v50 = vld [vmem:[%s44 + $0x14] sm:$0xf]
    %v51 = vld [vmem:[%s44 + $0x18] sm:$0xf]
    %v52 = vld [vmem:[%s44 + $0x1c] sm:$0xf]
    %vm53 = vsmask.f32 7424
    %v55 = vshrl.u32 %v33, 16
    %v57 = vshll.u32 %v33, 16
    %v59 = vrot.slane %v57, 1
    %v60 = vor.u32 %v55, %v59
    %v62 = vshll.u32 %v34, 16
    %v64 = vrot.slane %v62, 1
    %v65 = vsel %vm53, %v60, %v64
    %v66 = vshrl.u32 %v34, 16
    %v68 = vor.u32 %v66, %v64
    %v70 = vshll.u32 %v35, 16
    %v72 = vrot.slane %v70, 1
    %v73 = vsel %vm53, %v68, %v72
    %v74 = vshrl.u32 %v35, 16
    %v76 = vor.u32 %v74, %v72
    %v85 = vunpack.c.l.b16 %v45
    %v86 = vunpack.c.l.b16 %v46
    %v87 = vunpack.c.l.b16 %v47
    %v88 = vunpack.c.l.b16 %v48
    %v89 = vunpack.c.l.b16 %v49
    %v90 = vunpack.c.l.b16 %v50
    %v91 = vunpack.c.l.b16 %v51
    %v92 = vunpack.c.l.b16 %v52
    %v93 = vpack.c.b16 %v86, %v85
    %v94 = vpack.c.b16 %v88, %v87
    %v95 = vpack.c.b16 %v90, %v89
    %v96 = vpack.c.b16 %v92, %v91
    %vm101 = vcmask 523264
    %v103 = vsel %vm101, %v65, 0
    %v106 = vsel %vm101, %v73, 0
    %v109 = vsel %vm101, %v76, 0
    %111 = vmatprep.subr.bf16.mxu0 0
    %112 = vmatpush1.bf16.msra.mxu0 0
    %113 = vmatprep.subr.bf16.mxu0 0
    %114 = vmatpush1.bf16.msra.mxu0 0
    %115 = vmatprep.subr.bf16.mxu0 0
    %116 = vmatpush1.bf16.msra.mxu0 0
    %117 = vmatprep.subr.bf16.mxu0 0
    %118 = vmatpush1.bf16.msra.mxu0 0
    %119 = vmatprep.subr.bf16.mxu0 0
    %120 = vmatpush1.bf16.msra.mxu0 %v96
    %121 = vmatprep.subr.bf16.mxu0 0
    %122 = vmatpush1.bf16.msra.mxu0 %v95
    %123 = vmatprep.subr.bf16.mxu0 0
    %124 = vmatpush1.bf16.msra.mxu0 %v94
    %125 = vmatprep.subr.bf16.mxu0 0
    %126 = vmatpush1.bf16.msra.mxu0 %v93
    %127 = vmatprep.subr.bf16.mxu0 0
    %128 = vmatpush2.bf16.msra.mxu0 0
    %129 = vmatprep.subr.bf16.mxu0 0
    %130 = vmatpush2.bf16.msra.mxu0 0
    %131 = vmatprep.subr.bf16.mxu0 0
    %132 = vmatpush2.bf16.msra.mxu0 0
    %133 = vmatprep.subr.bf16.mxu0 0
    %134 = vmatpush2.bf16.msra.mxu0 0
    %135 = vmatprep.subr.bf16.mxu0 0
    %136 = vmatpush2.bf16.msra.mxu0 0
    %137 = vmatprep.subr.bf16.mxu0 0
    %138 = vmatpush2.bf16.msra.mxu0 0
    %139 = vmatprep.subr.bf16.mxu0 0
    %140 = vmatpush2.bf16.msra.mxu0 0
    %141 = vmatprep.subr.bf16.mxu0 0
    %142 = vmatpush2.bf16.msra.mxu0 0
    %143 = vmatprep.mubr.bf16.mxu0 0
    %144 = vmatmul.mubr.bf16.gmra.mxu0 %v103
    %v145 = vpop.f32.mrf.mxu0
    %v146 = vadd.f32 0.0, %v145
    %v147 = vpop.f32.mrf.mxu0
    %v148 = vpop.f32.mrf.mxu0
    %v149 = vadd.f32 0.0, %v148
    %v150 = vpop.f32.mrf.mxu0
    %151 = vmatprep.mubr.bf16.mxu0 0
    %152 = vmatmul.mubr.bf16.gmra.mxu0 %v106
    %v153 = vpop.f32.mrf.mxu0
    %v154 = vadd.f32 0.0, %v153
    %v155 = vpop.f32.mrf.mxu0
    %v156 = vpop.f32.mrf.mxu0
    %v157 = vadd.f32 0.0, %v156
    %v158 = vpop.f32.mrf.mxu0
    %159 = vmatprep.mubr.bf16.mxu0 0
    %160 = vmatmul.mubr.bf16.gmra.mxu0 %v109
    %v161 = vpop.f32.mrf.mxu0
    %v162 = vadd.f32 0.0, %v161
    %v163 = vpop.f32.mrf.mxu0
    %v164 = vpop.f32.mrf.mxu0
    %v165 = vpop.f32.mrf.mxu0
    %166 = vdwg.mxu0
    %v175 = vunpack.c.l.b16 %v36
    %v176 = vunpack.c.l.b16 %v37
    %v177 = vunpack.c.l.b16 %v38
    %v178 = vunpack.c.l.b16 %v39
    %v179 = vunpack.c.l.b16 %v40
    %v180 = vunpack.c.l.b16 %v41
    %v181 = vunpack.c.l.b16 %v42
    %v182 = vunpack.c.l.b16 %v43
    %v183 = vpack.c.b16 %v176, %v175
    %v184 = vpack.c.b16 %v178, %v177
    %v185 = vpack.c.b16 %v180, %v179
    %v186 = vpack.c.b16 %v182, %v181
    %v191 = vsel %vm101, %v33, 0
    %v193 = vsel %vm101, %v34, 0
    %v195 = vsel %vm101, %v35, 0
    %197 = vmatprep.subr.bf16.mxu0 0
    %198 = vmatpush1.bf16.msra.mxu0 0
    %199 = vmatprep.subr.bf16.mxu0 0
    %200 = vmatpush1.bf16.msra.mxu0 0
    %201 = vmatprep.subr.bf16.mxu0 0
    %202 = vmatpush1.bf16.msra.mxu0 0
    %203 = vmatprep.subr.bf16.mxu0 0
    %204 = vmatpush1.bf16.msra.mxu0 0
    %205 = vmatprep.subr.bf16.mxu0 0
    %206 = vmatpush1.bf16.msra.mxu0 %v186
    %207 = vmatprep.subr.bf16.mxu0 0
    %208 = vmatpush1.bf16.msra.mxu0 %v185
    %209 = vmatprep.subr.bf16.mxu0 0
    %210 = vmatpush1.bf16.msra.mxu0 %v184
    %211 = vmatprep.subr.bf16.mxu0 0
    %212 = vmatpush1.bf16.msra.mxu0 %v183
    %213 = vmatprep.subr.bf16.mxu0 0
    %214 = vmatpush2.bf16.msra.mxu0 0
    %215 = vmatprep.subr.bf16.mxu0 0
    %216 = vmatpush2.bf16.msra.mxu0 0
    %217 = vmatprep.subr.bf16.mxu0 0
    %218 = vmatpush2.bf16.msra.mxu0 0
    %219 = vmatprep.subr.bf16.mxu0 0
    %220 = vmatpush2.bf16.msra.mxu0 0
    %221 = vmatprep.subr.bf16.mxu0 0
    %222 = vmatpush2.bf16.msra.mxu0 0
    %223 = vmatprep.subr.bf16.mxu0 0
    %224 = vmatpush2.bf16.msra.mxu0 0
    %225 = vmatprep.subr.bf16.mxu0 0
    %226 = vmatpush2.bf16.msra.mxu0 0
    %227 = vmatprep.subr.bf16.mxu0 0
    %228 = vmatpush2.bf16.msra.mxu0 0
    %229 = vmatprep.mubr.bf16.mxu0 0
    %230 = vmatmul.mubr.bf16.gmra.mxu0 %v191
    %v231 = vpop.f32.mrf.mxu0
    %v232 = vadd.f32 %v146, %v231
    %v233 = vpop.f32.mrf.mxu0
    %v234 = vpop.f32.mrf.mxu0
    %v235 = vadd.f32 %v149, %v234
    %v236 = vpop.f32.mrf.mxu0
    %237 = vmatprep.mubr.bf16.mxu0 0
    %238 = vmatmul.mubr.bf16.gmra.mxu0 %v193
    %v239 = vpop.f32.mrf.mxu0
    %v240 = vadd.f32 %v154, %v239
    %v241 = vpop.f32.mrf.mxu0
    %v242 = vpop.f32.mrf.mxu0
    %v243 = vadd.f32 %v157, %v242
    %v244 = vpop.f32.mrf.mxu0
    %245 = vmatprep.mubr.bf16.mxu0 0
    %246 = vmatmul.mubr.bf16.gmra.mxu0 %v195
    %v247 = vpop.f32.mrf.mxu0
    %v248 = vadd.f32 %v162, %v247
    %v249 = vpop.f32.mrf.mxu0
    %v250 = vpop.f32.mrf.mxu0
    %v251 = vpop.f32.mrf.mxu0
    %252 = vdwg.mxu0
    %s253 = scalar_lea.vmem %s3, 64
    %v254 = vld [vmem:[%s253] sm:$0xf]
    %v255 = vld [vmem:[%s253 + $0x4] sm:$0xf]
    %v256 = vld [vmem:[%s253 + $0x8] sm:$0xf]
    %v257 = vld [vmem:[%s253 + $0xc] sm:$0xf]
    %v258 = vld [vmem:[%s253 + $0x10] sm:$0xf]
    %v259 = vld [vmem:[%s253 + $0x14] sm:$0xf]
    %v260 = vld [vmem:[%s253 + $0x18] sm:$0xf]
    %v261 = vld [vmem:[%s253 + $0x1c] sm:$0xf]
    %vm265 = vcmask 1046528
    %v266 = vrot.slane %v33, 1
    %v267 = vrot.slane %v34, 1
    %v268 = vsel %vm265, %v266, %v267
    %v269 = vrot.slane %v35, 1
    %v270 = vsel %vm265, %v267, %v269
    %v279 = vunpack.c.l.b16 %v254
    %v280 = vunpack.c.l.b16 %v255
    %v281 = vunpack.c.l.b16 %v256
    %v282 = vunpack.c.l.b16 %v257
    %v283 = vunpack.c.l.b16 %v258
    %v284 = vunpack.c.l.b16 %v259
    %v285 = vunpack.c.l.b16 %v260
    %v286 = vunpack.c.l.b16 %v261
    %v287 = vpack.c.b16 %v280, %v279
    %v288 = vpack.c.b16 %v282, %v281
    %v289 = vpack.c.b16 %v284, %v283
    %v290 = vpack.c.b16 %v286, %v285
    %v296 = vsel %vm101, %v268, 0
    %v299 = vsel %vm101, %v270, 0
    %v302 = vsel %vm101, %v269, 0
    %304 = vmatprep.subr.bf16.mxu0 0
    %305 = vmatpush1.bf16.msra.mxu0 0
    %306 = vmatprep.subr.bf16.mxu0 0
    %307 = vmatpush1.bf16.msra.mxu0 0
    %308 = vmatprep.subr.bf16.mxu0 0
    %309 = vmatpush1.bf16.msra.mxu0 0
    %310 = vmatprep.subr.bf16.mxu0 0
    %311 = vmatpush1.bf16.msra.mxu0 0
    %312 = vmatprep.subr.bf16.mxu0 0
    %313 = vmatpush1.bf16.msra.mxu0 %v290
    %314 = vmatprep.subr.bf16.mxu0 0
    %315 = vmatpush1.bf16.msra.mxu0 %v289
    %316 = vmatprep.subr.bf16.mxu0 0
    %317 = vmatpush1.bf16.msra.mxu0 %v288
    %318 = vmatprep.subr.bf16.mxu0 0
    %319 = vmatpush1.bf16.msra.mxu0 %v287
    %320 = vmatprep.subr.bf16.mxu0 0
    %321 = vmatpush2.bf16.msra.mxu0 0
    %322 = vmatprep.subr.bf16.mxu0 0
    %323 = vmatpush2.bf16.msra.mxu0 0
    %324 = vmatprep.subr.bf16.mxu0 0
    %325 = vmatpush2.bf16.msra.mxu0 0
    %326 = vmatprep.subr.bf16.mxu0 0
    %327 = vmatpush2.bf16.msra.mxu0 0
    %328 = vmatprep.subr.bf16.mxu0 0
    %329 = vmatpush2.bf16.msra.mxu0 0
    %330 = vmatprep.subr.bf16.mxu0 0
    %331 = vmatpush2.bf16.msra.mxu0 0
    %332 = vmatprep.subr.bf16.mxu0 0
    %333 = vmatpush2.bf16.msra.mxu0 0
    %334 = vmatprep.subr.bf16.mxu0 0
    %335 = vmatpush2.bf16.msra.mxu0 0
    %336 = vmatprep.mubr.bf16.mxu0 0
    %337 = vmatmul.mubr.bf16.gmra.mxu0 %v296
    %v338 = vpop.f32.mrf.mxu0
    %v339 = vadd.f32 0.0, %v338
    %v340 = vpop.f32.mrf.mxu0
    %v341 = vpop.f32.mrf.mxu0
    %v342 = vadd.f32 0.0, %v341
    %v343 = vpop.f32.mrf.mxu0
    %344 = vmatprep.mubr.bf16.mxu0 0
    %345 = vmatmul.mubr.bf16.gmra.mxu0 %v299
    %v346 = vpop.f32.mrf.mxu0
    %v347 = vadd.f32 0.0, %v346
    %v348 = vpop.f32.mrf.mxu0
    %v349 = vpop.f32.mrf.mxu0
    %v350 = vadd.f32 0.0, %v349
    %v351 = vpop.f32.mrf.mxu0
    %352 = vmatprep.mubr.bf16.mxu0 0
    %353 = vmatmul.mubr.bf16.gmra.mxu0 %v302
    %v354 = vpop.f32.mrf.mxu0
    %v355 = vadd.f32 0.0, %v354
    %v356 = vpop.f32.mrf.mxu0
    %v357 = vpop.f32.mrf.mxu0
    %v358 = vpop.f32.mrf.mxu0
    %359 = vdwg.mxu0
    %v360 = vadd.f32 %v232, %v339
    %v361 = vadd.f32 %v235, %v342
    %v362 = vadd.f32 %v240, %v347
    %v363 = vadd.f32 %v243, %v350
    %v364 = vadd.f32 %v248, %v355
    %v365 = vld [vmem:[%s4] sm:$0x1]
    %v367 = vlaneseq
    %v368 = vshrl.u32 %v367, 7
    %v369 = vsub.s32 0, %v368
    %v370 = vrot.slane %v365, %v369
    %v372 = vadd.f32 %v360, %v370
    %v373 = vadd.f32 %v361, %v370
    %v374 = vadd.f32 %v362, %v370
    %v375 = vadd.f32 %v363, %v370
    %v376 = vadd.f32 %v364, %v370
    %v377 = vmax.f32 %v372, 0.0
    %v378 = vmax.f32 %v373, 0.0
    %v379 = vmax.f32 %v374, 0.0
    %v380 = vmax.f32 %v375, 0.0
    %v381 = vmax.f32 %v376, 0.0
    %v382 = vld [vmem:[%s1] sm:$0xff]
    %v383 = vld [vmem:[%s1 + $0x8] sm:$0xff]
    %v384 = vld [vmem:[%s1 + $0x10] sm:$0xff]
    %v385 = vld [vmem:[%s1 + $0x18] sm:$0xff]
    %v386 = vld [vmem:[%s1 + $0x20] sm:$0xf]
    %vm387 = vcmask 277504
    %v389 = vsel %vm387, %v382, 0
    %v392 = vsel %vm387, %v383, 0
    %v395 = vsel %vm387, %v384, 0
    %v398 = vsel %vm387, %v385, 0
    %v401 = vsel %vm387, %v386, 0
    %vm403 = vcmask 1041408
    %v405 = vsel %vm403, %v381, 0
    %407 = vmatprep.subr.mxu0 0.0
    %408 = vmatpush1.msra.mxu0 0.0
    %409 = vmatprep.subr.mxu0 0.0
    %410 = vmatpush1.msra.mxu0 0.0
    %411 = vmatprep.subr.mxu0 0.0
    %412 = vmatpush1.msra.mxu0 0.0
    %413 = vmatprep.subr.mxu0 0.0
    %414 = vmatpush1.msra.mxu0 0.0
    %415 = vmatprep.subr.mxu0 0.0
    %416 = vmatpush1.msra.mxu0 0.0
    %417 = vmatprep.subr.mxu0 0.0
    %418 = vmatpush1.msra.mxu0 0.0
    %419 = vmatprep.subr.mxu0 0.0
    %420 = vmatpush1.msra.mxu0 0.0
    %421 = vmatprep.subr.mxu0 0.0
    %422 = vmatpush1.msra.mxu0 0.0
    %423 = vmatprep.subr.mxu0 0.0
    %424 = vmatpush1.msra.mxu0 0.0
    %425 = vmatprep.subr.mxu0 0.0
    %426 = vmatpush1.msra.mxu0 0.0
    %427 = vmatprep.subr.mxu0 0.0
    %428 = vmatpush1.msra.mxu0 0.0
    %429 = vmatprep.subr.mxu0 0.0
    %430 = vmatpush1.msra.mxu0 %v405
    %431 = vmatprep.subr.mxu0 0.0
    %432 = vmatpush1.msra.mxu0 %v380
    %433 = vmatprep.subr.mxu0 0.0
    %434 = vmatpush1.msra.mxu0 %v379
    %435 = vmatprep.subr.mxu0 0.0
    %436 = vmatpush1.msra.mxu0 %v378
    %437 = vmatprep.subr.mxu0 0.0
    %438 = vmatpush1.msra.mxu0 %v377
    %439 = vmatprep.subr.mxu0 0.0
    %440 = vmatpush2.msra.mxu0 0.0
    %441 = vmatprep.subr.mxu0 0.0
    %442 = vmatpush2.msra.mxu0 0.0
    %443 = vmatprep.subr.mxu0 0.0
    %444 = vmatpush2.msra.mxu0 0.0
    %445 = vmatprep.subr.mxu0 0.0
    %446 = vmatpush2.msra.mxu0 0.0
    %447 = vmatprep.subr.mxu0 0.0
    %448 = vmatpush2.msra.mxu0 0.0
    %449 = vmatprep.subr.mxu0 0.0
    %450 = vmatpush2.msra.mxu0 0.0
    %451 = vmatprep.subr.mxu0 0.0
    %452 = vmatpush2.msra.mxu0 0.0
    %453 = vmatprep.subr.mxu0 0.0
    %454 = vmatpush2.msra.mxu0 0.0
    %455 = vmatprep.subr.mxu0 0.0
    %456 = vmatpush2.msra.mxu0 0.0
    %457 = vmatprep.subr.mxu0 0.0
    %458 = vmatpush2.msra.mxu0 0.0
    %459 = vmatprep.subr.mxu0 0.0
    %460 = vmatpush2.msra.mxu0 0.0
    %461 = vmatprep.subr.mxu0 0.0
    %462 = vmatpush2.msra.mxu0 0.0
    %463 = vmatprep.subr.mxu0 0.0
    %464 = vmatpush2.msra.mxu0 0.0
    %465 = vmatprep.subr.mxu0 0.0
    %466 = vmatpush2.msra.mxu0 0.0
    %467 = vmatprep.subr.mxu0 0.0
    %468 = vmatpush2.msra.mxu0 0.0
    %469 = vmatprep.subr.mxu0 0.0
    %470 = vmatpush2.msra.mxu0 0.0
    %471 = vmatprep.mubr.f32.mxu0 0.0
    %472 = vmatmul.mubr.f32.gmra.mxu0 %v389
    %v473 = vpop.f32.mrf.mxu0
    %v474 = vadd.f32 0.0, %v473
    %v475 = vpop.f32.mrf.mxu0
    %476 = vmatprep.mubr.f32.mxu0 0.0
    %477 = vmatmul.mubr.f32.gmra.mxu0 %v392
    %v478 = vpop.f32.mrf.mxu0
    %v479 = vadd.f32 0.0, %v478
    %v480 = vpop.f32.mrf.mxu0
    %481 = vmatprep.mubr.f32.mxu0 0.0
    %482 = vmatmul.mubr.f32.gmra.mxu0 %v395
    %v483 = vpop.f32.mrf.mxu0
    %v484 = vadd.f32 0.0, %v483
    %v485 = vpop.f32.mrf.mxu0
    %486 = vmatprep.mubr.f32.mxu0 0.0
    %487 = vmatmul.mubr.f32.gmra.mxu0 %v398
    %v488 = vpop.f32.mrf.mxu0
    %v489 = vadd.f32 0.0, %v488
    %v490 = vpop.f32.mrf.mxu0
    %491 = vmatprep.mubr.f32.mxu0 0.0
    %492 = vmatmul.mubr.f32.gmra.mxu0 %v401
    %v493 = vpop.f32.mrf.mxu0
    %v494 = vadd.f32 0.0, %v493
    %v495 = vpop.f32.mrf.mxu0
    %496 = vdwg.mxu0
    %v497 = vpack.c.bf16 %v479, %v474
    %v498 = vpack.c.bf16 %v489, %v484
    %v499 = vpack.c.bf16 %v494, %v494
    %s500 = scalar_lea.vmem %s3, 96
    %v501 = vld [vmem:[%s500] sm:$0xf]
    %v502 = vld [vmem:[%s500 + $0x4] sm:$0xf]
    %v503 = vld [vmem:[%s500 + $0x8] sm:$0xf]
    %v504 = vld [vmem:[%s500 + $0xc] sm:$0xf]
    %v505 = vld [vmem:[%s500 + $0x10] sm:$0xf]
    %v506 = vld [vmem:[%s500 + $0x14] sm:$0xf]
    %v507 = vld [vmem:[%s500 + $0x18] sm:$0xf]
    %v508 = vld [vmem:[%s500 + $0x1c] sm:$0xf]
    %s509 = scalar_lea.vmem %s3, 128
    %v510 = vld [vmem:[%s509] sm:$0xf]
    %v511 = vld [vmem:[%s509 + $0x4] sm:$0xf]
    %v512 = vld [vmem:[%s509 + $0x8] sm:$0xf]
    %v513 = vld [vmem:[%s509 + $0xc] sm:$0xf]
    %v514 = vld [vmem:[%s509 + $0x10] sm:$0xf]
    %v515 = vld [vmem:[%s509 + $0x14] sm:$0xf]
    %v516 = vld [vmem:[%s509 + $0x18] sm:$0xf]
    %v517 = vld [vmem:[%s509 + $0x1c] sm:$0xf]
    %v519 = vshrl.u32 %v497, 16
    %v521 = vshll.u32 %v497, 16
    %v523 = vrot.slane %v521, 1
    %v524 = vor.u32 %v519, %v523
    %v526 = vshll.u32 %v498, 16
    %v528 = vrot.slane %v526, 1
    %v529 = vsel %vm53, %v524, %v528
    %v530 = vshrl.u32 %v498, 16
    %v532 = vor.u32 %v530, %v528
    %v534 = vshll.u32 %v499, 16
    %v536 = vrot.slane %v534, 1
    %v537 = vsel %vm53, %v532, %v536
    %v538 = vshrl.u32 %v499, 16
    %v540 = vor.u32 %v538, %v536
    %v549 = vunpack.c.l.b16 %v510
    %v550 = vunpack.c.l.b16 %v511
    %v551 = vunpack.c.l.b16 %v512
    %v552 = vunpack.c.l.b16 %v513
    %v553 = vunpack.c.l.b16 %v514
    %v554 = vunpack.c.l.b16 %v515
    %v555 = vunpack.c.l.b16 %v516
    %v556 = vunpack.c.l.b16 %v517
    %v557 = vpack.c.b16 %v550, %v549
    %v558 = vpack.c.b16 %v552, %v551
    %v559 = vpack.c.b16 %v554, %v553
    %v560 = vpack.c.b16 %v556, %v555
    %v566 = vsel %vm101, %v529, 0
    %v569 = vsel %vm101, %v537, 0
    %v572 = vsel %vm101, %v540, 0
    %574 = vmatprep.subr.bf16.mxu0 0
    %575 = vmatpush1.bf16.msra.mxu0 0
    %576 = vmatprep.subr.bf16.mxu0 0
    %577 = vmatpush1.bf16.msra.mxu0 0
    %578 = vmatprep.subr.bf16.mxu0 0
    %579 = vmatpush1.bf16.msra.mxu0 0
    %580 = vmatprep.subr.bf16.mxu0 0
    %581 = vmatpush1.bf16.msra.mxu0 0
    %582 = vmatprep.subr.bf16.mxu0 0
    %583 = vmatpush1.bf16.msra.mxu0 %v560
    %584 = vmatprep.subr.bf16.mxu0 0
    %585 = vmatpush1.bf16.msra.mxu0 %v559
    %586 = vmatprep.subr.bf16.mxu0 0
    %587 = vmatpush1.bf16.msra.mxu0 %v558
    %588 = vmatprep.subr.bf16.mxu0 0
    %589 = vmatpush1.bf16.msra.mxu0 %v557
    %590 = vmatprep.subr.bf16.mxu0 0
    %591 = vmatpush2.bf16.msra.mxu0 0
    %592 = vmatprep.subr.bf16.mxu0 0
    %593 = vmatpush2.bf16.msra.mxu0 0
    %594 = vmatprep.subr.bf16.mxu0 0
    %595 = vmatpush2.bf16.msra.mxu0 0
    %596 = vmatprep.subr.bf16.mxu0 0
    %597 = vmatpush2.bf16.msra.mxu0 0
    %598 = vmatprep.subr.bf16.mxu0 0
    %599 = vmatpush2.bf16.msra.mxu0 0
    %600 = vmatprep.subr.bf16.mxu0 0
    %601 = vmatpush2.bf16.msra.mxu0 0
    %602 = vmatprep.subr.bf16.mxu0 0
    %603 = vmatpush2.bf16.msra.mxu0 0
    %604 = vmatprep.subr.bf16.mxu0 0
    %605 = vmatpush2.bf16.msra.mxu0 0
    %606 = vmatprep.mubr.bf16.mxu0 0
    %607 = vmatmul.mubr.bf16.gmra.mxu0 %v566
    %v608 = vpop.f32.mrf.mxu0
    %v609 = vadd.f32 0.0, %v608
    %v610 = vpop.f32.mrf.mxu0
    %v611 = vpop.f32.mrf.mxu0
    %v612 = vadd.f32 0.0, %v611
    %v613 = vpop.f32.mrf.mxu0
    %614 = vmatprep.mubr.bf16.mxu0 0
    %615 = vmatmul.mubr.bf16.gmra.mxu0 %v569
    %v616 = vpop.f32.mrf.mxu0
    %v617 = vadd.f32 0.0, %v616
    %v618 = vpop.f32.mrf.mxu0
    %v619 = vpop.f32.mrf.mxu0
    %v620 = vadd.f32 0.0, %v619
    %v621 = vpop.f32.mrf.mxu0
    %622 = vmatprep.mubr.bf16.mxu0 0
    %623 = vmatmul.mubr.bf16.gmra.mxu0 %v572
    %v624 = vpop.f32.mrf.mxu0
    %v625 = vadd.f32 0.0, %v624
    %v626 = vpop.f32.mrf.mxu0
    %v627 = vpop.f32.mrf.mxu0
    %v628 = vpop.f32.mrf.mxu0
    %629 = vdwg.mxu0
    %v638 = vunpack.c.l.b16 %v501
    %v639 = vunpack.c.l.b16 %v502
    %v640 = vunpack.c.l.b16 %v503
    %v641 = vunpack.c.l.b16 %v504
    %v642 = vunpack.c.l.b16 %v505
    %v643 = vunpack.c.l.b16 %v506
    %v644 = vunpack.c.l.b16 %v507
    %v645 = vunpack.c.l.b16 %v508
    %v646 = vpack.c.b16 %v639, %v638
    %v647 = vpack.c.b16 %v641, %v640
    %v648 = vpack.c.b16 %v643, %v642
    %v649 = vpack.c.b16 %v645, %v644
    %v654 = vsel %vm101, %v497, 0
    %v656 = vsel %vm101, %v498, 0
    %v658 = vsel %vm101, %v499, 0
    %660 = vmatprep.subr.bf16.mxu0 0
    %661 = vmatpush1.bf16.msra.mxu0 0
    %662 = vmatprep.subr.bf16.mxu0 0
    %663 = vmatpush1.bf16.msra.mxu0 0
    %664 = vmatprep.subr.bf16.mxu0 0
    %665 = vmatpush1.bf16.msra.mxu0 0
    %666 = vmatprep.subr.bf16.mxu0 0
    %667 = vmatpush1.bf16.msra.mxu0 0
    %668 = vmatprep.subr.bf16.mxu0 0
    %669 = vmatpush1.bf16.msra.mxu0 %v649
    %670 = vmatprep.subr.bf16.mxu0 0
    %671 = vmatpush1.bf16.msra.mxu0 %v648
    %672 = vmatprep.subr.bf16.mxu0 0
    %673 = vmatpush1.bf16.msra.mxu0 %v647
    %674 = vmatprep.subr.bf16.mxu0 0
    %675 = vmatpush1.bf16.msra.mxu0 %v646
    %676 = vmatprep.subr.bf16.mxu0 0
    %677 = vmatpush2.bf16.msra.mxu0 0
    %678 = vmatprep.subr.bf16.mxu0 0
    %679 = vmatpush2.bf16.msra.mxu0 0
    %680 = vmatprep.subr.bf16.mxu0 0
    %681 = vmatpush2.bf16.msra.mxu0 0
    %682 = vmatprep.subr.bf16.mxu0 0
    %683 = vmatpush2.bf16.msra.mxu0 0
    %684 = vmatprep.subr.bf16.mxu0 0
    %685 = vmatpush2.bf16.msra.mxu0 0
    %686 = vmatprep.subr.bf16.mxu0 0
    %687 = vmatpush2.bf16.msra.mxu0 0
    %688 = vmatprep.subr.bf16.mxu0 0
    %689 = vmatpush2.bf16.msra.mxu0 0
    %690 = vmatprep.subr.bf16.mxu0 0
    %691 = vmatpush2.bf16.msra.mxu0 0
    %692 = vmatprep.mubr.bf16.mxu0 0
    %693 = vmatmul.mubr.bf16.gmra.mxu0 %v654
    %v694 = vpop.f32.mrf.mxu0
    %v695 = vadd.f32 %v609, %v694
    %v696 = vpop.f32.mrf.mxu0
    %v697 = vpop.f32.mrf.mxu0
    %v698 = vadd.f32 %v612, %v697
    %v699 = vpop.f32.mrf.mxu0
    %700 = vmatprep.mubr.bf16.mxu0 0
    %701 = vmatmul.mubr.bf16.gmra.mxu0 %v656
    %v702 = vpop.f32.mrf.mxu0
    %v703 = vadd.f32 %v617, %v702
    %v704 = vpop.f32.mrf.mxu0
    %v705 = vpop.f32.mrf.mxu0
    %v706 = vadd.f32 %v620, %v705
    %v707 = vpop.f32.mrf.mxu0
    %708 = vmatprep.mubr.bf16.mxu0 0
    %709 = vmatmul.mubr.bf16.gmra.mxu0 %v658
    %v710 = vpop.f32.mrf.mxu0
    %v711 = vadd.f32 %v625, %v710
    %v712 = vpop.f32.mrf.mxu0
    %v713 = vpop.f32.mrf.mxu0
    %v714 = vpop.f32.mrf.mxu0
    %715 = vdwg.mxu0
    %s716 = scalar_lea.vmem %s3, 160
    %v717 = vld [vmem:[%s716] sm:$0xf]
    %v718 = vld [vmem:[%s716 + $0x4] sm:$0xf]
    %v719 = vld [vmem:[%s716 + $0x8] sm:$0xf]
    %v720 = vld [vmem:[%s716 + $0xc] sm:$0xf]
    %v721 = vld [vmem:[%s716 + $0x10] sm:$0xf]
    %v722 = vld [vmem:[%s716 + $0x14] sm:$0xf]
    %v723 = vld [vmem:[%s716 + $0x18] sm:$0xf]
    %v724 = vld [vmem:[%s716 + $0x1c] sm:$0xf]
    %v728 = vrot.slane %v497, 1
    %v729 = vrot.slane %v498, 1
    %v730 = vsel %vm265, %v728, %v729
    %v731 = vrot.slane %v499, 1
    %v732 = vsel %vm265, %v729, %v731
    %v741 = vunpack.c.l.b16 %v717
    %v742 = vunpack.c.l.b16 %v718
    %v743 = vunpack.c.l.b16 %v719
    %v744 = vunpack.c.l.b16 %v720
    %v745 = vunpack.c.l.b16 %v721
    %v746 = vunpack.c.l.b16 %v722
    %v747 = vunpack.c.l.b16 %v723
    %v748 = vunpack.c.l.b16 %v724
    %v749 = vpack.c.b16 %v742, %v741
    %v750 = vpack.c.b16 %v744, %v743
    %v751 = vpack.c.b16 %v746, %v745
    %v752 = vpack.c.b16 %v748, %v747
    %v758 = vsel %vm101, %v730, 0
    %v761 = vsel %vm101, %v732, 0
    %v764 = vsel %vm101, %v731, 0
    %766 = vmatprep.subr.bf16.mxu0 0
    %767 = vmatpush1.bf16.msra.mxu0 0
    %768 = vmatprep.subr.bf16.mxu0 0
    %769 = vmatpush1.bf16.msra.mxu0 0
    %770 = vmatprep.subr.bf16.mxu0 0
    %771 = vmatpush1.bf16.msra.mxu0 0
    %772 = vmatprep.subr.bf16.mxu0 0
    %773 = vmatpush1.bf16.msra.mxu0 0
    %774 = vmatprep.subr.bf16.mxu0 0
    %775 = vmatpush1.bf16.msra.mxu0 %v752
    %776 = vmatprep.subr.bf16.mxu0 0
    %777 = vmatpush1.bf16.msra.mxu0 %v751
    %778 = vmatprep.subr.bf16.mxu0 0
    %779 = vmatpush1.bf16.msra.mxu0 %v750
    %780 = vmatprep.subr.bf16.mxu0 0
    %781 = vmatpush1.bf16.msra.mxu0 %v749
    %782 = vmatprep.subr.bf16.mxu0 0
    %783 = vmatpush2.bf16.msra.mxu0 0
    %784 = vmatprep.subr.bf16.mxu0 0
    %785 = vmatpush2.bf16.msra.mxu0 0
    %786 = vmatprep.subr.bf16.mxu0 0
    %787 = vmatpush2.bf16.msra.mxu0 0
    %788 = vmatprep.subr.bf16.mxu0 0
    %789 = vmatpush2.bf16.msra.mxu0 0
    %790 = vmatprep.subr.bf16.mxu0 0
    %791 = vmatpush2.bf16.msra.mxu0 0
    %792 = vmatprep.subr.bf16.mxu0 0
    %793 = vmatpush2.bf16.msra.mxu0 0
    %794 = vmatprep.subr.bf16.mxu0 0
    %795 = vmatpush2.bf16.msra.mxu0 0
    %796 = vmatprep.subr.bf16.mxu0 0
    %797 = vmatpush2.bf16.msra.mxu0 0
    %798 = vmatprep.mubr.bf16.mxu0 0
    %799 = vmatmul.mubr.bf16.gmra.mxu0 %v758
    %v800 = vpop.f32.mrf.mxu0
    %v801 = vadd.f32 0.0, %v800
    %v802 = vpop.f32.mrf.mxu0
    %v803 = vpop.f32.mrf.mxu0
    %v804 = vadd.f32 0.0, %v803
    %v805 = vpop.f32.mrf.mxu0
    %806 = vmatprep.mubr.bf16.mxu0 0
    %807 = vmatmul.mubr.bf16.gmra.mxu0 %v761
    %v808 = vpop.f32.mrf.mxu0
    %v809 = vadd.f32 0.0, %v808
    %v810 = vpop.f32.mrf.mxu0
    %v811 = vpop.f32.mrf.mxu0
    %v812 = vadd.f32 0.0, %v811
    %v813 = vpop.f32.mrf.mxu0
    %814 = vmatprep.mubr.bf16.mxu0 0
    %815 = vmatmul.mubr.bf16.gmra.mxu0 %v764
    %v816 = vpop.f32.mrf.mxu0
    %v817 = vadd.f32 0.0, %v816
    %v818 = vpop.f32.mrf.mxu0
    %v819 = vpop.f32.mrf.mxu0
    %v820 = vpop.f32.mrf.mxu0
    %821 = vdwg.mxu0
    %v822 = vadd.f32 %v695, %v801
    %v823 = vadd.f32 %v698, %v804
    %v824 = vadd.f32 %v703, %v809
    %v825 = vadd.f32 %v706, %v812
    %v826 = vadd.f32 %v711, %v817
    %s827 = scalar_lea.vmem %s4, 1
    %v828 = vld [vmem:[%s827] sm:$0x1]
    %v830 = vlaneseq
    %v831 = vshrl.u32 %v830, 7
    %v832 = vsub.s32 0, %v831
    %v833 = vrot.slane %v828, %v832
    %v835 = vadd.f32 %v822, %v833
    %v836 = vadd.f32 %v823, %v833
    %v837 = vadd.f32 %v824, %v833
    %v838 = vadd.f32 %v825, %v833
    %v839 = vadd.f32 %v826, %v833
    %v840 = vmax.f32 %v835, 0.0
    %v841 = vmax.f32 %v836, 0.0
    %v842 = vmax.f32 %v837, 0.0
    %v843 = vmax.f32 %v838, 0.0
    %v844 = vmax.f32 %v839, 0.0
    %v846 = vsel %vm403, %v844, 0
    %848 = vmatprep.subr.mxu0 0.0
    %849 = vmatpush1.msra.mxu0 0.0
    %850 = vmatprep.subr.mxu0 0.0
    %851 = vmatpush1.msra.mxu0 0.0
    %852 = vmatprep.subr.mxu0 0.0
    %853 = vmatpush1.msra.mxu0 0.0
    %854 = vmatprep.subr.mxu0 0.0
    %855 = vmatpush1.msra.mxu0 0.0
    %856 = vmatprep.subr.mxu0 0.0
    %857 = vmatpush1.msra.mxu0 0.0
    %858 = vmatprep.subr.mxu0 0.0
    %859 = vmatpush1.msra.mxu0 0.0
    %860 = vmatprep.subr.mxu0 0.0
    %861 = vmatpush1.msra.mxu0 0.0
    %862 = vmatprep.subr.mxu0 0.0
    %863 = vmatpush1.msra.mxu0 0.0
    %864 = vmatprep.subr.mxu0 0.0
    %865 = vmatpush1.msra.mxu0 0.0
    %866 = vmatprep.subr.mxu0 0.0
    %867 = vmatpush1.msra.mxu0 0.0
    %868 = vmatprep.subr.mxu0 0.0
    %869 = vmatpush1.msra.mxu0 0.0
    %870 = vmatprep.subr.mxu0 0.0
    %871 = vmatpush1.msra.mxu0 %v846
    %872 = vmatprep.subr.mxu0 0.0
    %873 = vmatpush1.msra.mxu0 %v843
    %874 = vmatprep.subr.mxu0 0.0
    %875 = vmatpush1.msra.mxu0 %v842
    %876 = vmatprep.subr.mxu0 0.0
    %877 = vmatpush1.msra.mxu0 %v841
    %878 = vmatprep.subr.mxu0 0.0
    %879 = vmatpush1.msra.mxu0 %v840
    %880 = vmatprep.subr.mxu0 0.0
    %881 = vmatpush2.msra.mxu0 0.0
    %882 = vmatprep.subr.mxu0 0.0
    %883 = vmatpush2.msra.mxu0 0.0
    %884 = vmatprep.subr.mxu0 0.0
    %885 = vmatpush2.msra.mxu0 0.0
    %886 = vmatprep.subr.mxu0 0.0
    %887 = vmatpush2.msra.mxu0 0.0
    %888 = vmatprep.subr.mxu0 0.0
    %889 = vmatpush2.msra.mxu0 0.0
    %890 = vmatprep.subr.mxu0 0.0
    %891 = vmatpush2.msra.mxu0 0.0
    %892 = vmatprep.subr.mxu0 0.0
    %893 = vmatpush2.msra.mxu0 0.0
    %894 = vmatprep.subr.mxu0 0.0
    %895 = vmatpush2.msra.mxu0 0.0
    %896 = vmatprep.subr.mxu0 0.0
    %897 = vmatpush2.msra.mxu0 0.0
    %898 = vmatprep.subr.mxu0 0.0
    %899 = vmatpush2.msra.mxu0 0.0
    %900 = vmatprep.subr.mxu0 0.0
    %901 = vmatpush2.msra.mxu0 0.0
    %902 = vmatprep.subr.mxu0 0.0
    %903 = vmatpush2.msra.mxu0 0.0
    %904 = vmatprep.subr.mxu0 0.0
    %905 = vmatpush2.msra.mxu0 0.0
    %906 = vmatprep.subr.mxu0 0.0
    %907 = vmatpush2.msra.mxu0 0.0
    %908 = vmatprep.subr.mxu0 0.0
    %909 = vmatpush2.msra.mxu0 0.0
    %910 = vmatprep.subr.mxu0 0.0
    %911 = vmatpush2.msra.mxu0 0.0
    %912 = vmatprep.mubr.f32.mxu0 0.0
    %913 = vmatmul.mubr.f32.gmra.mxu0 %v389
    %v914 = vpop.f32.mrf.mxu0
    %v915 = vadd.f32 0.0, %v914
    %v916 = vpop.f32.mrf.mxu0
    %917 = vmatprep.mubr.f32.mxu0 0.0
    %918 = vmatmul.mubr.f32.gmra.mxu0 %v392
    %v919 = vpop.f32.mrf.mxu0
    %v920 = vadd.f32 0.0, %v919
    %v921 = vpop.f32.mrf.mxu0
    %922 = vmatprep.mubr.f32.mxu0 0.0
    %923 = vmatmul.mubr.f32.gmra.mxu0 %v395
    %v924 = vpop.f32.mrf.mxu0
    %v925 = vadd.f32 0.0, %v924
    %v926 = vpop.f32.mrf.mxu0
    %927 = vmatprep.mubr.f32.mxu0 0.0
    %928 = vmatmul.mubr.f32.gmra.mxu0 %v398
    %v929 = vpop.f32.mrf.mxu0
    %v930 = vadd.f32 0.0, %v929
    %v931 = vpop.f32.mrf.mxu0
    %932 = vmatprep.mubr.f32.mxu0 0.0
    %933 = vmatmul.mubr.f32.gmra.mxu0 %v401
    %v934 = vpop.f32.mrf.mxu0
    %v935 = vadd.f32 0.0, %v934
    %v936 = vpop.f32.mrf.mxu0
    %937 = vdwg.mxu0
    %v938 = vpack.c.bf16 %v920, %v915
    %v939 = vpack.c.bf16 %v930, %v925
    %v940 = vpack.c.bf16 %v935, %v935
    %s941 = scalar_lea.vmem %s3, 192
    %v942 = vld [vmem:[%s941] sm:$0xf]
    %v943 = vld [vmem:[%s941 + $0x4] sm:$0xf]
    %v944 = vld [vmem:[%s941 + $0x8] sm:$0xf]
    %v945 = vld [vmem:[%s941 + $0xc] sm:$0xf]
    %v946 = vld [vmem:[%s941 + $0x10] sm:$0xf]
    %v947 = vld [vmem:[%s941 + $0x14] sm:$0xf]
    %v948 = vld [vmem:[%s941 + $0x18] sm:$0xf]
    %v949 = vld [vmem:[%s941 + $0x1c] sm:$0xf]
    %s950 = scalar_lea.vmem %s3, 224
    %v951 = vld [vmem:[%s950] sm:$0xf]
    %v952 = vld [vmem:[%s950 + $0x4] sm:$0xf]
    %v953 = vld [vmem:[%s950 + $0x8] sm:$0xf]
    %v954 = vld [vmem:[%s950 + $0xc] sm:$0xf]
    %v955 = vld [vmem:[%s950 + $0x10] sm:$0xf]
    %v956 = vld [vmem:[%s950 + $0x14] sm:$0xf]
    %v957 = vld [vmem:[%s950 + $0x18] sm:$0xf]
    %v958 = vld [vmem:[%s950 + $0x1c] sm:$0xf]
    %v960 = vshrl.u32 %v938, 16
    %v962 = vshll.u32 %v938, 16
    %v964 = vrot.slane %v962, 1
    %v965 = vor.u32 %v960, %v964
    %v967 = vshll.u32 %v939, 16
    %v969 = vrot.slane %v967, 1
    %v970 = vsel %vm53, %v965, %v969
    %v971 = vshrl.u32 %v939, 16
    %v973 = vor.u32 %v971, %v969
    %v975 = vshll.u32 %v940, 16
    %v977 = vrot.slane %v975, 1
    %v978 = vsel %vm53, %v973, %v977
    %v979 = vshrl.u32 %v940, 16
    %v981 = vor.u32 %v979, %v977
    %v990 = vunpack.c.l.b16 %v951
    %v991 = vunpack.c.l.b16 %v952
    %v992 = vunpack.c.l.b16 %v953
    %v993 = vunpack.c.l.b16 %v954
    %v994 = vunpack.c.l.b16 %v955
    %v995 = vunpack.c.l.b16 %v956
    %v996 = vunpack.c.l.b16 %v957
    %v997 = vunpack.c.l.b16 %v958
    %v998 = vpack.c.b16 %v991, %v990
    %v999 = vpack.c.b16 %v993, %v992
    %v1000 = vpack.c.b16 %v995, %v994
    %v1001 = vpack.c.b16 %v997, %v996
    %v1007 = vsel %vm101, %v970, 0
    %v1010 = vsel %vm101, %v978, 0
    %v1013 = vsel %vm101, %v981, 0
    %1015 = vmatprep.subr.bf16.mxu0 0
    %1016 = vmatpush1.bf16.msra.mxu0 0
    %1017 = vmatprep.subr.bf16.mxu0 0
    %1018 = vmatpush1.bf16.msra.mxu0 0
    %1019 = vmatprep.subr.bf16.mxu0 0
    %1020 = vmatpush1.bf16.msra.mxu0 0
    %1021 = vmatprep.subr.bf16.mxu0 0
    %1022 = vmatpush1.bf16.msra.mxu0 0
    %1023 = vmatprep.subr.bf16.mxu0 0
    %1024 = vmatpush1.bf16.msra.mxu0 %v1001
    %1025 = vmatprep.subr.bf16.mxu0 0
    %1026 = vmatpush1.bf16.msra.mxu0 %v1000
    %1027 = vmatprep.subr.bf16.mxu0 0
    %1028 = vmatpush1.bf16.msra.mxu0 %v999
    %1029 = vmatprep.subr.bf16.mxu0 0
    %1030 = vmatpush1.bf16.msra.mxu0 %v998
    %1031 = vmatprep.subr.bf16.mxu0 0
    %1032 = vmatpush2.bf16.msra.mxu0 0
    %1033 = vmatprep.subr.bf16.mxu0 0
    %1034 = vmatpush2.bf16.msra.mxu0 0
    %1035 = vmatprep.subr.bf16.mxu0 0
    %1036 = vmatpush2.bf16.msra.mxu0 0
    %1037 = vmatprep.subr.bf16.mxu0 0
    %1038 = vmatpush2.bf16.msra.mxu0 0
    %1039 = vmatprep.subr.bf16.mxu0 0
    %1040 = vmatpush2.bf16.msra.mxu0 0
    %1041 = vmatprep.subr.bf16.mxu0 0
    %1042 = vmatpush2.bf16.msra.mxu0 0
    %1043 = vmatprep.subr.bf16.mxu0 0
    %1044 = vmatpush2.bf16.msra.mxu0 0
    %1045 = vmatprep.subr.bf16.mxu0 0
    %1046 = vmatpush2.bf16.msra.mxu0 0
    %1047 = vmatprep.mubr.bf16.mxu0 0
    %1048 = vmatmul.mubr.bf16.gmra.mxu0 %v1007
    %v1049 = vpop.f32.mrf.mxu0
    %v1050 = vadd.f32 0.0, %v1049
    %v1051 = vpop.f32.mrf.mxu0
    %v1052 = vpop.f32.mrf.mxu0
    %v1053 = vadd.f32 0.0, %v1052
    %v1054 = vpop.f32.mrf.mxu0
    %1055 = vmatprep.mubr.bf16.mxu0 0
    %1056 = vmatmul.mubr.bf16.gmra.mxu0 %v1010
    %v1057 = vpop.f32.mrf.mxu0
    %v1058 = vadd.f32 0.0, %v1057
    %v1059 = vpop.f32.mrf.mxu0
    %v1060 = vpop.f32.mrf.mxu0
    %v1061 = vadd.f32 0.0, %v1060
    %v1062 = vpop.f32.mrf.mxu0
    %1063 = vmatprep.mubr.bf16.mxu0 0
    %1064 = vmatmul.mubr.bf16.gmra.mxu0 %v1013
    %v1065 = vpop.f32.mrf.mxu0
    %v1066 = vadd.f32 0.0, %v1065
    %v1067 = vpop.f32.mrf.mxu0
    %v1068 = vpop.f32.mrf.mxu0
    %v1069 = vpop.f32.mrf.mxu0
    %1070 = vdwg.mxu0
    %v1079 = vunpack.c.l.b16 %v942
    %v1080 = vunpack.c.l.b16 %v943
    %v1081 = vunpack.c.l.b16 %v944
    %v1082 = vunpack.c.l.b16 %v945
    %v1083 = vunpack.c.l.b16 %v946
    %v1084 = vunpack.c.l.b16 %v947
    %v1085 = vunpack.c.l.b16 %v948
    %v1086 = vunpack.c.l.b16 %v949
    %v1087 = vpack.c.b16 %v1080, %v1079
    %v1088 = vpack.c.b16 %v1082, %v1081
    %v1089 = vpack.c.b16 %v1084, %v1083
    %v1090 = vpack.c.b16 %v1086, %v1085
    %v1095 = vsel %vm101, %v938, 0
    %v1097 = vsel %vm101, %v939, 0
    %v1099 = vsel %vm101, %v940, 0
    %1101 = vmatprep.subr.bf16.mxu0 0
    %1102 = vmatpush1.bf16.msra.mxu0 0
    %1103 = vmatprep.subr.bf16.mxu0 0
    %1104 = vmatpush1.bf16.msra.mxu0 0
    %1105 = vmatprep.subr.bf16.mxu0 0
    %1106 = vmatpush1.bf16.msra.mxu0 0
    %1107 = vmatprep.subr.bf16.mxu0 0
    %1108 = vmatpush1.bf16.msra.mxu0 0
    %1109 = vmatprep.subr.bf16.mxu0 0
    %1110 = vmatpush1.bf16.msra.mxu0 %v1090
    %1111 = vmatprep.subr.bf16.mxu0 0
    %1112 = vmatpush1.bf16.msra.mxu0 %v1089
    %1113 = vmatprep.subr.bf16.mxu0 0
    %1114 = vmatpush1.bf16.msra.mxu0 %v1088
    %1115 = vmatprep.subr.bf16.mxu0 0
    %1116 = vmatpush1.bf16.msra.mxu0 %v1087
    %1117 = vmatprep.subr.bf16.mxu0 0
    %1118 = vmatpush2.bf16.msra.mxu0 0
    %1119 = vmatprep.subr.bf16.mxu0 0
    %1120 = vmatpush2.bf16.msra.mxu0 0
    %1121 = vmatprep.subr.bf16.mxu0 0
    %1122 = vmatpush2.bf16.msra.mxu0 0
    %1123 = vmatprep.subr.bf16.mxu0 0
    %1124 = vmatpush2.bf16.msra.mxu0 0
    %1125 = vmatprep.subr.bf16.mxu0 0
    %1126 = vmatpush2.bf16.msra.mxu0 0
    %1127 = vmatprep.subr.bf16.mxu0 0
    %1128 = vmatpush2.bf16.msra.mxu0 0
    %1129 = vmatprep.subr.bf16.mxu0 0
    %1130 = vmatpush2.bf16.msra.mxu0 0
    %1131 = vmatprep.subr.bf16.mxu0 0
    %1132 = vmatpush2.bf16.msra.mxu0 0
    %1133 = vmatprep.mubr.bf16.mxu0 0
    %1134 = vmatmul.mubr.bf16.gmra.mxu0 %v1095
    %v1135 = vpop.f32.mrf.mxu0
    %v1136 = vadd.f32 %v1050, %v1135
    %v1137 = vpop.f32.mrf.mxu0
    %v1138 = vpop.f32.mrf.mxu0
    %v1139 = vadd.f32 %v1053, %v1138
    %v1140 = vpop.f32.mrf.mxu0
    %1141 = vmatprep.mubr.bf16.mxu0 0
    %1142 = vmatmul.mubr.bf16.gmra.mxu0 %v1097
    %v1143 = vpop.f32.mrf.mxu0
    %v1144 = vadd.f32 %v1058, %v1143
    %v1145 = vpop.f32.mrf.mxu0
    %v1146 = vpop.f32.mrf.mxu0
    %v1147 = vadd.f32 %v1061, %v1146
    %v1148 = vpop.f32.mrf.mxu0
    %1149 = vmatprep.mubr.bf16.mxu0 0
    %1150 = vmatmul.mubr.bf16.gmra.mxu0 %v1099
    %v1151 = vpop.f32.mrf.mxu0
    %v1152 = vadd.f32 %v1066, %v1151
    %v1153 = vpop.f32.mrf.mxu0
    %v1154 = vpop.f32.mrf.mxu0
    %v1155 = vpop.f32.mrf.mxu0
    %1156 = vdwg.mxu0
    %s1157 = scalar_lea.vmem %s3, 256
    %v1158 = vld [vmem:[%s1157] sm:$0xf]
    %v1159 = vld [vmem:[%s1157 + $0x4] sm:$0xf]
    %v1160 = vld [vmem:[%s1157 + $0x8] sm:$0xf]
    %v1161 = vld [vmem:[%s1157 + $0xc] sm:$0xf]
    %v1162 = vld [vmem:[%s1157 + $0x10] sm:$0xf]
    %v1163 = vld [vmem:[%s1157 + $0x14] sm:$0xf]
    %v1164 = vld [vmem:[%s1157 + $0x18] sm:$0xf]
    %v1165 = vld [vmem:[%s1157 + $0x1c] sm:$0xf]
    %v1169 = vrot.slane %v938, 1
    %v1170 = vrot.slane %v939, 1
    %v1171 = vsel %vm265, %v1169, %v1170
    %v1172 = vrot.slane %v940, 1
    %v1173 = vsel %vm265, %v1170, %v1172
    %v1182 = vunpack.c.l.b16 %v1158
    %v1183 = vunpack.c.l.b16 %v1159
    %v1184 = vunpack.c.l.b16 %v1160
    %v1185 = vunpack.c.l.b16 %v1161
    %v1186 = vunpack.c.l.b16 %v1162
    %v1187 = vunpack.c.l.b16 %v1163
    %v1188 = vunpack.c.l.b16 %v1164
    %v1189 = vunpack.c.l.b16 %v1165
    %v1190 = vpack.c.b16 %v1183, %v1182
    %v1191 = vpack.c.b16 %v1185, %v1184
    %v1192 = vpack.c.b16 %v1187, %v1186
    %v1193 = vpack.c.b16 %v1189, %v1188
    %v1199 = vsel %vm101, %v1171, 0
    %v1202 = vsel %vm101, %v1173, 0
    %v1205 = vsel %vm101, %v1172, 0
    %1207 = vmatprep.subr.bf16.mxu0 0
    %1208 = vmatpush1.bf16.msra.mxu0 0
    %1209 = vmatprep.subr.bf16.mxu0 0
    %1210 = vmatpush1.bf16.msra.mxu0 0
    %1211 = vmatprep.subr.bf16.mxu0 0
    %1212 = vmatpush1.bf16.msra.mxu0 0
    %1213 = vmatprep.subr.bf16.mxu0 0
    %1214 = vmatpush1.bf16.msra.mxu0 0
    %1215 = vmatprep.subr.bf16.mxu0 0
    %1216 = vmatpush1.bf16.msra.mxu0 %v1193
    %1217 = vmatprep.subr.bf16.mxu0 0
    %1218 = vmatpush1.bf16.msra.mxu0 %v1192
    %1219 = vmatprep.subr.bf16.mxu0 0
    %1220 = vmatpush1.bf16.msra.mxu0 %v1191
    %1221 = vmatprep.subr.bf16.mxu0 0
    %1222 = vmatpush1.bf16.msra.mxu0 %v1190
    %1223 = vmatprep.subr.bf16.mxu0 0
    %1224 = vmatpush2.bf16.msra.mxu0 0
    %1225 = vmatprep.subr.bf16.mxu0 0
    %1226 = vmatpush2.bf16.msra.mxu0 0
    %1227 = vmatprep.subr.bf16.mxu0 0
    %1228 = vmatpush2.bf16.msra.mxu0 0
    %1229 = vmatprep.subr.bf16.mxu0 0
    %1230 = vmatpush2.bf16.msra.mxu0 0
    %1231 = vmatprep.subr.bf16.mxu0 0
    %1232 = vmatpush2.bf16.msra.mxu0 0
    %1233 = vmatprep.subr.bf16.mxu0 0
    %1234 = vmatpush2.bf16.msra.mxu0 0
    %1235 = vmatprep.subr.bf16.mxu0 0
    %1236 = vmatpush2.bf16.msra.mxu0 0
    %1237 = vmatprep.subr.bf16.mxu0 0
    %1238 = vmatpush2.bf16.msra.mxu0 0
    %1239 = vmatprep.mubr.bf16.mxu0 0
    %1240 = vmatmul.mubr.bf16.gmra.mxu0 %v1199
    %v1241 = vpop.f32.mrf.mxu0
    %v1242 = vadd.f32 0.0, %v1241
    %v1243 = vpop.f32.mrf.mxu0
    %v1244 = vpop.f32.mrf.mxu0
    %v1245 = vadd.f32 0.0, %v1244
    %v1246 = vpop.f32.mrf.mxu0
    %1247 = vmatprep.mubr.bf16.mxu0 0
    %1248 = vmatmul.mubr.bf16.gmra.mxu0 %v1202
    %v1249 = vpop.f32.mrf.mxu0
    %v1250 = vadd.f32 0.0, %v1249
    %v1251 = vpop.f32.mrf.mxu0
    %v1252 = vpop.f32.mrf.mxu0
    %v1253 = vadd.f32 0.0, %v1252
    %v1254 = vpop.f32.mrf.mxu0
    %1255 = vmatprep.mubr.bf16.mxu0 0
    %1256 = vmatmul.mubr.bf16.gmra.mxu0 %v1205
    %v1257 = vpop.f32.mrf.mxu0
    %v1258 = vadd.f32 0.0, %v1257
    %v1259 = vpop.f32.mrf.mxu0
    %v1260 = vpop.f32.mrf.mxu0
    %v1261 = vpop.f32.mrf.mxu0
    %1262 = vdwg.mxu0
    %v1263 = vadd.f32 %v1136, %v1242
    %v1264 = vadd.f32 %v1139, %v1245
    %v1265 = vadd.f32 %v1144, %v1250
    %v1266 = vadd.f32 %v1147, %v1253
    %v1267 = vadd.f32 %v1152, %v1258
    %s1268 = scalar_lea.vmem %s4, 2
    %v1269 = vld [vmem:[%s1268] sm:$0x1]
    %v1271 = vlaneseq
    %v1272 = vshrl.u32 %v1271, 7
    %v1273 = vsub.s32 0, %v1272
    %v1274 = vrot.slane %v1269, %v1273
    %v1276 = vadd.f32 %v1263, %v1274
    %v1277 = vadd.f32 %v1264, %v1274
    %v1278 = vadd.f32 %v1265, %v1274
    %v1279 = vadd.f32 %v1266, %v1274
    %v1280 = vadd.f32 %v1267, %v1274
    %v1281 = vmax.f32 %v1276, 0.0
    %v1282 = vmax.f32 %v1277, 0.0
    %v1283 = vmax.f32 %v1278, 0.0
    %v1284 = vmax.f32 %v1279, 0.0
    %v1285 = vmax.f32 %v1280, 0.0
    %v1287 = vsel %vm403, %v1285, 0
    %1289 = vmatprep.subr.mxu0 0.0
    %1290 = vmatpush1.msra.mxu0 0.0
    %1291 = vmatprep.subr.mxu0 0.0
    %1292 = vmatpush1.msra.mxu0 0.0
    %1293 = vmatprep.subr.mxu0 0.0
    %1294 = vmatpush1.msra.mxu0 0.0
    %1295 = vmatprep.subr.mxu0 0.0
    %1296 = vmatpush1.msra.mxu0 0.0
    %1297 = vmatprep.subr.mxu0 0.0
    %1298 = vmatpush1.msra.mxu0 0.0
    %1299 = vmatprep.subr.mxu0 0.0
    %1300 = vmatpush1.msra.mxu0 0.0
    %1301 = vmatprep.subr.mxu0 0.0
    %1302 = vmatpush1.msra.mxu0 0.0
    %1303 = vmatprep.subr.mxu0 0.0
    %1304 = vmatpush1.msra.mxu0 0.0
    %1305 = vmatprep.subr.mxu0 0.0
    %1306 = vmatpush1.msra.mxu0 0.0
    %1307 = vmatprep.subr.mxu0 0.0
    %1308 = vmatpush1.msra.mxu0 0.0
    %1309 = vmatprep.subr.mxu0 0.0
    %1310 = vmatpush1.msra.mxu0 0.0
    %1311 = vmatprep.subr.mxu0 0.0
    %1312 = vmatpush1.msra.mxu0 %v1287
    %1313 = vmatprep.subr.mxu0 0.0
    %1314 = vmatpush1.msra.mxu0 %v1284
    %1315 = vmatprep.subr.mxu0 0.0
    %1316 = vmatpush1.msra.mxu0 %v1283
    %1317 = vmatprep.subr.mxu0 0.0
    %1318 = vmatpush1.msra.mxu0 %v1282
    %1319 = vmatprep.subr.mxu0 0.0
    %1320 = vmatpush1.msra.mxu0 %v1281
    %1321 = vmatprep.subr.mxu0 0.0
    %1322 = vmatpush2.msra.mxu0 0.0
    %1323 = vmatprep.subr.mxu0 0.0
    %1324 = vmatpush2.msra.mxu0 0.0
    %1325 = vmatprep.subr.mxu0 0.0
    %1326 = vmatpush2.msra.mxu0 0.0
    %1327 = vmatprep.subr.mxu0 0.0
    %1328 = vmatpush2.msra.mxu0 0.0
    %1329 = vmatprep.subr.mxu0 0.0
    %1330 = vmatpush2.msra.mxu0 0.0
    %1331 = vmatprep.subr.mxu0 0.0
    %1332 = vmatpush2.msra.mxu0 0.0
    %1333 = vmatprep.subr.mxu0 0.0
    %1334 = vmatpush2.msra.mxu0 0.0
    %1335 = vmatprep.subr.mxu0 0.0
    %1336 = vmatpush2.msra.mxu0 0.0
    %1337 = vmatprep.subr.mxu0 0.0
    %1338 = vmatpush2.msra.mxu0 0.0
    %1339 = vmatprep.subr.mxu0 0.0
    %1340 = vmatpush2.msra.mxu0 0.0
    %1341 = vmatprep.subr.mxu0 0.0
    %1342 = vmatpush2.msra.mxu0 0.0
    %1343 = vmatprep.subr.mxu0 0.0
    %1344 = vmatpush2.msra.mxu0 0.0
    %1345 = vmatprep.subr.mxu0 0.0
    %1346 = vmatpush2.msra.mxu0 0.0
    %1347 = vmatprep.subr.mxu0 0.0
    %1348 = vmatpush2.msra.mxu0 0.0
    %1349 = vmatprep.subr.mxu0 0.0
    %1350 = vmatpush2.msra.mxu0 0.0
    %1351 = vmatprep.subr.mxu0 0.0
    %1352 = vmatpush2.msra.mxu0 0.0
    %1353 = vmatprep.mubr.f32.mxu0 0.0
    %1354 = vmatmul.mubr.f32.gmra.mxu0 %v389
    %v1355 = vpop.f32.mrf.mxu0
    %v1356 = vadd.f32 0.0, %v1355
    %v1357 = vpop.f32.mrf.mxu0
    %1358 = vmatprep.mubr.f32.mxu0 0.0
    %1359 = vmatmul.mubr.f32.gmra.mxu0 %v392
    %v1360 = vpop.f32.mrf.mxu0
    %v1361 = vadd.f32 0.0, %v1360
    %v1362 = vpop.f32.mrf.mxu0
    %1363 = vmatprep.mubr.f32.mxu0 0.0
    %1364 = vmatmul.mubr.f32.gmra.mxu0 %v395
    %v1365 = vpop.f32.mrf.mxu0
    %v1366 = vadd.f32 0.0, %v1365
    %v1367 = vpop.f32.mrf.mxu0
    %1368 = vmatprep.mubr.f32.mxu0 0.0
    %1369 = vmatmul.mubr.f32.gmra.mxu0 %v398
    %v1370 = vpop.f32.mrf.mxu0
    %v1371 = vadd.f32 0.0, %v1370
    %v1372 = vpop.f32.mrf.mxu0
    %1373 = vmatprep.mubr.f32.mxu0 0.0
    %1374 = vmatmul.mubr.f32.gmra.mxu0 %v401
    %v1375 = vpop.f32.mrf.mxu0
    %v1376 = vadd.f32 0.0, %v1375
    %v1377 = vpop.f32.mrf.mxu0
    %1378 = vdwg.mxu0
    %v1379 = vpack.c.bf16 %v1361, %v1356
    %v1380 = vpack.c.bf16 %v1371, %v1366
    %v1381 = vpack.c.bf16 %v1376, %v1376
    %s1382 = scalar_lea.vmem %s3, 288
    %v1383 = vld [vmem:[%s1382] sm:$0xf]
    %v1384 = vld [vmem:[%s1382 + $0x4] sm:$0xf]
    %v1385 = vld [vmem:[%s1382 + $0x8] sm:$0xf]
    %v1386 = vld [vmem:[%s1382 + $0xc] sm:$0xf]
    %v1387 = vld [vmem:[%s1382 + $0x10] sm:$0xf]
    %v1388 = vld [vmem:[%s1382 + $0x14] sm:$0xf]
    %v1389 = vld [vmem:[%s1382 + $0x18] sm:$0xf]
    %v1390 = vld [vmem:[%s1382 + $0x1c] sm:$0xf]
    %s1391 = scalar_lea.vmem %s3, 320
    %v1392 = vld [vmem:[%s1391] sm:$0xf]
    %v1393 = vld [vmem:[%s1391 + $0x4] sm:$0xf]
    %v1394 = vld [vmem:[%s1391 + $0x8] sm:$0xf]
    %v1395 = vld [vmem:[%s1391 + $0xc] sm:$0xf]
    %v1396 = vld [vmem:[%s1391 + $0x10] sm:$0xf]
    %v1397 = vld [vmem:[%s1391 + $0x14] sm:$0xf]
    %v1398 = vld [vmem:[%s1391 + $0x18] sm:$0xf]
    %v1399 = vld [vmem:[%s1391 + $0x1c] sm:$0xf]
    %v1401 = vshrl.u32 %v1379, 16
    %v1403 = vshll.u32 %v1379, 16
    %v1405 = vrot.slane %v1403, 1
    %v1406 = vor.u32 %v1401, %v1405
    %v1408 = vshll.u32 %v1380, 16
    %v1410 = vrot.slane %v1408, 1
    %v1411 = vsel %vm53, %v1406, %v1410
    %v1412 = vshrl.u32 %v1380, 16
    %v1414 = vor.u32 %v1412, %v1410
    %v1416 = vshll.u32 %v1381, 16
    %v1418 = vrot.slane %v1416, 1
    %v1419 = vsel %vm53, %v1414, %v1418
    %v1420 = vshrl.u32 %v1381, 16
    %v1422 = vor.u32 %v1420, %v1418
    %v1431 = vunpack.c.l.b16 %v1392
    %v1432 = vunpack.c.l.b16 %v1393
    %v1433 = vunpack.c.l.b16 %v1394
    %v1434 = vunpack.c.l.b16 %v1395
    %v1435 = vunpack.c.l.b16 %v1396
    %v1436 = vunpack.c.l.b16 %v1397
    %v1437 = vunpack.c.l.b16 %v1398
    %v1438 = vunpack.c.l.b16 %v1399
    %v1439 = vpack.c.b16 %v1432, %v1431
    %v1440 = vpack.c.b16 %v1434, %v1433
    %v1441 = vpack.c.b16 %v1436, %v1435
    %v1442 = vpack.c.b16 %v1438, %v1437
    %v1448 = vsel %vm101, %v1411, 0
    %v1451 = vsel %vm101, %v1419, 0
    %v1454 = vsel %vm101, %v1422, 0
    %1456 = vmatprep.subr.bf16.mxu0 0
    %1457 = vmatpush1.bf16.msra.mxu0 0
    %1458 = vmatprep.subr.bf16.mxu0 0
    %1459 = vmatpush1.bf16.msra.mxu0 0
    %1460 = vmatprep.subr.bf16.mxu0 0
    %1461 = vmatpush1.bf16.msra.mxu0 0
    %1462 = vmatprep.subr.bf16.mxu0 0
    %1463 = vmatpush1.bf16.msra.mxu0 0
    %1464 = vmatprep.subr.bf16.mxu0 0
    %1465 = vmatpush1.bf16.msra.mxu0 %v1442
    %1466 = vmatprep.subr.bf16.mxu0 0
    %1467 = vmatpush1.bf16.msra.mxu0 %v1441
    %1468 = vmatprep.subr.bf16.mxu0 0
    %1469 = vmatpush1.bf16.msra.mxu0 %v1440
    %1470 = vmatprep.subr.bf16.mxu0 0
    %1471 = vmatpush1.bf16.msra.mxu0 %v1439
    %1472 = vmatprep.subr.bf16.mxu0 0
    %1473 = vmatpush2.bf16.msra.mxu0 0
    %1474 = vmatprep.subr.bf16.mxu0 0
    %1475 = vmatpush2.bf16.msra.mxu0 0
    %1476 = vmatprep.subr.bf16.mxu0 0
    %1477 = vmatpush2.bf16.msra.mxu0 0
    %1478 = vmatprep.subr.bf16.mxu0 0
    %1479 = vmatpush2.bf16.msra.mxu0 0
    %1480 = vmatprep.subr.bf16.mxu0 0
    %1481 = vmatpush2.bf16.msra.mxu0 0
    %1482 = vmatprep.subr.bf16.mxu0 0
    %1483 = vmatpush2.bf16.msra.mxu0 0
    %1484 = vmatprep.subr.bf16.mxu0 0
    %1485 = vmatpush2.bf16.msra.mxu0 0
    %1486 = vmatprep.subr.bf16.mxu0 0
    %1487 = vmatpush2.bf16.msra.mxu0 0
    %1488 = vmatprep.mubr.bf16.mxu0 0
    %1489 = vmatmul.mubr.bf16.gmra.mxu0 %v1448
    %v1490 = vpop.f32.mrf.mxu0
    %v1491 = vadd.f32 0.0, %v1490
    %v1492 = vpop.f32.mrf.mxu0
    %v1493 = vpop.f32.mrf.mxu0
    %v1494 = vadd.f32 0.0, %v1493
    %v1495 = vpop.f32.mrf.mxu0
    %1496 = vmatprep.mubr.bf16.mxu0 0
    %1497 = vmatmul.mubr.bf16.gmra.mxu0 %v1451
    %v1498 = vpop.f32.mrf.mxu0
    %v1499 = vadd.f32 0.0, %v1498
    %v1500 = vpop.f32.mrf.mxu0
    %v1501 = vpop.f32.mrf.mxu0
    %v1502 = vadd.f32 0.0, %v1501
    %v1503 = vpop.f32.mrf.mxu0
    %1504 = vmatprep.mubr.bf16.mxu0 0
    %1505 = vmatmul.mubr.bf16.gmra.mxu0 %v1454
    %v1506 = vpop.f32.mrf.mxu0
    %v1507 = vadd.f32 0.0, %v1506
    %v1508 = vpop.f32.mrf.mxu0
    %v1509 = vpop.f32.mrf.mxu0
    %v1510 = vpop.f32.mrf.mxu0
    %1511 = vdwg.mxu0
    %v1520 = vunpack.c.l.b16 %v1383
    %v1521 = vunpack.c.l.b16 %v1384
    %v1522 = vunpack.c.l.b16 %v1385
    %v1523 = vunpack.c.l.b16 %v1386
    %v1524 = vunpack.c.l.b16 %v1387
    %v1525 = vunpack.c.l.b16 %v1388
    %v1526 = vunpack.c.l.b16 %v1389
    %v1527 = vunpack.c.l.b16 %v1390
    %v1528 = vpack.c.b16 %v1521, %v1520
    %v1529 = vpack.c.b16 %v1523, %v1522
    %v1530 = vpack.c.b16 %v1525, %v1524
    %v1531 = vpack.c.b16 %v1527, %v1526
    %v1536 = vsel %vm101, %v1379, 0
    %v1538 = vsel %vm101, %v1380, 0
    %v1540 = vsel %vm101, %v1381, 0
    %1542 = vmatprep.subr.bf16.mxu0 0
    %1543 = vmatpush1.bf16.msra.mxu0 0
    %1544 = vmatprep.subr.bf16.mxu0 0
    %1545 = vmatpush1.bf16.msra.mxu0 0
    %1546 = vmatprep.subr.bf16.mxu0 0
    %1547 = vmatpush1.bf16.msra.mxu0 0
    %1548 = vmatprep.subr.bf16.mxu0 0
    %1549 = vmatpush1.bf16.msra.mxu0 0
    %1550 = vmatprep.subr.bf16.mxu0 0
    %1551 = vmatpush1.bf16.msra.mxu0 %v1531
    %1552 = vmatprep.subr.bf16.mxu0 0
    %1553 = vmatpush1.bf16.msra.mxu0 %v1530
    %1554 = vmatprep.subr.bf16.mxu0 0
    %1555 = vmatpush1.bf16.msra.mxu0 %v1529
    %1556 = vmatprep.subr.bf16.mxu0 0
    %1557 = vmatpush1.bf16.msra.mxu0 %v1528
    %1558 = vmatprep.subr.bf16.mxu0 0
    %1559 = vmatpush2.bf16.msra.mxu0 0
    %1560 = vmatprep.subr.bf16.mxu0 0
    %1561 = vmatpush2.bf16.msra.mxu0 0
    %1562 = vmatprep.subr.bf16.mxu0 0
    %1563 = vmatpush2.bf16.msra.mxu0 0
    %1564 = vmatprep.subr.bf16.mxu0 0
    %1565 = vmatpush2.bf16.msra.mxu0 0
    %1566 = vmatprep.subr.bf16.mxu0 0
    %1567 = vmatpush2.bf16.msra.mxu0 0
    %1568 = vmatprep.subr.bf16.mxu0 0
    %1569 = vmatpush2.bf16.msra.mxu0 0
    %1570 = vmatprep.subr.bf16.mxu0 0
    %1571 = vmatpush2.bf16.msra.mxu0 0
    %1572 = vmatprep.subr.bf16.mxu0 0
    %1573 = vmatpush2.bf16.msra.mxu0 0
    %1574 = vmatprep.mubr.bf16.mxu0 0
    %1575 = vmatmul.mubr.bf16.gmra.mxu0 %v1536
    %v1576 = vpop.f32.mrf.mxu0
    %v1577 = vadd.f32 %v1491, %v1576
    %v1578 = vpop.f32.mrf.mxu0
    %v1579 = vpop.f32.mrf.mxu0
    %v1580 = vadd.f32 %v1494, %v1579
    %v1581 = vpop.f32.mrf.mxu0
    %1582 = vmatprep.mubr.bf16.mxu0 0
    %1583 = vmatmul.mubr.bf16.gmra.mxu0 %v1538
    %v1584 = vpop.f32.mrf.mxu0
    %v1585 = vadd.f32 %v1499, %v1584
    %v1586 = vpop.f32.mrf.mxu0
    %v1587 = vpop.f32.mrf.mxu0
    %v1588 = vadd.f32 %v1502, %v1587
    %v1589 = vpop.f32.mrf.mxu0
    %1590 = vmatprep.mubr.bf16.mxu0 0
    %1591 = vmatmul.mubr.bf16.gmra.mxu0 %v1540
    %v1592 = vpop.f32.mrf.mxu0
    %v1593 = vadd.f32 %v1507, %v1592
    %v1594 = vpop.f32.mrf.mxu0
    %v1595 = vpop.f32.mrf.mxu0
    %v1596 = vpop.f32.mrf.mxu0
    %1597 = vdwg.mxu0
    %s1598 = scalar_lea.vmem %s3, 352
    %v1599 = vld [vmem:[%s1598] sm:$0xf]
    %v1600 = vld [vmem:[%s1598 + $0x4] sm:$0xf]
    %v1601 = vld [vmem:[%s1598 + $0x8] sm:$0xf]
    %v1602 = vld [vmem:[%s1598 + $0xc] sm:$0xf]
    %v1603 = vld [vmem:[%s1598 + $0x10] sm:$0xf]
    %v1604 = vld [vmem:[%s1598 + $0x14] sm:$0xf]
    %v1605 = vld [vmem:[%s1598 + $0x18] sm:$0xf]
    %v1606 = vld [vmem:[%s1598 + $0x1c] sm:$0xf]
    %v1610 = vrot.slane %v1379, 1
    %v1611 = vrot.slane %v1380, 1
    %v1612 = vsel %vm265, %v1610, %v1611
    %v1613 = vrot.slane %v1381, 1
    %v1614 = vsel %vm265, %v1611, %v1613
    %v1623 = vunpack.c.l.b16 %v1599
    %v1624 = vunpack.c.l.b16 %v1600
    %v1625 = vunpack.c.l.b16 %v1601
    %v1626 = vunpack.c.l.b16 %v1602
    %v1627 = vunpack.c.l.b16 %v1603
    %v1628 = vunpack.c.l.b16 %v1604
    %v1629 = vunpack.c.l.b16 %v1605
    %v1630 = vunpack.c.l.b16 %v1606
    %v1631 = vpack.c.b16 %v1624, %v1623
    %v1632 = vpack.c.b16 %v1626, %v1625
    %v1633 = vpack.c.b16 %v1628, %v1627
    %v1634 = vpack.c.b16 %v1630, %v1629
    %v1640 = vsel %vm101, %v1612, 0
    %v1643 = vsel %vm101, %v1614, 0
    %v1646 = vsel %vm101, %v1613, 0
    %1648 = vmatprep.subr.bf16.mxu0 0
    %1649 = vmatpush1.bf16.msra.mxu0 0
    %1650 = vmatprep.subr.bf16.mxu0 0
    %1651 = vmatpush1.bf16.msra.mxu0 0
    %1652 = vmatprep.subr.bf16.mxu0 0
    %1653 = vmatpush1.bf16.msra.mxu0 0
    %1654 = vmatprep.subr.bf16.mxu0 0
    %1655 = vmatpush1.bf16.msra.mxu0 0
    %1656 = vmatprep.subr.bf16.mxu0 0
    %1657 = vmatpush1.bf16.msra.mxu0 %v1634
    %1658 = vmatprep.subr.bf16.mxu0 0
    %1659 = vmatpush1.bf16.msra.mxu0 %v1633
    %1660 = vmatprep.subr.bf16.mxu0 0
    %1661 = vmatpush1.bf16.msra.mxu0 %v1632
    %1662 = vmatprep.subr.bf16.mxu0 0
    %1663 = vmatpush1.bf16.msra.mxu0 %v1631
    %1664 = vmatprep.subr.bf16.mxu0 0
    %1665 = vmatpush2.bf16.msra.mxu0 0
    %1666 = vmatprep.subr.bf16.mxu0 0
    %1667 = vmatpush2.bf16.msra.mxu0 0
    %1668 = vmatprep.subr.bf16.mxu0 0
    %1669 = vmatpush2.bf16.msra.mxu0 0
    %1670 = vmatprep.subr.bf16.mxu0 0
    %1671 = vmatpush2.bf16.msra.mxu0 0
    %1672 = vmatprep.subr.bf16.mxu0 0
    %1673 = vmatpush2.bf16.msra.mxu0 0
    %1674 = vmatprep.subr.bf16.mxu0 0
    %1675 = vmatpush2.bf16.msra.mxu0 0
    %1676 = vmatprep.subr.bf16.mxu0 0
    %1677 = vmatpush2.bf16.msra.mxu0 0
    %1678 = vmatprep.subr.bf16.mxu0 0
    %1679 = vmatpush2.bf16.msra.mxu0 0
    %1680 = vmatprep.mubr.bf16.mxu0 0
    %1681 = vmatmul.mubr.bf16.gmra.mxu0 %v1640
    %v1682 = vpop.f32.mrf.mxu0
    %v1683 = vadd.f32 0.0, %v1682
    %v1684 = vpop.f32.mrf.mxu0
    %v1685 = vpop.f32.mrf.mxu0
    %v1686 = vadd.f32 0.0, %v1685
    %v1687 = vpop.f32.mrf.mxu0
    %1688 = vmatprep.mubr.bf16.mxu0 0
    %1689 = vmatmul.mubr.bf16.gmra.mxu0 %v1643
    %v1690 = vpop.f32.mrf.mxu0
    %v1691 = vadd.f32 0.0, %v1690
    %v1692 = vpop.f32.mrf.mxu0
    %v1693 = vpop.f32.mrf.mxu0
    %v1694 = vadd.f32 0.0, %v1693
    %v1695 = vpop.f32.mrf.mxu0
    %1696 = vmatprep.mubr.bf16.mxu0 0
    %1697 = vmatmul.mubr.bf16.gmra.mxu0 %v1646
    %v1698 = vpop.f32.mrf.mxu0
    %v1699 = vadd.f32 0.0, %v1698
    %v1700 = vpop.f32.mrf.mxu0
    %v1701 = vpop.f32.mrf.mxu0
    %v1702 = vpop.f32.mrf.mxu0
    %1703 = vdwg.mxu0
    %v1704 = vadd.f32 %v1577, %v1683
    %v1705 = vadd.f32 %v1580, %v1686
    %v1706 = vadd.f32 %v1585, %v1691
    %v1707 = vadd.f32 %v1588, %v1694
    %v1708 = vadd.f32 %v1593, %v1699
    %s1709 = scalar_lea.vmem %s4, 3
    %v1710 = vld [vmem:[%s1709] sm:$0x1]
    %v1712 = vlaneseq
    %v1713 = vshrl.u32 %v1712, 7
    %v1714 = vsub.s32 0, %v1713
    %v1715 = vrot.slane %v1710, %v1714
    %v1717 = vadd.f32 %v1704, %v1715
    %v1718 = vadd.f32 %v1705, %v1715
    %v1719 = vadd.f32 %v1706, %v1715
    %v1720 = vadd.f32 %v1707, %v1715
    %v1721 = vadd.f32 %v1708, %v1715
    %v1722 = vmax.f32 %v1717, 0.0
    %v1723 = vmax.f32 %v1718, 0.0
    %v1724 = vmax.f32 %v1719, 0.0
    %v1725 = vmax.f32 %v1720, 0.0
    %v1726 = vmax.f32 %v1721, 0.0
    %v1727 = vld [vmem:[%s2] sm:$0xff]
    %v1728 = vld [vmem:[%s2 + $0x8] sm:$0xff]
    %v1729 = vld [vmem:[%s2 + $0x10] sm:$0xff]
    %v1730 = vld [vmem:[%s2 + $0x18] sm:$0xff]
    %v1732 = vsel %vm387, %v1727, 0
    %v1735 = vsel %vm387, %v1728, 0
    %v1738 = vsel %vm387, %v1729, 0
    %v1741 = vsel %vm387, %v1730, 0
    %v1744 = vsel %vm403, %v1726, 0
    %1746 = vmatprep.subr.mxu0 0.0
    %1747 = vmatpush1.msra.mxu0 0.0
    %1748 = vmatprep.subr.mxu0 0.0
    %1749 = vmatpush1.msra.mxu0 0.0
    %1750 = vmatprep.subr.mxu0 0.0
    %1751 = vmatpush1.msra.mxu0 0.0
    %1752 = vmatprep.subr.mxu0 0.0
    %1753 = vmatpush1.msra.mxu0 0.0
    %1754 = vmatprep.subr.mxu0 0.0
    %1755 = vmatpush1.msra.mxu0 0.0
    %1756 = vmatprep.subr.mxu0 0.0
    %1757 = vmatpush1.msra.mxu0 0.0
    %1758 = vmatprep.subr.mxu0 0.0
    %1759 = vmatpush1.msra.mxu0 0.0
    %1760 = vmatprep.subr.mxu0 0.0
    %1761 = vmatpush1.msra.mxu0 0.0
    %1762 = vmatprep.subr.mxu0 0.0
    %1763 = vmatpush1.msra.mxu0 0.0
    %1764 = vmatprep.subr.mxu0 0.0
    %1765 = vmatpush1.msra.mxu0 0.0
    %1766 = vmatprep.subr.mxu0 0.0
    %1767 = vmatpush1.msra.mxu0 0.0
    %1768 = vmatprep.subr.mxu0 0.0
    %1769 = vmatpush1.msra.mxu0 %v1744
    %1770 = vmatprep.subr.mxu0 0.0
    %1771 = vmatpush1.msra.mxu0 %v1725
    %1772 = vmatprep.subr.mxu0 0.0
    %1773 = vmatpush1.msra.mxu0 %v1724
    %1774 = vmatprep.subr.mxu0 0.0
    %1775 = vmatpush1.msra.mxu0 %v1723
    %1776 = vmatprep.subr.mxu0 0.0
    %1777 = vmatpush1.msra.mxu0 %v1722
    %1778 = vmatprep.subr.mxu0 0.0
    %1779 = vmatpush2.msra.mxu0 0.0
    %1780 = vmatprep.subr.mxu0 0.0
    %1781 = vmatpush2.msra.mxu0 0.0
    %1782 = vmatprep.subr.mxu0 0.0
    %1783 = vmatpush2.msra.mxu0 0.0
    %1784 = vmatprep.subr.mxu0 0.0
    %1785 = vmatpush2.msra.mxu0 0.0
    %1786 = vmatprep.subr.mxu0 0.0
    %1787 = vmatpush2.msra.mxu0 0.0
    %1788 = vmatprep.subr.mxu0 0.0
    %1789 = vmatpush2.msra.mxu0 0.0
    %1790 = vmatprep.subr.mxu0 0.0
    %1791 = vmatpush2.msra.mxu0 0.0
    %1792 = vmatprep.subr.mxu0 0.0
    %1793 = vmatpush2.msra.mxu0 0.0
    %1794 = vmatprep.subr.mxu0 0.0
    %1795 = vmatpush2.msra.mxu0 0.0
    %1796 = vmatprep.subr.mxu0 0.0
    %1797 = vmatpush2.msra.mxu0 0.0
    %1798 = vmatprep.subr.mxu0 0.0
    %1799 = vmatpush2.msra.mxu0 0.0
    %1800 = vmatprep.subr.mxu0 0.0
    %1801 = vmatpush2.msra.mxu0 0.0
    %1802 = vmatprep.subr.mxu0 0.0
    %1803 = vmatpush2.msra.mxu0 0.0
    %1804 = vmatprep.subr.mxu0 0.0
    %1805 = vmatpush2.msra.mxu0 0.0
    %1806 = vmatprep.subr.mxu0 0.0
    %1807 = vmatpush2.msra.mxu0 0.0
    %1808 = vmatprep.subr.mxu0 0.0
    %1809 = vmatpush2.msra.mxu0 0.0
    %1810 = vmatprep.mubr.f32.mxu0 0.0
    %1811 = vmatmul.mubr.f32.gmra.mxu0 %v1732
    %v1812 = vpop.f32.mrf.mxu0
    %v1813 = vadd.f32 0.0, %v1812
    %v1814 = vpop.f32.mrf.mxu0
    %1815 = vmatprep.mubr.f32.mxu0 0.0
    %1816 = vmatmul.mubr.f32.gmra.mxu0 %v1735
    %v1817 = vpop.f32.mrf.mxu0
    %v1818 = vadd.f32 0.0, %v1817
    %v1819 = vpop.f32.mrf.mxu0
    %1820 = vmatprep.mubr.f32.mxu0 0.0
    %1821 = vmatmul.mubr.f32.gmra.mxu0 %v1738
    %v1822 = vpop.f32.mrf.mxu0
    %v1823 = vadd.f32 0.0, %v1822
    %v1824 = vpop.f32.mrf.mxu0
    %1825 = vmatprep.mubr.f32.mxu0 0.0
    %1826 = vmatmul.mubr.f32.gmra.mxu0 %v1741
    %v1827 = vpop.f32.mrf.mxu0
    %v1828 = vadd.f32 0.0, %v1827
    %v1829 = vpop.f32.mrf.mxu0
    %1830 = vdwg.mxu0
    %v1831 = vpack.c.bf16 %v1813, %v1813
    %v1832 = vld [vmem:[%s5] sm:$0xf]
    %v1833 = vld [vmem:[%s5 + $0x4] sm:$0xf]
    %v1834 = vld [vmem:[%s5 + $0x8] sm:$0xf]
    %v1835 = vld [vmem:[%s5 + $0xc] sm:$0xf]
    %v1836 = vld [vmem:[%s5 + $0x10] sm:$0xf]
    %v1837 = vld [vmem:[%s5 + $0x14] sm:$0xf]
    %v1838 = vld [vmem:[%s5 + $0x18] sm:$0xf]
    %v1839 = vld [vmem:[%s5 + $0x1c] sm:$0xf]
    %s1840 = scalar_lea.vmem %s5, 32
    %v1841 = vld [vmem:[%s1840] sm:$0xf]
    %v1842 = vld [vmem:[%s1840 + $0x4] sm:$0xf]
    %v1843 = vld [vmem:[%s1840 + $0x8] sm:$0xf]
    %v1844 = vld [vmem:[%s1840 + $0xc] sm:$0xf]
    %v1845 = vld [vmem:[%s1840 + $0x10] sm:$0xf]
    %v1846 = vld [vmem:[%s1840 + $0x14] sm:$0xf]
    %v1847 = vld [vmem:[%s1840 + $0x18] sm:$0xf]
    %v1848 = vld [vmem:[%s1840 + $0x1c] sm:$0xf]
    %v1850 = vrot.slane %v1831, 1
    %v1859 = vunpack.c.l.b16 %v1841
    %v1860 = vunpack.c.l.b16 %v1842
    %v1861 = vunpack.c.l.b16 %v1843
    %v1862 = vunpack.c.l.b16 %v1844
    %v1863 = vunpack.c.l.b16 %v1845
    %v1864 = vunpack.c.l.b16 %v1846
    %v1865 = vunpack.c.l.b16 %v1847
    %v1866 = vunpack.c.l.b16 %v1848
    %v1867 = vpack.c.b16 %v1860, %v1859
    %v1868 = vpack.c.b16 %v1862, %v1861
    %v1869 = vpack.c.b16 %v1864, %v1863
    %v1870 = vpack.c.b16 %v1866, %v1865
    %v1876 = vsel %vm101, %v1850, 0
    %1878 = vmatprep.subr.bf16.mxu0 0
    %1879 = vmatpush1.bf16.msra.mxu0 0
    %1880 = vmatprep.subr.bf16.mxu0 0
    %1881 = vmatpush1.bf16.msra.mxu0 0
    %1882 = vmatprep.subr.bf16.mxu0 0
    %1883 = vmatpush1.bf16.msra.mxu0 0
    %1884 = vmatprep.subr.bf16.mxu0 0
    %1885 = vmatpush1.bf16.msra.mxu0 0
    %1886 = vmatprep.subr.bf16.mxu0 0
    %1887 = vmatpush1.bf16.msra.mxu0 %v1870
    %1888 = vmatprep.subr.bf16.mxu0 0
    %1889 = vmatpush1.bf16.msra.mxu0 %v1869
    %1890 = vmatprep.subr.bf16.mxu0 0
    %1891 = vmatpush1.bf16.msra.mxu0 %v1868
    %1892 = vmatprep.subr.bf16.mxu0 0
    %1893 = vmatpush1.bf16.msra.mxu0 %v1867
    %1894 = vmatprep.subr.bf16.mxu0 0
    %1895 = vmatpush2.bf16.msra.mxu0 0
    %1896 = vmatprep.subr.bf16.mxu0 0
    %1897 = vmatpush2.bf16.msra.mxu0 0
    %1898 = vmatprep.subr.bf16.mxu0 0
    %1899 = vmatpush2.bf16.msra.mxu0 0
    %1900 = vmatprep.subr.bf16.mxu0 0
    %1901 = vmatpush2.bf16.msra.mxu0 0
    %1902 = vmatprep.subr.bf16.mxu0 0
    %1903 = vmatpush2.bf16.msra.mxu0 0
    %1904 = vmatprep.subr.bf16.mxu0 0
    %1905 = vmatpush2.bf16.msra.mxu0 0
    %1906 = vmatprep.subr.bf16.mxu0 0
    %1907 = vmatpush2.bf16.msra.mxu0 0
    %1908 = vmatprep.subr.bf16.mxu0 0
    %1909 = vmatpush2.bf16.msra.mxu0 0
    %1910 = vmatprep.mubr.bf16.mxu0 0
    %1911 = vmatmul.mubr.bf16.gmra.mxu0 %v1876
    %v1912 = vpop.f32.mrf.mxu0
    %v1913 = vadd.f32 0.0, %v1912
    %v1914 = vpop.f32.mrf.mxu0
    %v1915 = vpop.f32.mrf.mxu0
    %v1916 = vpop.f32.mrf.mxu0
    %1917 = vdwg.mxu0
    %v1926 = vunpack.c.l.b16 %v1832
    %v1927 = vunpack.c.l.b16 %v1833
    %v1928 = vunpack.c.l.b16 %v1834
    %v1929 = vunpack.c.l.b16 %v1835
    %v1930 = vunpack.c.l.b16 %v1836
    %v1931 = vunpack.c.l.b16 %v1837
    %v1932 = vunpack.c.l.b16 %v1838
    %v1933 = vunpack.c.l.b16 %v1839
    %v1934 = vpack.c.b16 %v1927, %v1926
    %v1935 = vpack.c.b16 %v1929, %v1928
    %v1936 = vpack.c.b16 %v1931, %v1930
    %v1937 = vpack.c.b16 %v1933, %v1932
    %v1943 = vsel %vm101, %v1831, 0
    %1945 = vmatprep.subr.bf16.mxu0 0
    %1946 = vmatpush1.bf16.msra.mxu0 0
    %1947 = vmatprep.subr.bf16.mxu0 0
    %1948 = vmatpush1.bf16.msra.mxu0 0
    %1949 = vmatprep.subr.bf16.mxu0 0
    %1950 = vmatpush1.bf16.msra.mxu0 0
    %1951 = vmatprep.subr.bf16.mxu0 0
    %1952 = vmatpush1.bf16.msra.mxu0 0
    %1953 = vmatprep.subr.bf16.mxu0 0
    %1954 = vmatpush1.bf16.msra.mxu0 %v1937
    %1955 = vmatprep.subr.bf16.mxu0 0
    %1956 = vmatpush1.bf16.msra.mxu0 %v1936
    %1957 = vmatprep.subr.bf16.mxu0 0
    %1958 = vmatpush1.bf16.msra.mxu0 %v1935
    %1959 = vmatprep.subr.bf16.mxu0 0
    %1960 = vmatpush1.bf16.msra.mxu0 %v1934
    %1961 = vmatprep.subr.bf16.mxu0 0
    %1962 = vmatpush2.bf16.msra.mxu0 0
    %1963 = vmatprep.subr.bf16.mxu0 0
    %1964 = vmatpush2.bf16.msra.mxu0 0
    %1965 = vmatprep.subr.bf16.mxu0 0
    %1966 = vmatpush2.bf16.msra.mxu0 0
    %1967 = vmatprep.subr.bf16.mxu0 0
    %1968 = vmatpush2.bf16.msra.mxu0 0
    %1969 = vmatprep.subr.bf16.mxu0 0
    %1970 = vmatpush2.bf16.msra.mxu0 0
    %1971 = vmatprep.subr.bf16.mxu0 0
    %1972 = vmatpush2.bf16.msra.mxu0 0
    %1973 = vmatprep.subr.bf16.mxu0 0
    %1974 = vmatpush2.bf16.msra.mxu0 0
    %1975 = vmatprep.subr.bf16.mxu0 0
    %1976 = vmatpush2.bf16.msra.mxu0 0
    %1977 = vmatprep.mubr.bf16.mxu0 0
    %1978 = vmatmul.mubr.bf16.gmra.mxu0 %v1943
    %v1979 = vpop.f32.mrf.mxu0
    %v1980 = vadd.f32 %v1913, %v1979
    %v1981 = vpop.f32.mrf.mxu0
    %v1982 = vpop.f32.mrf.mxu0
    %v1983 = vpop.f32.mrf.mxu0
    %1984 = vdwg.mxu0
    %s1985 = scalar_lea.vmem %s5, 64
    %v1986 = vld [vmem:[%s1985] sm:$0xf]
    %v1987 = vld [vmem:[%s1985 + $0x4] sm:$0xf]
    %v1988 = vld [vmem:[%s1985 + $0x8] sm:$0xf]
    %v1989 = vld [vmem:[%s1985 + $0xc] sm:$0xf]
    %v1990 = vld [vmem:[%s1985 + $0x10] sm:$0xf]
    %v1991 = vld [vmem:[%s1985 + $0x14] sm:$0xf]
    %v1992 = vld [vmem:[%s1985 + $0x18] sm:$0xf]
    %v1993 = vld [vmem:[%s1985 + $0x1c] sm:$0xf]
    %v1994 = vrot.slane %v1831, 2
    %v2003 = vunpack.c.l.b16 %v1986
    %v2004 = vunpack.c.l.b16 %v1987
    %v2005 = vunpack.c.l.b16 %v1988
    %v2006 = vunpack.c.l.b16 %v1989
    %v2007 = vunpack.c.l.b16 %v1990
    %v2008 = vunpack.c.l.b16 %v1991
    %v2009 = vunpack.c.l.b16 %v1992
    %v2010 = vunpack.c.l.b16 %v1993
    %v2011 = vpack.c.b16 %v2004, %v2003
    %v2012 = vpack.c.b16 %v2006, %v2005
    %v2013 = vpack.c.b16 %v2008, %v2007
    %v2014 = vpack.c.b16 %v2010, %v2009
    %v2020 = vsel %vm101, %v1994, 0
    %2022 = vmatprep.subr.bf16.mxu0 0
    %2023 = vmatpush1.bf16.msra.mxu0 0
    %2024 = vmatprep.subr.bf16.mxu0 0
    %2025 = vmatpush1.bf16.msra.mxu0 0
    %2026 = vmatprep.subr.bf16.mxu0 0
    %2027 = vmatpush1.bf16.msra.mxu0 0
    %2028 = vmatprep.subr.bf16.mxu0 0
    %2029 = vmatpush1.bf16.msra.mxu0 0
    %2030 = vmatprep.subr.bf16.mxu0 0
    %2031 = vmatpush1.bf16.msra.mxu0 %v2014
    %2032 = vmatprep.subr.bf16.mxu0 0
    %2033 = vmatpush1.bf16.msra.mxu0 %v2013
    %2034 = vmatprep.subr.bf16.mxu0 0
    %2035 = vmatpush1.bf16.msra.mxu0 %v2012
    %2036 = vmatprep.subr.bf16.mxu0 0
    %2037 = vmatpush1.bf16.msra.mxu0 %v2011
    %2038 = vmatprep.subr.bf16.mxu0 0
    %2039 = vmatpush2.bf16.msra.mxu0 0
    %2040 = vmatprep.subr.bf16.mxu0 0
    %2041 = vmatpush2.bf16.msra.mxu0 0
    %2042 = vmatprep.subr.bf16.mxu0 0
    %2043 = vmatpush2.bf16.msra.mxu0 0
    %2044 = vmatprep.subr.bf16.mxu0 0
    %2045 = vmatpush2.bf16.msra.mxu0 0
    %2046 = vmatprep.subr.bf16.mxu0 0
    %2047 = vmatpush2.bf16.msra.mxu0 0
    %2048 = vmatprep.subr.bf16.mxu0 0
    %2049 = vmatpush2.bf16.msra.mxu0 0
    %2050 = vmatprep.subr.bf16.mxu0 0
    %2051 = vmatpush2.bf16.msra.mxu0 0
    %2052 = vmatprep.subr.bf16.mxu0 0
    %2053 = vmatpush2.bf16.msra.mxu0 0
    %2054 = vmatprep.mubr.bf16.mxu0 0
    %2055 = vmatmul.mubr.bf16.gmra.mxu0 %v2020
    %v2056 = vpop.f32.mrf.mxu0
    %v2057 = vadd.f32 0.0, %v2056
    %v2058 = vpop.f32.mrf.mxu0
    %v2059 = vpop.f32.mrf.mxu0
    %v2060 = vpop.f32.mrf.mxu0
    %2061 = vdwg.mxu0
    %v2062 = vadd.f32 %v1980, %v2057
    %s2063 = scalar_lea.vmem %s5, 96
    %v2064 = vld [vmem:[%s2063] sm:$0xf]
    %v2065 = vld [vmem:[%s2063 + $0x4] sm:$0xf]
    %v2066 = vld [vmem:[%s2063 + $0x8] sm:$0xf]
    %v2067 = vld [vmem:[%s2063 + $0xc] sm:$0xf]
    %v2068 = vld [vmem:[%s2063 + $0x10] sm:$0xf]
    %v2069 = vld [vmem:[%s2063 + $0x14] sm:$0xf]
    %v2070 = vld [vmem:[%s2063 + $0x18] sm:$0xf]
    %v2071 = vld [vmem:[%s2063 + $0x1c] sm:$0xf]
    %v2072 = vrot.slane %v1831, 3
    %v2081 = vunpack.c.l.b16 %v2064
    %v2082 = vunpack.c.l.b16 %v2065
    %v2083 = vunpack.c.l.b16 %v2066
    %v2084 = vunpack.c.l.b16 %v2067
    %v2085 = vunpack.c.l.b16 %v2068
    %v2086 = vunpack.c.l.b16 %v2069
    %v2087 = vunpack.c.l.b16 %v2070
    %v2088 = vunpack.c.l.b16 %v2071
    %v2089 = vpack.c.b16 %v2082, %v2081
    %v2090 = vpack.c.b16 %v2084, %v2083
    %v2091 = vpack.c.b16 %v2086, %v2085
    %v2092 = vpack.c.b16 %v2088, %v2087
    %v2098 = vsel %vm101, %v2072, 0
    %2100 = vmatprep.subr.bf16.mxu0 0
    %2101 = vmatpush1.bf16.msra.mxu0 0
    %2102 = vmatprep.subr.bf16.mxu0 0
    %2103 = vmatpush1.bf16.msra.mxu0 0
    %2104 = vmatprep.subr.bf16.mxu0 0
    %2105 = vmatpush1.bf16.msra.mxu0 0
    %2106 = vmatprep.subr.bf16.mxu0 0
    %2107 = vmatpush1.bf16.msra.mxu0 0
    %2108 = vmatprep.subr.bf16.mxu0 0
    %2109 = vmatpush1.bf16.msra.mxu0 %v2092
    %2110 = vmatprep.subr.bf16.mxu0 0
    %2111 = vmatpush1.bf16.msra.mxu0 %v2091
    %2112 = vmatprep.subr.bf16.mxu0 0
    %2113 = vmatpush1.bf16.msra.mxu0 %v2090
    %2114 = vmatprep.subr.bf16.mxu0 0
    %2115 = vmatpush1.bf16.msra.mxu0 %v2089
    %2116 = vmatprep.subr.bf16.mxu0 0
    %2117 = vmatpush2.bf16.msra.mxu0 0
    %2118 = vmatprep.subr.bf16.mxu0 0
    %2119 = vmatpush2.bf16.msra.mxu0 0
    %2120 = vmatprep.subr.bf16.mxu0 0
    %2121 = vmatpush2.bf16.msra.mxu0 0
    %2122 = vmatprep.subr.bf16.mxu0 0
    %2123 = vmatpush2.bf16.msra.mxu0 0
    %2124 = vmatprep.subr.bf16.mxu0 0
    %2125 = vmatpush2.bf16.msra.mxu0 0
    %2126 = vmatprep.subr.bf16.mxu0 0
    %2127 = vmatpush2.bf16.msra.mxu0 0
    %2128 = vmatprep.subr.bf16.mxu0 0
    %2129 = vmatpush2.bf16.msra.mxu0 0
    %2130 = vmatprep.subr.bf16.mxu0 0
    %2131 = vmatpush2.bf16.msra.mxu0 0
    %2132 = vmatprep.mubr.bf16.mxu0 0
    %2133 = vmatmul.mubr.bf16.gmra.mxu0 %v2098
    %v2134 = vpop.f32.mrf.mxu0
    %v2135 = vadd.f32 0.0, %v2134
    %v2136 = vpop.f32.mrf.mxu0
    %v2137 = vpop.f32.mrf.mxu0
    %v2138 = vpop.f32.mrf.mxu0
    %2139 = vdwg.mxu0
    %v2140 = vadd.f32 %v2062, %v2135
    %v2141 = vpack.c.bf16 %v1818, %v1818
    %s2142 = scalar_lea.vmem %s5, 128
    %v2143 = vld [vmem:[%s2142] sm:$0xf]
    %v2144 = vld [vmem:[%s2142 + $0x4] sm:$0xf]
    %v2145 = vld [vmem:[%s2142 + $0x8] sm:$0xf]
    %v2146 = vld [vmem:[%s2142 + $0xc] sm:$0xf]
    %v2147 = vld [vmem:[%s2142 + $0x10] sm:$0xf]
    %v2148 = vld [vmem:[%s2142 + $0x14] sm:$0xf]
    %v2149 = vld [vmem:[%s2142 + $0x18] sm:$0xf]
    %v2150 = vld [vmem:[%s2142 + $0x1c] sm:$0xf]
    %v2159 = vunpack.c.l.b16 %v2143
    %v2160 = vunpack.c.l.b16 %v2144
    %v2161 = vunpack.c.l.b16 %v2145
    %v2162 = vunpack.c.l.b16 %v2146
    %v2163 = vunpack.c.l.b16 %v2147
    %v2164 = vunpack.c.l.b16 %v2148
    %v2165 = vunpack.c.l.b16 %v2149
    %v2166 = vunpack.c.l.b16 %v2150
    %v2167 = vpack.c.b16 %v2160, %v2159
    %v2168 = vpack.c.b16 %v2162, %v2161
    %v2169 = vpack.c.b16 %v2164, %v2163
    %v2170 = vpack.c.b16 %v2166, %v2165
    %v2176 = vsel %vm101, %v2141, 0
    %2178 = vmatprep.subr.bf16.mxu0 0
    %2179 = vmatpush1.bf16.msra.mxu0 0
    %2180 = vmatprep.subr.bf16.mxu0 0
    %2181 = vmatpush1.bf16.msra.mxu0 0
    %2182 = vmatprep.subr.bf16.mxu0 0
    %2183 = vmatpush1.bf16.msra.mxu0 0
    %2184 = vmatprep.subr.bf16.mxu0 0
    %2185 = vmatpush1.bf16.msra.mxu0 0
    %2186 = vmatprep.subr.bf16.mxu0 0
    %2187 = vmatpush1.bf16.msra.mxu0 %v2170
    %2188 = vmatprep.subr.bf16.mxu0 0
    %2189 = vmatpush1.bf16.msra.mxu0 %v2169
    %2190 = vmatprep.subr.bf16.mxu0 0
    %2191 = vmatpush1.bf16.msra.mxu0 %v2168
    %2192 = vmatprep.subr.bf16.mxu0 0
    %2193 = vmatpush1.bf16.msra.mxu0 %v2167
    %2194 = vmatprep.subr.bf16.mxu0 0
    %2195 = vmatpush2.bf16.msra.mxu0 0
    %2196 = vmatprep.subr.bf16.mxu0 0
    %2197 = vmatpush2.bf16.msra.mxu0 0
    %2198 = vmatprep.subr.bf16.mxu0 0
    %2199 = vmatpush2.bf16.msra.mxu0 0
    %2200 = vmatprep.subr.bf16.mxu0 0
    %2201 = vmatpush2.bf16.msra.mxu0 0
    %2202 = vmatprep.subr.bf16.mxu0 0
    %2203 = vmatpush2.bf16.msra.mxu0 0
    %2204 = vmatprep.subr.bf16.mxu0 0
    %2205 = vmatpush2.bf16.msra.mxu0 0
    %2206 = vmatprep.subr.bf16.mxu0 0
    %2207 = vmatpush2.bf16.msra.mxu0 0
    %2208 = vmatprep.subr.bf16.mxu0 0
    %2209 = vmatpush2.bf16.msra.mxu0 0
    %2210 = vmatprep.mubr.bf16.mxu0 0
    %2211 = vmatmul.mubr.bf16.gmra.mxu0 %v2176
    %v2212 = vpop.f32.mrf.mxu0
    %v2213 = vadd.f32 0.0, %v2212
    %v2214 = vpop.f32.mrf.mxu0
    %v2215 = vpop.f32.mrf.mxu0
    %v2216 = vpop.f32.mrf.mxu0
    %2217 = vdwg.mxu0
    %v2218 = vadd.f32 %v2140, %v2213
    %s2219 = scalar_lea.vmem %s5, 160
    %v2220 = vld [vmem:[%s2219] sm:$0xf]
    %v2221 = vld [vmem:[%s2219 + $0x4] sm:$0xf]
    %v2222 = vld [vmem:[%s2219 + $0x8] sm:$0xf]
    %v2223 = vld [vmem:[%s2219 + $0xc] sm:$0xf]
    %v2224 = vld [vmem:[%s2219 + $0x10] sm:$0xf]
    %v2225 = vld [vmem:[%s2219 + $0x14] sm:$0xf]
    %v2226 = vld [vmem:[%s2219 + $0x18] sm:$0xf]
    %v2227 = vld [vmem:[%s2219 + $0x1c] sm:$0xf]
    %v2229 = vrot.slane %v2141, 1
    %v2238 = vunpack.c.l.b16 %v2220
    %v2239 = vunpack.c.l.b16 %v2221
    %v2240 = vunpack.c.l.b16 %v2222
    %v2241 = vunpack.c.l.b16 %v2223
    %v2242 = vunpack.c.l.b16 %v2224
    %v2243 = vunpack.c.l.b16 %v2225
    %v2244 = vunpack.c.l.b16 %v2226
    %v2245 = vunpack.c.l.b16 %v2227
    %v2246 = vpack.c.b16 %v2239, %v2238
    %v2247 = vpack.c.b16 %v2241, %v2240
    %v2248 = vpack.c.b16 %v2243, %v2242
    %v2249 = vpack.c.b16 %v2245, %v2244
    %v2255 = vsel %vm101, %v2229, 0
    %2257 = vmatprep.subr.bf16.mxu0 0
    %2258 = vmatpush1.bf16.msra.mxu0 0
    %2259 = vmatprep.subr.bf16.mxu0 0
    %2260 = vmatpush1.bf16.msra.mxu0 0
    %2261 = vmatprep.subr.bf16.mxu0 0
    %2262 = vmatpush1.bf16.msra.mxu0 0
    %2263 = vmatprep.subr.bf16.mxu0 0
    %2264 = vmatpush1.bf16.msra.mxu0 0
    %2265 = vmatprep.subr.bf16.mxu0 0
    %2266 = vmatpush1.bf16.msra.mxu0 %v2249
    %2267 = vmatprep.subr.bf16.mxu0 0
    %2268 = vmatpush1.bf16.msra.mxu0 %v2248
    %2269 = vmatprep.subr.bf16.mxu0 0
    %2270 = vmatpush1.bf16.msra.mxu0 %v2247
    %2271 = vmatprep.subr.bf16.mxu0 0
    %2272 = vmatpush1.bf16.msra.mxu0 %v2246
    %2273 = vmatprep.subr.bf16.mxu0 0
    %2274 = vmatpush2.bf16.msra.mxu0 0
    %2275 = vmatprep.subr.bf16.mxu0 0
    %2276 = vmatpush2.bf16.msra.mxu0 0
    %2277 = vmatprep.subr.bf16.mxu0 0
    %2278 = vmatpush2.bf16.msra.mxu0 0
    %2279 = vmatprep.subr.bf16.mxu0 0
    %2280 = vmatpush2.bf16.msra.mxu0 0
    %2281 = vmatprep.subr.bf16.mxu0 0
    %2282 = vmatpush2.bf16.msra.mxu0 0
    %2283 = vmatprep.subr.bf16.mxu0 0
    %2284 = vmatpush2.bf16.msra.mxu0 0
    %2285 = vmatprep.subr.bf16.mxu0 0
    %2286 = vmatpush2.bf16.msra.mxu0 0
    %2287 = vmatprep.subr.bf16.mxu0 0
    %2288 = vmatpush2.bf16.msra.mxu0 0
    %2289 = vmatprep.mubr.bf16.mxu0 0
    %2290 = vmatmul.mubr.bf16.gmra.mxu0 %v2255
    %v2291 = vpop.f32.mrf.mxu0
    %v2292 = vadd.f32 0.0, %v2291
    %v2293 = vpop.f32.mrf.mxu0
    %v2294 = vpop.f32.mrf.mxu0
    %v2295 = vpop.f32.mrf.mxu0
    %2296 = vdwg.mxu0
    %v2297 = vadd.f32 %v2218, %v2292
    %s2298 = scalar_lea.vmem %s5, 192
    %v2299 = vld [vmem:[%s2298] sm:$0xf]
    %v2300 = vld [vmem:[%s2298 + $0x4] sm:$0xf]
    %v2301 = vld [vmem:[%s2298 + $0x8] sm:$0xf]
    %v2302 = vld [vmem:[%s2298 + $0xc] sm:$0xf]
    %v2303 = vld [vmem:[%s2298 + $0x10] sm:$0xf]
    %v2304 = vld [vmem:[%s2298 + $0x14] sm:$0xf]
    %v2305 = vld [vmem:[%s2298 + $0x18] sm:$0xf]
    %v2306 = vld [vmem:[%s2298 + $0x1c] sm:$0xf]
    %v2307 = vrot.slane %v2141, 2
    %v2316 = vunpack.c.l.b16 %v2299
    %v2317 = vunpack.c.l.b16 %v2300
    %v2318 = vunpack.c.l.b16 %v2301
    %v2319 = vunpack.c.l.b16 %v2302
    %v2320 = vunpack.c.l.b16 %v2303
    %v2321 = vunpack.c.l.b16 %v2304
    %v2322 = vunpack.c.l.b16 %v2305
    %v2323 = vunpack.c.l.b16 %v2306
    %v2324 = vpack.c.b16 %v2317, %v2316
    %v2325 = vpack.c.b16 %v2319, %v2318
    %v2326 = vpack.c.b16 %v2321, %v2320
    %v2327 = vpack.c.b16 %v2323, %v2322
    %v2333 = vsel %vm101, %v2307, 0
    %2335 = vmatprep.subr.bf16.mxu0 0
    %2336 = vmatpush1.bf16.msra.mxu0 0
    %2337 = vmatprep.subr.bf16.mxu0 0
    %2338 = vmatpush1.bf16.msra.mxu0 0
    %2339 = vmatprep.subr.bf16.mxu0 0
    %2340 = vmatpush1.bf16.msra.mxu0 0
    %2341 = vmatprep.subr.bf16.mxu0 0
    %2342 = vmatpush1.bf16.msra.mxu0 0
    %2343 = vmatprep.subr.bf16.mxu0 0
    %2344 = vmatpush1.bf16.msra.mxu0 %v2327
    %2345 = vmatprep.subr.bf16.mxu0 0
    %2346 = vmatpush1.bf16.msra.mxu0 %v2326
    %2347 = vmatprep.subr.bf16.mxu0 0
    %2348 = vmatpush1.bf16.msra.mxu0 %v2325
    %2349 = vmatprep.subr.bf16.mxu0 0
    %2350 = vmatpush1.bf16.msra.mxu0 %v2324
    %2351 = vmatprep.subr.bf16.mxu0 0
    %2352 = vmatpush2.bf16.msra.mxu0 0
    %2353 = vmatprep.subr.bf16.mxu0 0
    %2354 = vmatpush2.bf16.msra.mxu0 0
    %2355 = vmatprep.subr.bf16.mxu0 0
    %2356 = vmatpush2.bf16.msra.mxu0 0
    %2357 = vmatprep.subr.bf16.mxu0 0
    %2358 = vmatpush2.bf16.msra.mxu0 0
    %2359 = vmatprep.subr.bf16.mxu0 0
    %2360 = vmatpush2.bf16.msra.mxu0 0
    %2361 = vmatprep.subr.bf16.mxu0 0
    %2362 = vmatpush2.bf16.msra.mxu0 0
    %2363 = vmatprep.subr.bf16.mxu0 0
    %2364 = vmatpush2.bf16.msra.mxu0 0
    %2365 = vmatprep.subr.bf16.mxu0 0
    %2366 = vmatpush2.bf16.msra.mxu0 0
    %2367 = vmatprep.mubr.bf16.mxu0 0
    %2368 = vmatmul.mubr.bf16.gmra.mxu0 %v2333
    %v2369 = vpop.f32.mrf.mxu0
    %v2370 = vadd.f32 0.0, %v2369
    %v2371 = vpop.f32.mrf.mxu0
    %v2372 = vpop.f32.mrf.mxu0
    %v2373 = vpop.f32.mrf.mxu0
    %2374 = vdwg.mxu0
    %v2375 = vadd.f32 %v2297, %v2370
    %s2376 = scalar_lea.vmem %s5, 224
    %v2377 = vld [vmem:[%s2376] sm:$0xf]
    %v2378 = vld [vmem:[%s2376 + $0x4] sm:$0xf]
    %v2379 = vld [vmem:[%s2376 + $0x8] sm:$0xf]
    %v2380 = vld [vmem:[%s2376 + $0xc] sm:$0xf]
    %v2381 = vld [vmem:[%s2376 + $0x10] sm:$0xf]
    %v2382 = vld [vmem:[%s2376 + $0x14] sm:$0xf]
    %v2383 = vld [vmem:[%s2376 + $0x18] sm:$0xf]
    %v2384 = vld [vmem:[%s2376 + $0x1c] sm:$0xf]
    %v2385 = vrot.slane %v2141, 3
    %v2394 = vunpack.c.l.b16 %v2377
    %v2395 = vunpack.c.l.b16 %v2378
    %v2396 = vunpack.c.l.b16 %v2379
    %v2397 = vunpack.c.l.b16 %v2380
    %v2398 = vunpack.c.l.b16 %v2381
    %v2399 = vunpack.c.l.b16 %v2382
    %v2400 = vunpack.c.l.b16 %v2383
    %v2401 = vunpack.c.l.b16 %v2384
    %v2402 = vpack.c.b16 %v2395, %v2394
    %v2403 = vpack.c.b16 %v2397, %v2396
    %v2404 = vpack.c.b16 %v2399, %v2398
    %v2405 = vpack.c.b16 %v2401, %v2400
    %v2411 = vsel %vm101, %v2385, 0
    %2413 = vmatprep.subr.bf16.mxu0 0
    %2414 = vmatpush1.bf16.msra.mxu0 0
    %2415 = vmatprep.subr.bf16.mxu0 0
    %2416 = vmatpush1.bf16.msra.mxu0 0
    %2417 = vmatprep.subr.bf16.mxu0 0
    %2418 = vmatpush1.bf16.msra.mxu0 0
    %2419 = vmatprep.subr.bf16.mxu0 0
    %2420 = vmatpush1.bf16.msra.mxu0 0
    %2421 = vmatprep.subr.bf16.mxu0 0
    %2422 = vmatpush1.bf16.msra.mxu0 %v2405
    %2423 = vmatprep.subr.bf16.mxu0 0
    %2424 = vmatpush1.bf16.msra.mxu0 %v2404
    %2425 = vmatprep.subr.bf16.mxu0 0
    %2426 = vmatpush1.bf16.msra.mxu0 %v2403
    %2427 = vmatprep.subr.bf16.mxu0 0
    %2428 = vmatpush1.bf16.msra.mxu0 %v2402
    %2429 = vmatprep.subr.bf16.mxu0 0
    %2430 = vmatpush2.bf16.msra.mxu0 0
    %2431 = vmatprep.subr.bf16.mxu0 0
    %2432 = vmatpush2.bf16.msra.mxu0 0
    %2433 = vmatprep.subr.bf16.mxu0 0
    %2434 = vmatpush2.bf16.msra.mxu0 0
    %2435 = vmatprep.subr.bf16.mxu0 0
    %2436 = vmatpush2.bf16.msra.mxu0 0
    %2437 = vmatprep.subr.bf16.mxu0 0
    %2438 = vmatpush2.bf16.msra.mxu0 0
    %2439 = vmatprep.subr.bf16.mxu0 0
    %2440 = vmatpush2.bf16.msra.mxu0 0
    %2441 = vmatprep.subr.bf16.mxu0 0
    %2442 = vmatpush2.bf16.msra.mxu0 0
    %2443 = vmatprep.subr.bf16.mxu0 0
    %2444 = vmatpush2.bf16.msra.mxu0 0
    %2445 = vmatprep.mubr.bf16.mxu0 0
    %2446 = vmatmul.mubr.bf16.gmra.mxu0 %v2411
    %v2447 = vpop.f32.mrf.mxu0
    %v2448 = vadd.f32 0.0, %v2447
    %v2449 = vpop.f32.mrf.mxu0
    %v2450 = vpop.f32.mrf.mxu0
    %v2451 = vpop.f32.mrf.mxu0
    %2452 = vdwg.mxu0
    %v2453 = vadd.f32 %v2375, %v2448
    %v2454 = vpack.c.bf16 %v1823, %v1823
    %s2455 = scalar_lea.vmem %s5, 256
    %v2456 = vld [vmem:[%s2455] sm:$0xf]
    %v2457 = vld [vmem:[%s2455 + $0x4] sm:$0xf]
    %v2458 = vld [vmem:[%s2455 + $0x8] sm:$0xf]
    %v2459 = vld [vmem:[%s2455 + $0xc] sm:$0xf]
    %v2460 = vld [vmem:[%s2455 + $0x10] sm:$0xf]
    %v2461 = vld [vmem:[%s2455 + $0x14] sm:$0xf]
    %v2462 = vld [vmem:[%s2455 + $0x18] sm:$0xf]
    %v2463 = vld [vmem:[%s2455 + $0x1c] sm:$0xf]
    %v2472 = vunpack.c.l.b16 %v2456
    %v2473 = vunpack.c.l.b16 %v2457
    %v2474 = vunpack.c.l.b16 %v2458
    %v2475 = vunpack.c.l.b16 %v2459
    %v2476 = vunpack.c.l.b16 %v2460
    %v2477 = vunpack.c.l.b16 %v2461
    %v2478 = vunpack.c.l.b16 %v2462
    %v2479 = vunpack.c.l.b16 %v2463
    %v2480 = vpack.c.b16 %v2473, %v2472
    %v2481 = vpack.c.b16 %v2475, %v2474
    %v2482 = vpack.c.b16 %v2477, %v2476
    %v2483 = vpack.c.b16 %v2479, %v2478
    %v2489 = vsel %vm101, %v2454, 0
    %2491 = vmatprep.subr.bf16.mxu0 0
    %2492 = vmatpush1.bf16.msra.mxu0 0
    %2493 = vmatprep.subr.bf16.mxu0 0
    %2494 = vmatpush1.bf16.msra.mxu0 0
    %2495 = vmatprep.subr.bf16.mxu0 0
    %2496 = vmatpush1.bf16.msra.mxu0 0
    %2497 = vmatprep.subr.bf16.mxu0 0
    %2498 = vmatpush1.bf16.msra.mxu0 0
    %2499 = vmatprep.subr.bf16.mxu0 0
    %2500 = vmatpush1.bf16.msra.mxu0 %v2483
    %2501 = vmatprep.subr.bf16.mxu0 0
    %2502 = vmatpush1.bf16.msra.mxu0 %v2482
    %2503 = vmatprep.subr.bf16.mxu0 0
    %2504 = vmatpush1.bf16.msra.mxu0 %v2481
    %2505 = vmatprep.subr.bf16.mxu0 0
    %2506 = vmatpush1.bf16.msra.mxu0 %v2480
    %2507 = vmatprep.subr.bf16.mxu0 0
    %2508 = vmatpush2.bf16.msra.mxu0 0
    %2509 = vmatprep.subr.bf16.mxu0 0
    %2510 = vmatpush2.bf16.msra.mxu0 0
    %2511 = vmatprep.subr.bf16.mxu0 0
    %2512 = vmatpush2.bf16.msra.mxu0 0
    %2513 = vmatprep.subr.bf16.mxu0 0
    %2514 = vmatpush2.bf16.msra.mxu0 0
    %2515 = vmatprep.subr.bf16.mxu0 0
    %2516 = vmatpush2.bf16.msra.mxu0 0
    %2517 = vmatprep.subr.bf16.mxu0 0
    %2518 = vmatpush2.bf16.msra.mxu0 0
    %2519 = vmatprep.subr.bf16.mxu0 0
    %2520 = vmatpush2.bf16.msra.mxu0 0
    %2521 = vmatprep.subr.bf16.mxu0 0
    %2522 = vmatpush2.bf16.msra.mxu0 0
    %2523 = vmatprep.mubr.bf16.mxu0 0
    %2524 = vmatmul.mubr.bf16.gmra.mxu0 %v2489
    %v2525 = vpop.f32.mrf.mxu0
    %v2526 = vadd.f32 0.0, %v2525
    %v2527 = vpop.f32.mrf.mxu0
    %v2528 = vpop.f32.mrf.mxu0
    %v2529 = vpop.f32.mrf.mxu0
    %2530 = vdwg.mxu0
    %v2531 = vadd.f32 %v2453, %v2526
    %s2532 = scalar_lea.vmem %s5, 288
    %v2533 = vld [vmem:[%s2532] sm:$0xf]
    %v2534 = vld [vmem:[%s2532 + $0x4] sm:$0xf]
    %v2535 = vld [vmem:[%s2532 + $0x8] sm:$0xf]
    %v2536 = vld [vmem:[%s2532 + $0xc] sm:$0xf]
    %v2537 = vld [vmem:[%s2532 + $0x10] sm:$0xf]
    %v2538 = vld [vmem:[%s2532 + $0x14] sm:$0xf]
    %v2539 = vld [vmem:[%s2532 + $0x18] sm:$0xf]
    %v2540 = vld [vmem:[%s2532 + $0x1c] sm:$0xf]
    %v2542 = vrot.slane %v2454, 1
    %v2551 = vunpack.c.l.b16 %v2533
    %v2552 = vunpack.c.l.b16 %v2534
    %v2553 = vunpack.c.l.b16 %v2535
    %v2554 = vunpack.c.l.b16 %v2536
    %v2555 = vunpack.c.l.b16 %v2537
    %v2556 = vunpack.c.l.b16 %v2538
    %v2557 = vunpack.c.l.b16 %v2539
    %v2558 = vunpack.c.l.b16 %v2540
    %v2559 = vpack.c.b16 %v2552, %v2551
    %v2560 = vpack.c.b16 %v2554, %v2553
    %v2561 = vpack.c.b16 %v2556, %v2555
    %v2562 = vpack.c.b16 %v2558, %v2557
    %v2568 = vsel %vm101, %v2542, 0
    %2570 = vmatprep.subr.bf16.mxu0 0
    %2571 = vmatpush1.bf16.msra.mxu0 0
    %2572 = vmatprep.subr.bf16.mxu0 0
    %2573 = vmatpush1.bf16.msra.mxu0 0
    %2574 = vmatprep.subr.bf16.mxu0 0
    %2575 = vmatpush1.bf16.msra.mxu0 0
    %2576 = vmatprep.subr.bf16.mxu0 0
    %2577 = vmatpush1.bf16.msra.mxu0 0
    %2578 = vmatprep.subr.bf16.mxu0 0
    %2579 = vmatpush1.bf16.msra.mxu0 %v2562
    %2580 = vmatprep.subr.bf16.mxu0 0
    %2581 = vmatpush1.bf16.msra.mxu0 %v2561
    %2582 = vmatprep.subr.bf16.mxu0 0
    %2583 = vmatpush1.bf16.msra.mxu0 %v2560
    %2584 = vmatprep.subr.bf16.mxu0 0
    %2585 = vmatpush1.bf16.msra.mxu0 %v2559
    %2586 = vmatprep.subr.bf16.mxu0 0
    %2587 = vmatpush2.bf16.msra.mxu0 0
    %2588 = vmatprep.subr.bf16.mxu0 0
    %2589 = vmatpush2.bf16.msra.mxu0 0
    %2590 = vmatprep.subr.bf16.mxu0 0
    %2591 = vmatpush2.bf16.msra.mxu0 0
    %2592 = vmatprep.subr.bf16.mxu0 0
    %2593 = vmatpush2.bf16.msra.mxu0 0
    %2594 = vmatprep.subr.bf16.mxu0 0
    %2595 = vmatpush2.bf16.msra.mxu0 0
    %2596 = vmatprep.subr.bf16.mxu0 0
    %2597 = vmatpush2.bf16.msra.mxu0 0
    %2598 = vmatprep.subr.bf16.mxu0 0
    %2599 = vmatpush2.bf16.msra.mxu0 0
    %2600 = vmatprep.subr.bf16.mxu0 0
    %2601 = vmatpush2.bf16.msra.mxu0 0
    %2602 = vmatprep.mubr.bf16.mxu0 0
    %2603 = vmatmul.mubr.bf16.gmra.mxu0 %v2568
    %v2604 = vpop.f32.mrf.mxu0
    %v2605 = vadd.f32 0.0, %v2604
    %v2606 = vpop.f32.mrf.mxu0
    %v2607 = vpop.f32.mrf.mxu0
    %v2608 = vpop.f32.mrf.mxu0
    %2609 = vdwg.mxu0
    %v2610 = vadd.f32 %v2531, %v2605
    %s2611 = scalar_lea.vmem %s5, 320
    %v2612 = vld [vmem:[%s2611] sm:$0xf]
    %v2613 = vld [vmem:[%s2611 + $0x4] sm:$0xf]
    %v2614 = vld [vmem:[%s2611 + $0x8] sm:$0xf]
    %v2615 = vld [vmem:[%s2611 + $0xc] sm:$0xf]
    %v2616 = vld [vmem:[%s2611 + $0x10] sm:$0xf]
    %v2617 = vld [vmem:[%s2611 + $0x14] sm:$0xf]
    %v2618 = vld [vmem:[%s2611 + $0x18] sm:$0xf]
    %v2619 = vld [vmem:[%s2611 + $0x1c] sm:$0xf]
    %v2620 = vrot.slane %v2454, 2
    %v2629 = vunpack.c.l.b16 %v2612
    %v2630 = vunpack.c.l.b16 %v2613
    %v2631 = vunpack.c.l.b16 %v2614
    %v2632 = vunpack.c.l.b16 %v2615
    %v2633 = vunpack.c.l.b16 %v2616
    %v2634 = vunpack.c.l.b16 %v2617
    %v2635 = vunpack.c.l.b16 %v2618
    %v2636 = vunpack.c.l.b16 %v2619
    %v2637 = vpack.c.b16 %v2630, %v2629
    %v2638 = vpack.c.b16 %v2632, %v2631
    %v2639 = vpack.c.b16 %v2634, %v2633
    %v2640 = vpack.c.b16 %v2636, %v2635
    %v2646 = vsel %vm101, %v2620, 0
    %2648 = vmatprep.subr.bf16.mxu0 0
    %2649 = vmatpush1.bf16.msra.mxu0 0
    %2650 = vmatprep.subr.bf16.mxu0 0
    %2651 = vmatpush1.bf16.msra.mxu0 0
    %2652 = vmatprep.subr.bf16.mxu0 0
    %2653 = vmatpush1.bf16.msra.mxu0 0
    %2654 = vmatprep.subr.bf16.mxu0 0
    %2655 = vmatpush1.bf16.msra.mxu0 0
    %2656 = vmatprep.subr.bf16.mxu0 0
    %2657 = vmatpush1.bf16.msra.mxu0 %v2640
    %2658 = vmatprep.subr.bf16.mxu0 0
    %2659 = vmatpush1.bf16.msra.mxu0 %v2639
    %2660 = vmatprep.subr.bf16.mxu0 0
    %2661 = vmatpush1.bf16.msra.mxu0 %v2638
    %2662 = vmatprep.subr.bf16.mxu0 0
    %2663 = vmatpush1.bf16.msra.mxu0 %v2637
    %2664 = vmatprep.subr.bf16.mxu0 0
    %2665 = vmatpush2.bf16.msra.mxu0 0
    %2666 = vmatprep.subr.bf16.mxu0 0
    %2667 = vmatpush2.bf16.msra.mxu0 0
    %2668 = vmatprep.subr.bf16.mxu0 0
    %2669 = vmatpush2.bf16.msra.mxu0 0
    %2670 = vmatprep.subr.bf16.mxu0 0
    %2671 = vmatpush2.bf16.msra.mxu0 0
    %2672 = vmatprep.subr.bf16.mxu0 0
    %2673 = vmatpush2.bf16.msra.mxu0 0
    %2674 = vmatprep.subr.bf16.mxu0 0
    %2675 = vmatpush2.bf16.msra.mxu0 0
    %2676 = vmatprep.subr.bf16.mxu0 0
    %2677 = vmatpush2.bf16.msra.mxu0 0
    %2678 = vmatprep.subr.bf16.mxu0 0
    %2679 = vmatpush2.bf16.msra.mxu0 0
    %2680 = vmatprep.mubr.bf16.mxu0 0
    %2681 = vmatmul.mubr.bf16.gmra.mxu0 %v2646
    %v2682 = vpop.f32.mrf.mxu0
    %v2683 = vadd.f32 0.0, %v2682
    %v2684 = vpop.f32.mrf.mxu0
    %v2685 = vpop.f32.mrf.mxu0
    %v2686 = vpop.f32.mrf.mxu0
    %2687 = vdwg.mxu0
    %v2688 = vadd.f32 %v2610, %v2683
    %s2689 = scalar_lea.vmem %s5, 352
    %v2690 = vld [vmem:[%s2689] sm:$0xf]
    %v2691 = vld [vmem:[%s2689 + $0x4] sm:$0xf]
    %v2692 = vld [vmem:[%s2689 + $0x8] sm:$0xf]
    %v2693 = vld [vmem:[%s2689 + $0xc] sm:$0xf]
    %v2694 = vld [vmem:[%s2689 + $0x10] sm:$0xf]
    %v2695 = vld [vmem:[%s2689 + $0x14] sm:$0xf]
    %v2696 = vld [vmem:[%s2689 + $0x18] sm:$0xf]
    %v2697 = vld [vmem:[%s2689 + $0x1c] sm:$0xf]
    %v2698 = vrot.slane %v2454, 3
    %v2707 = vunpack.c.l.b16 %v2690
    %v2708 = vunpack.c.l.b16 %v2691
    %v2709 = vunpack.c.l.b16 %v2692
    %v2710 = vunpack.c.l.b16 %v2693
    %v2711 = vunpack.c.l.b16 %v2694
    %v2712 = vunpack.c.l.b16 %v2695
    %v2713 = vunpack.c.l.b16 %v2696
    %v2714 = vunpack.c.l.b16 %v2697
    %v2715 = vpack.c.b16 %v2708, %v2707
    %v2716 = vpack.c.b16 %v2710, %v2709
    %v2717 = vpack.c.b16 %v2712, %v2711
    %v2718 = vpack.c.b16 %v2714, %v2713
    %v2724 = vsel %vm101, %v2698, 0
    %2726 = vmatprep.subr.bf16.mxu0 0
    %2727 = vmatpush1.bf16.msra.mxu0 0
    %2728 = vmatprep.subr.bf16.mxu0 0
    %2729 = vmatpush1.bf16.msra.mxu0 0
    %2730 = vmatprep.subr.bf16.mxu0 0
    %2731 = vmatpush1.bf16.msra.mxu0 0
    %2732 = vmatprep.subr.bf16.mxu0 0
    %2733 = vmatpush1.bf16.msra.mxu0 0
    %2734 = vmatprep.subr.bf16.mxu0 0
    %2735 = vmatpush1.bf16.msra.mxu0 %v2718
    %2736 = vmatprep.subr.bf16.mxu0 0
    %2737 = vmatpush1.bf16.msra.mxu0 %v2717
    %2738 = vmatprep.subr.bf16.mxu0 0
    %2739 = vmatpush1.bf16.msra.mxu0 %v2716
    %2740 = vmatprep.subr.bf16.mxu0 0
    %2741 = vmatpush1.bf16.msra.mxu0 %v2715
    %2742 = vmatprep.subr.bf16.mxu0 0
    %2743 = vmatpush2.bf16.msra.mxu0 0
    %2744 = vmatprep.subr.bf16.mxu0 0
    %2745 = vmatpush2.bf16.msra.mxu0 0
    %2746 = vmatprep.subr.bf16.mxu0 0
    %2747 = vmatpush2.bf16.msra.mxu0 0
    %2748 = vmatprep.subr.bf16.mxu0 0
    %2749 = vmatpush2.bf16.msra.mxu0 0
    %2750 = vmatprep.subr.bf16.mxu0 0
    %2751 = vmatpush2.bf16.msra.mxu0 0
    %2752 = vmatprep.subr.bf16.mxu0 0
    %2753 = vmatpush2.bf16.msra.mxu0 0
    %2754 = vmatprep.subr.bf16.mxu0 0
    %2755 = vmatpush2.bf16.msra.mxu0 0
    %2756 = vmatprep.subr.bf16.mxu0 0
    %2757 = vmatpush2.bf16.msra.mxu0 0
    %2758 = vmatprep.mubr.bf16.mxu0 0
    %2759 = vmatmul.mubr.bf16.gmra.mxu0 %v2724
    %v2760 = vpop.f32.mrf.mxu0
    %v2761 = vadd.f32 0.0, %v2760
    %v2762 = vpop.f32.mrf.mxu0
    %v2763 = vpop.f32.mrf.mxu0
    %v2764 = vpop.f32.mrf.mxu0
    %2765 = vdwg.mxu0
    %v2766 = vadd.f32 %v2688, %v2761
    %v2767 = vpack.c.bf16 %v1828, %v1828
    %s2768 = scalar_lea.vmem %s5, 384
    %v2769 = vld [vmem:[%s2768] sm:$0xf]
    %v2770 = vld [vmem:[%s2768 + $0x4] sm:$0xf]
    %v2771 = vld [vmem:[%s2768 + $0x8] sm:$0xf]
    %v2772 = vld [vmem:[%s2768 + $0xc] sm:$0xf]
    %v2773 = vld [vmem:[%s2768 + $0x10] sm:$0xf]
    %v2774 = vld [vmem:[%s2768 + $0x14] sm:$0xf]
    %v2775 = vld [vmem:[%s2768 + $0x18] sm:$0xf]
    %v2776 = vld [vmem:[%s2768 + $0x1c] sm:$0xf]
    %v2785 = vunpack.c.l.b16 %v2769
    %v2786 = vunpack.c.l.b16 %v2770
    %v2787 = vunpack.c.l.b16 %v2771
    %v2788 = vunpack.c.l.b16 %v2772
    %v2789 = vunpack.c.l.b16 %v2773
    %v2790 = vunpack.c.l.b16 %v2774
    %v2791 = vunpack.c.l.b16 %v2775
    %v2792 = vunpack.c.l.b16 %v2776
    %v2793 = vpack.c.b16 %v2786, %v2785
    %v2794 = vpack.c.b16 %v2788, %v2787
    %v2795 = vpack.c.b16 %v2790, %v2789
    %v2796 = vpack.c.b16 %v2792, %v2791
    %v2802 = vsel %vm101, %v2767, 0
    %2804 = vmatprep.subr.bf16.mxu0 0
    %2805 = vmatpush1.bf16.msra.mxu0 0
    %2806 = vmatprep.subr.bf16.mxu0 0
    %2807 = vmatpush1.bf16.msra.mxu0 0
    %2808 = vmatprep.subr.bf16.mxu0 0
    %2809 = vmatpush1.bf16.msra.mxu0 0
    %2810 = vmatprep.subr.bf16.mxu0 0
    %2811 = vmatpush1.bf16.msra.mxu0 0
    %2812 = vmatprep.subr.bf16.mxu0 0
    %2813 = vmatpush1.bf16.msra.mxu0 %v2796
    %2814 = vmatprep.subr.bf16.mxu0 0
    %2815 = vmatpush1.bf16.msra.mxu0 %v2795
    %2816 = vmatprep.subr.bf16.mxu0 0
    %2817 = vmatpush1.bf16.msra.mxu0 %v2794
    %2818 = vmatprep.subr.bf16.mxu0 0
    %2819 = vmatpush1.bf16.msra.mxu0 %v2793
    %2820 = vmatprep.subr.bf16.mxu0 0
    %2821 = vmatpush2.bf16.msra.mxu0 0
    %2822 = vmatprep.subr.bf16.mxu0 0
    %2823 = vmatpush2.bf16.msra.mxu0 0
    %2824 = vmatprep.subr.bf16.mxu0 0
    %2825 = vmatpush2.bf16.msra.mxu0 0
    %2826 = vmatprep.subr.bf16.mxu0 0
    %2827 = vmatpush2.bf16.msra.mxu0 0
    %2828 = vmatprep.subr.bf16.mxu0 0
    %2829 = vmatpush2.bf16.msra.mxu0 0
    %2830 = vmatprep.subr.bf16.mxu0 0
    %2831 = vmatpush2.bf16.msra.mxu0 0
    %2832 = vmatprep.subr.bf16.mxu0 0
    %2833 = vmatpush2.bf16.msra.mxu0 0
    %2834 = vmatprep.subr.bf16.mxu0 0
    %2835 = vmatpush2.bf16.msra.mxu0 0
    %2836 = vmatprep.mubr.bf16.mxu0 0
    %2837 = vmatmul.mubr.bf16.gmra.mxu0 %v2802
    %v2838 = vpop.f32.mrf.mxu0
    %v2839 = vadd.f32 0.0, %v2838
    %v2840 = vpop.f32.mrf.mxu0
    %v2841 = vpop.f32.mrf.mxu0
    %v2842 = vpop.f32.mrf.mxu0
    %2843 = vdwg.mxu0
    %v2844 = vadd.f32 %v2766, %v2839
    %s2845 = scalar_lea.vmem %s5, 416
    %v2846 = vld [vmem:[%s2845] sm:$0xf]
    %v2847 = vld [vmem:[%s2845 + $0x4] sm:$0xf]
    %v2848 = vld [vmem:[%s2845 + $0x8] sm:$0xf]
    %v2849 = vld [vmem:[%s2845 + $0xc] sm:$0xf]
    %v2850 = vld [vmem:[%s2845 + $0x10] sm:$0xf]
    %v2851 = vld [vmem:[%s2845 + $0x14] sm:$0xf]
    %v2852 = vld [vmem:[%s2845 + $0x18] sm:$0xf]
    %v2853 = vld [vmem:[%s2845 + $0x1c] sm:$0xf]
    %v2855 = vrot.slane %v2767, 1
    %v2864 = vunpack.c.l.b16 %v2846
    %v2865 = vunpack.c.l.b16 %v2847
    %v2866 = vunpack.c.l.b16 %v2848
    %v2867 = vunpack.c.l.b16 %v2849
    %v2868 = vunpack.c.l.b16 %v2850
    %v2869 = vunpack.c.l.b16 %v2851
    %v2870 = vunpack.c.l.b16 %v2852
    %v2871 = vunpack.c.l.b16 %v2853
    %v2872 = vpack.c.b16 %v2865, %v2864
    %v2873 = vpack.c.b16 %v2867, %v2866
    %v2874 = vpack.c.b16 %v2869, %v2868
    %v2875 = vpack.c.b16 %v2871, %v2870
    %v2881 = vsel %vm101, %v2855, 0
    %2883 = vmatprep.subr.bf16.mxu0 0
    %2884 = vmatpush1.bf16.msra.mxu0 0
    %2885 = vmatprep.subr.bf16.mxu0 0
    %2886 = vmatpush1.bf16.msra.mxu0 0
    %2887 = vmatprep.subr.bf16.mxu0 0
    %2888 = vmatpush1.bf16.msra.mxu0 0
    %2889 = vmatprep.subr.bf16.mxu0 0
    %2890 = vmatpush1.bf16.msra.mxu0 0
    %2891 = vmatprep.subr.bf16.mxu0 0
    %2892 = vmatpush1.bf16.msra.mxu0 %v2875
    %2893 = vmatprep.subr.bf16.mxu0 0
    %2894 = vmatpush1.bf16.msra.mxu0 %v2874
    %2895 = vmatprep.subr.bf16.mxu0 0
    %2896 = vmatpush1.bf16.msra.mxu0 %v2873
    %2897 = vmatprep.subr.bf16.mxu0 0
    %2898 = vmatpush1.bf16.msra.mxu0 %v2872
    %2899 = vmatprep.subr.bf16.mxu0 0
    %2900 = vmatpush2.bf16.msra.mxu0 0
    %2901 = vmatprep.subr.bf16.mxu0 0
    %2902 = vmatpush2.bf16.msra.mxu0 0
    %2903 = vmatprep.subr.bf16.mxu0 0
    %2904 = vmatpush2.bf16.msra.mxu0 0
    %2905 = vmatprep.subr.bf16.mxu0 0
    %2906 = vmatpush2.bf16.msra.mxu0 0
    %2907 = vmatprep.subr.bf16.mxu0 0
    %2908 = vmatpush2.bf16.msra.mxu0 0
    %2909 = vmatprep.subr.bf16.mxu0 0
    %2910 = vmatpush2.bf16.msra.mxu0 0
    %2911 = vmatprep.subr.bf16.mxu0 0
    %2912 = vmatpush2.bf16.msra.mxu0 0
    %2913 = vmatprep.subr.bf16.mxu0 0
    %2914 = vmatpush2.bf16.msra.mxu0 0
    %2915 = vmatprep.mubr.bf16.mxu0 0
    %2916 = vmatmul.mubr.bf16.gmra.mxu0 %v2881
    %v2917 = vpop.f32.mrf.mxu0
    %v2918 = vadd.f32 0.0, %v2917
    %v2919 = vpop.f32.mrf.mxu0
    %v2920 = vpop.f32.mrf.mxu0
    %v2921 = vpop.f32.mrf.mxu0
    %2922 = vdwg.mxu0
    %v2923 = vadd.f32 %v2844, %v2918
    %s2924 = scalar_lea.vmem %s5, 448
    %v2925 = vld [vmem:[%s2924] sm:$0xf]
    %v2926 = vld [vmem:[%s2924 + $0x4] sm:$0xf]
    %v2927 = vld [vmem:[%s2924 + $0x8] sm:$0xf]
    %v2928 = vld [vmem:[%s2924 + $0xc] sm:$0xf]
    %v2929 = vld [vmem:[%s2924 + $0x10] sm:$0xf]
    %v2930 = vld [vmem:[%s2924 + $0x14] sm:$0xf]
    %v2931 = vld [vmem:[%s2924 + $0x18] sm:$0xf]
    %v2932 = vld [vmem:[%s2924 + $0x1c] sm:$0xf]
    %v2933 = vrot.slane %v2767, 2
    %v2942 = vunpack.c.l.b16 %v2925
    %v2943 = vunpack.c.l.b16 %v2926
    %v2944 = vunpack.c.l.b16 %v2927
    %v2945 = vunpack.c.l.b16 %v2928
    %v2946 = vunpack.c.l.b16 %v2929
    %v2947 = vunpack.c.l.b16 %v2930
    %v2948 = vunpack.c.l.b16 %v2931
    %v2949 = vunpack.c.l.b16 %v2932
    %v2950 = vpack.c.b16 %v2943, %v2942
    %v2951 = vpack.c.b16 %v2945, %v2944
    %v2952 = vpack.c.b16 %v2947, %v2946
    %v2953 = vpack.c.b16 %v2949, %v2948
    %v2959 = vsel %vm101, %v2933, 0
    %2961 = vmatprep.subr.bf16.mxu0 0
    %2962 = vmatpush1.bf16.msra.mxu0 0
    %2963 = vmatprep.subr.bf16.mxu0 0
    %2964 = vmatpush1.bf16.msra.mxu0 0
    %2965 = vmatprep.subr.bf16.mxu0 0
    %2966 = vmatpush1.bf16.msra.mxu0 0
    %2967 = vmatprep.subr.bf16.mxu0 0
    %2968 = vmatpush1.bf16.msra.mxu0 0
    %2969 = vmatprep.subr.bf16.mxu0 0
    %2970 = vmatpush1.bf16.msra.mxu0 %v2953
    %2971 = vmatprep.subr.bf16.mxu0 0
    %2972 = vmatpush1.bf16.msra.mxu0 %v2952
    %2973 = vmatprep.subr.bf16.mxu0 0
    %2974 = vmatpush1.bf16.msra.mxu0 %v2951
    %2975 = vmatprep.subr.bf16.mxu0 0
    %2976 = vmatpush1.bf16.msra.mxu0 %v2950
    %2977 = vmatprep.subr.bf16.mxu0 0
    %2978 = vmatpush2.bf16.msra.mxu0 0
    %2979 = vmatprep.subr.bf16.mxu0 0
    %2980 = vmatpush2.bf16.msra.mxu0 0
    %2981 = vmatprep.subr.bf16.mxu0 0
    %2982 = vmatpush2.bf16.msra.mxu0 0
    %2983 = vmatprep.subr.bf16.mxu0 0
    %2984 = vmatpush2.bf16.msra.mxu0 0
    %2985 = vmatprep.subr.bf16.mxu0 0
    %2986 = vmatpush2.bf16.msra.mxu0 0
    %2987 = vmatprep.subr.bf16.mxu0 0
    %2988 = vmatpush2.bf16.msra.mxu0 0
    %2989 = vmatprep.subr.bf16.mxu0 0
    %2990 = vmatpush2.bf16.msra.mxu0 0
    %2991 = vmatprep.subr.bf16.mxu0 0
    %2992 = vmatpush2.bf16.msra.mxu0 0
    %2993 = vmatprep.mubr.bf16.mxu0 0
    %2994 = vmatmul.mubr.bf16.gmra.mxu0 %v2959
    %v2995 = vpop.f32.mrf.mxu0
    %v2996 = vadd.f32 0.0, %v2995
    %v2997 = vpop.f32.mrf.mxu0
    %v2998 = vpop.f32.mrf.mxu0
    %v2999 = vpop.f32.mrf.mxu0
    %3000 = vdwg.mxu0
    %v3001 = vadd.f32 %v2923, %v2996
    %s3002 = scalar_lea.vmem %s5, 480
    %v3003 = vld [vmem:[%s3002] sm:$0xf]
    %v3004 = vld [vmem:[%s3002 + $0x4] sm:$0xf]
    %v3005 = vld [vmem:[%s3002 + $0x8] sm:$0xf]
    %v3006 = vld [vmem:[%s3002 + $0xc] sm:$0xf]
    %v3007 = vld [vmem:[%s3002 + $0x10] sm:$0xf]
    %v3008 = vld [vmem:[%s3002 + $0x14] sm:$0xf]
    %v3009 = vld [vmem:[%s3002 + $0x18] sm:$0xf]
    %v3010 = vld [vmem:[%s3002 + $0x1c] sm:$0xf]
    %v3011 = vrot.slane %v2767, 3
    %v3020 = vunpack.c.l.b16 %v3003
    %v3021 = vunpack.c.l.b16 %v3004
    %v3022 = vunpack.c.l.b16 %v3005
    %v3023 = vunpack.c.l.b16 %v3006
    %v3024 = vunpack.c.l.b16 %v3007
    %v3025 = vunpack.c.l.b16 %v3008
    %v3026 = vunpack.c.l.b16 %v3009
    %v3027 = vunpack.c.l.b16 %v3010
    %v3028 = vpack.c.b16 %v3021, %v3020
    %v3029 = vpack.c.b16 %v3023, %v3022
    %v3030 = vpack.c.b16 %v3025, %v3024
    %v3031 = vpack.c.b16 %v3027, %v3026
    %v3037 = vsel %vm101, %v3011, 0
    %3039 = vmatprep.subr.bf16.mxu0 0
    %3040 = vmatpush1.bf16.msra.mxu0 0
    %3041 = vmatprep.subr.bf16.mxu0 0
    %3042 = vmatpush1.bf16.msra.mxu0 0
    %3043 = vmatprep.subr.bf16.mxu0 0
    %3044 = vmatpush1.bf16.msra.mxu0 0
    %3045 = vmatprep.subr.bf16.mxu0 0
    %3046 = vmatpush1.bf16.msra.mxu0 0
    %3047 = vmatprep.subr.bf16.mxu0 0
    %3048 = vmatpush1.bf16.msra.mxu0 %v3031
    %3049 = vmatprep.subr.bf16.mxu0 0
    %3050 = vmatpush1.bf16.msra.mxu0 %v3030
    %3051 = vmatprep.subr.bf16.mxu0 0
    %3052 = vmatpush1.bf16.msra.mxu0 %v3029
    %3053 = vmatprep.subr.bf16.mxu0 0
    %3054 = vmatpush1.bf16.msra.mxu0 %v3028
    %3055 = vmatprep.subr.bf16.mxu0 0
    %3056 = vmatpush2.bf16.msra.mxu0 0
    %3057 = vmatprep.subr.bf16.mxu0 0
    %3058 = vmatpush2.bf16.msra.mxu0 0
    %3059 = vmatprep.subr.bf16.mxu0 0
    %3060 = vmatpush2.bf16.msra.mxu0 0
    %3061 = vmatprep.subr.bf16.mxu0 0
    %3062 = vmatpush2.bf16.msra.mxu0 0
    %3063 = vmatprep.subr.bf16.mxu0 0
    %3064 = vmatpush2.bf16.msra.mxu0 0
    %3065 = vmatprep.subr.bf16.mxu0 0
    %3066 = vmatpush2.bf16.msra.mxu0 0
    %3067 = vmatprep.subr.bf16.mxu0 0
    %3068 = vmatpush2.bf16.msra.mxu0 0
    %3069 = vmatprep.subr.bf16.mxu0 0
    %3070 = vmatpush2.bf16.msra.mxu0 0
    %3071 = vmatprep.mubr.bf16.mxu0 0
    %3072 = vmatmul.mubr.bf16.gmra.mxu0 %v3037
    %v3073 = vpop.f32.mrf.mxu0
    %v3074 = vadd.f32 0.0, %v3073
    %v3075 = vpop.f32.mrf.mxu0
    %v3076 = vpop.f32.mrf.mxu0
    %v3077 = vpop.f32.mrf.mxu0
    %3078 = vdwg.mxu0
    %v3079 = vadd.f32 %v3001, %v3074
    %v3080 = vld [vmem:[%s6] sm:$0x1]
    %v3082 = vlaneseq
    %v3083 = vshrl.u32 %v3082, 7
    %v3084 = vsub.s32 0, %v3083
    %v3085 = vrot.slane %v3080, %v3084
    %v3087 = vadd.f32 %v3079, %v3085
    %vm3088 = vcmask 58368
    %3089 = vst.msk [vmem:[#allocation2] sm:$0x3] %vm3088, %v3087
    // Predicated region
    $region30: #{timesnet_forward.1} parent=1 // pred_check
      _
    $region31: #{timesnet_forward.1} parent=1 // pred_check_branch
      %3091 = sbr.rel (0) target = $region33
    $region32: #{timesnet_forward.1} parent=1 // pred_region
      %s3093 = ssub.s32 32, 32
      %3094 = vsyncadd [#allocation3], %s3093
      %s3096 = sshll.u32 [#allocation2], 4
      %s3097 = int_to_ptr.vmem [resolvable:$true] %s3096
      %3099 = dma.vmem_to_hbm [thread:$0]  %s3097, 32, %s7, [#allocation3]
    $region33: #{timesnet_forward.1} parent=1 // pred_fallthru
      _
    // Predicated region
    $region34: #{timesnet_forward.1} parent=1 // pred_check
      _
    $region35: #{timesnet_forward.1} parent=1 // pred_check_branch
      %3101 = sbr.rel (0) target = $region37
    $region36: #{timesnet_forward.1} parent=1 // pred_region
      %3102 = dma.done [#allocation3], 32
    $region37: #{timesnet_forward.1} parent=1 // pred_fallthru
      _
    %3103 = vsyncpa [#allocation3], 1

</llo_original>
